<compile_context>
chip_gen: v7x
topology: tpu7x:2x2x1
jax: 0.10.0
libtpu: 0.0.40
codegen_flags: <defaults>
</compile_context>

<pallas_src>
import jax
import jax.numpy as jnp
from jax.experimental import pallas as pl
from jax.experimental.pallas import tpu as pltpu

D_MODEL = 32          # input_dim
NHEAD = 4
HEAD_DIM = D_MODEL // NHEAD
DIM_FF = 128          # dim_feedforward
NUM_LAYERS = 2
LN_EPS = 1e-5


def _layernorm(h, w, b):
    mu = jnp.mean(h, axis=-1, keepdims=True)
    var = jnp.mean((h - mu) ** 2, axis=-1, keepdims=True)
    return (h - mu) * jax.lax.rsqrt(var + LN_EPS) * w + b


def fused_transformer_kernel(x_ref, wqkv_ref, bqkv_ref, wo_ref, bo_ref,
                             ln1w_ref, ln1b_ref, w1_ref, b1_ref,
                             w2_ref, b2_ref, ln2w_ref, ln2b_ref,
                             fcw_ref, fcb_ref, o_ref):
    Bt, S, D = x_ref.shape
    # Flatten batch*seq into the matmul M dimension (leading-dim reshape only).
    rows = x_ref[...].astype(jnp.float32).reshape(Bt * S, D)
    scale = 1.0 / (HEAD_DIM ** 0.5)

    for l in range(NUM_LAYERS):                       # static unroll (2 layers)
        # --- fused QKV projection: one (R, D) x (D, 3D) matmul ---
        qkv = (jnp.dot(rows, wqkv_ref[l], preferred_element_type=jnp.float32)
               + bqkv_ref[l])                         # (R, 3D)

        # --- multi-head self-attention (per batch element within the tile) ---
        attn_tiles = []
        for b in range(Bt):                           # Bt is 1 at test size
            r0 = b * S
            heads = []
            for h in range(NHEAD):                    # static unrolled heads
                q_h = qkv[r0:r0 + S, h * HEAD_DIM:(h + 1) * HEAD_DIM]
                k_h = qkv[r0:r0 + S, D + h * HEAD_DIM:D + (h + 1) * HEAD_DIM]
                v_h = qkv[r0:r0 + S, 2 * D + h * HEAD_DIM:2 * D + (h + 1) * HEAD_DIM]
                s = jnp.dot(q_h, k_h.T, preferred_element_type=jnp.float32) * scale
                s = s - jnp.max(s, axis=-1, keepdims=True)
                p = jnp.exp(s)
                p = p * pl.reciprocal(jnp.sum(p, axis=-1, keepdims=True), approx=True)
                heads.append(jnp.dot(p, v_h, preferred_element_type=jnp.float32))
            attn_tiles.append(jnp.concatenate(heads, axis=-1))
        attn = attn_tiles[0] if Bt == 1 else jnp.concatenate(attn_tiles, axis=0)
        attn = (jnp.dot(attn, wo_ref[l], preferred_element_type=jnp.float32)
                + bo_ref[l])

        # residual + LayerNorm1 (post-norm; dropout = identity in eval)
        h1 = _layernorm(rows + attn, ln1w_ref[l], ln1b_ref[l])

        # --- feed-forward: Linear -> ReLU -> Linear (rows = batch*seq) ---
        f = jnp.dot(h1, w1_ref[l], preferred_element_type=jnp.float32) + b1_ref[l]
        f = jnp.maximum(f, 0.0)
        f = jnp.dot(f, w2_ref[l], preferred_element_type=jnp.float32) + b2_ref[l]

        # residual + LayerNorm2
        rows = _layernorm(h1 + f, ln2w_ref[l], ln2b_ref[l])

    # --- fused head: last sequence position of each batch element (== encoded[-1]) ---
    if Bt == 1:
        last = rows[S - 1:S, :]
    else:
        last = jnp.concatenate(
            [rows[b * S + S - 1:b * S + S, :] for b in range(Bt)], axis=0)
    out = (jnp.dot(last, fcw_ref[...], preferred_element_type=jnp.float32)
           + fcb_ref[...])                            # (Bt, 1)
    o_ref[...] = out.astype(o_ref.dtype)


@jax.jit
def transformer_baseline_forward(x, params):
    # x: (B, S, D) == PyTorch (batch, seq, input_dim) before its permute(1, 0, 2).
    B, S, D = x.shape
    ncores = 2 if B % 2 == 0 else 1      # size-2 parallel axis feeds both v7x TCs
    b_tile = B // ncores

    layers = params['layers']

    def stack(name):
        return jnp.stack([lp[name] for lp in layers], axis=0)

    wqkv = jnp.stack(
        [jnp.concatenate([lp['wq'], lp['wk'], lp['wv']], axis=1) for lp in layers], axis=0)
    bqkv = jnp.stack(
        [jnp.concatenate([lp['bq'], lp['bk'], lp['bv']], axis=1) for lp in layers], axis=0)
    weights = [wqkv, bqkv, stack('wo'), stack('bo'),
               stack('ln1_w'), stack('ln1_b'),
               stack('w1'), stack('b1'), stack('w2'), stack('b2'),
               stack('ln2_w'), stack('ln2_b'),
               params['fc_w'], params['fc_b']]

    # Whole weight tensors live in VMEM, replicated across grid steps.
    w_specs = [pl.BlockSpec(w.shape, lambda i, nd=w.ndim: (0,) * nd) for w in weights]

    out = pl.pallas_call(
        fused_transformer_kernel,
        out_shape=jax.ShapeDtypeStruct((ncores, b_tile, 1), x.dtype),
        grid=(ncores,),
        in_specs=[pl.BlockSpec((b_tile, S, D), lambda i: (i, 0, 0))] + w_specs,
        out_specs=pl.BlockSpec((None, b_tile, 1), lambda i: (i, 0, 0)),
        compiler_params=pltpu.CompilerParams(dimension_semantics=("parallel",)),
    )(x, *weights)
    return out.reshape(B, 1)


def init_params(key):
    """Deterministic synthetic init (PyTorch-style uniform bounds; LN = ones/zeros)."""
    def lin(k, fan_in, fan_out):
        k1, k2 = jax.random.split(k)
        bound = 1.0 / (fan_in ** 0.5)
        w = jax.random.uniform(k1, (fan_in, fan_out), jnp.float32, -bound, bound)
        b = jax.random.uniform(k2, (1, fan_out), jnp.float32, -bound, bound)
        return w, b

    keys = jax.random.split(key, NUM_LAYERS + 1)
    layers = []
    for lk in keys[:NUM_LAYERS]:
        ks = jax.random.split(lk, 6)
        wq, bq = lin(ks[0], D_MODEL, D_MODEL)
        wk, bk = lin(ks[1], D_MODEL, D_MODEL)
        wv, bv = lin(ks[2], D_MODEL, D_MODEL)
        wo, bo = lin(ks[3], D_MODEL, D_MODEL)
        w1, b1 = lin(ks[4], D_MODEL, DIM_FF)
        w2, b2 = lin(ks[5], DIM_FF, D_MODEL)
        layers.append(dict(
            wq=wq, bq=bq, wk=wk, bk=bk, wv=wv, bv=bv, wo=wo, bo=bo,
            ln1_w=jnp.ones((1, D_MODEL), jnp.float32),
            ln1_b=jnp.zeros((1, D_MODEL), jnp.float32),
            w1=w1, b1=b1, w2=w2, b2=b2,
            ln2_w=jnp.ones((1, D_MODEL), jnp.float32),
            ln2_b=jnp.zeros((1, D_MODEL), jnp.float32)))
    fc_w, fc_b = lin(keys[-1], D_MODEL, 1)
    return dict(layers=layers, fc_w=fc_w, fc_b=fc_b)


if __name__ == "__main__":
    key = jax.random.PRNGKey(0)
    pkey, xkey = jax.random.split(key)
    params = init_params(pkey)

    B, S = 2, 8
    x = jax.random.normal(xkey, (B, S, D_MODEL), dtype=jnp.float32)

    out = transformer_baseline_forward(x, params)
    out = jax.block_until_ready(out)
    assert out.shape == (B, 1) and out.dtype == jnp.float32
    print("KERNEL_OK")
</pallas_src>

<mosaic_0001>
module attributes {stable_mosaic.version = 11 : i64} {
  func.func @fused_transformer_kernel(%arg0: i32, %arg1: memref<1x8x32xf32, #tpu.memory_space<vmem>>, %arg2: memref<2x32x96xf32, #tpu.memory_space<vmem>>, %arg3: memref<2x1x96xf32, #tpu.memory_space<vmem>>, %arg4: memref<2x32x32xf32, #tpu.memory_space<vmem>>, %arg5: memref<2x1x32xf32, #tpu.memory_space<vmem>>, %arg6: memref<2x1x32xf32, #tpu.memory_space<vmem>>, %arg7: memref<2x1x32xf32, #tpu.memory_space<vmem>>, %arg8: memref<2x32x128xf32, #tpu.memory_space<vmem>>, %arg9: memref<2x1x128xf32, #tpu.memory_space<vmem>>, %arg10: memref<2x128x32xf32, #tpu.memory_space<vmem>>, %arg11: memref<2x1x32xf32, #tpu.memory_space<vmem>>, %arg12: memref<2x1x32xf32, #tpu.memory_space<vmem>>, %arg13: memref<2x1x32xf32, #tpu.memory_space<vmem>>, %arg14: memref<32x1xf32, #tpu.memory_space<vmem>>, %arg15: memref<1x1xf32, #tpu.memory_space<vmem>>, %arg16: memref<1x1x1xf32, #tpu.memory_space<vmem>>) attributes {dimension_semantics = [#tpu.dimension_semantics<parallel>], iteration_bounds = array<i64: 2>, scalar_prefetch = 0 : i64, scratch_operands = 0 : i64, tpu.core_type = #tpu.core_type<tc>, window_params = [{transform_indices = @transform_0, window_bounds = array<i64: 1, 8, 32>}, {pipeline_mode = #tpu.pipeline_mode<synchronous>, transform_indices = @transform_1, window_bounds = array<i64: 2, 32, 96>}, {pipeline_mode = #tpu.pipeline_mode<synchronous>, transform_indices = @transform_2, window_bounds = array<i64: 2, 1, 96>}, {pipeline_mode = #tpu.pipeline_mode<synchronous>, transform_indices = @transform_3, window_bounds = array<i64: 2, 32, 32>}, {pipeline_mode = #tpu.pipeline_mode<synchronous>, transform_indices = @transform_4, window_bounds = array<i64: 2, 1, 32>}, {pipeline_mode = #tpu.pipeline_mode<synchronous>, transform_indices = @transform_5, window_bounds = array<i64: 2, 1, 32>}, {pipeline_mode = #tpu.pipeline_mode<synchronous>, transform_indices = @transform_6, window_bounds = array<i64: 2, 1, 32>}, {pipeline_mode = #tpu.pipeline_mode<synchronous>, transform_indices = @transform_7, window_bounds = array<i64: 2, 32, 128>}, {pipeline_mode = #tpu.pipeline_mode<synchronous>, transform_indices = @transform_8, window_bounds = array<i64: 2, 1, 128>}, {pipeline_mode = #tpu.pipeline_mode<synchronous>, transform_indices = @transform_9, window_bounds = array<i64: 2, 128, 32>}, {pipeline_mode = #tpu.pipeline_mode<synchronous>, transform_indices = @transform_10, window_bounds = array<i64: 2, 1, 32>}, {pipeline_mode = #tpu.pipeline_mode<synchronous>, transform_indices = @transform_11, window_bounds = array<i64: 2, 1, 32>}, {pipeline_mode = #tpu.pipeline_mode<synchronous>, transform_indices = @transform_12, window_bounds = array<i64: 2, 1, 32>}, {pipeline_mode = #tpu.pipeline_mode<synchronous>, transform_indices = @transform_13, window_bounds = array<i64: 32, 1>}, {pipeline_mode = #tpu.pipeline_mode<synchronous>, transform_indices = @transform_14, window_bounds = array<i64: 1, 1>}, {transform_indices = @transform_15, window_bounds = array<i64: 1, 1, 1>}]} {
    %c0 = arith.constant 0 : index
    %c0_0 = arith.constant 0 : index
    %c0_1 = arith.constant 0 : index
    %0 = vector.load %arg1[%c0, %c0_0, %c0_1] : memref<1x8x32xf32, #tpu.memory_space<vmem>>, vector<1x8x32xf32>
    %1 = vector.shape_cast %0 : vector<1x8x32xf32> to vector<8x32xf32>
    %c0_2 = arith.constant 0 : index
    %c0_3 = arith.constant 0 : index
    %c0_4 = arith.constant 0 : index
    %2 = vector.load %arg2[%c0_2, %c0_3, %c0_4] : memref<2x32x96xf32, #tpu.memory_space<vmem>>, vector<1x32x96xf32>
    %3 = vector.shape_cast %2 : vector<1x32x96xf32> to vector<32x96xf32>
    %cst = arith.constant dense<0.000000e+00> : vector<8x96xf32>
    %4 = tpu.matmul %1, %3, %cst {dimension_numbers = #tpu.dot_dimension_numbers<[1], [0], [0], [1], [0, 0, 1, 1], [], []>} : vector<8x32xf32>, vector<32x96xf32>, vector<8x96xf32> -> vector<8x96xf32>
    %c0_5 = arith.constant 0 : index
    %c0_6 = arith.constant 0 : index
    %c0_7 = arith.constant 0 : index
    %5 = vector.load %arg3[%c0_5, %c0_6, %c0_7] : memref<2x1x96xf32, #tpu.memory_space<vmem>>, vector<1x1x96xf32>
    %6 = vector.shape_cast %5 : vector<1x1x96xf32> to vector<1x96xf32>
    %7 = vector.broadcast %6 : vector<1x96xf32> to vector<8x96xf32>
    %8 = arith.addf %4, %7 : vector<8x96xf32>
    %9 = vector.extract_strided_slice %8 {offsets = [0, 0], sizes = [8, 8], strides = [1, 1]} : vector<8x96xf32> to vector<8x8xf32>
    %10 = vector.extract_strided_slice %8 {offsets = [0, 32], sizes = [8, 8], strides = [1, 1]} : vector<8x96xf32> to vector<8x8xf32>
    %11 = vector.extract_strided_slice %8 {offsets = [0, 64], sizes = [8, 8], strides = [1, 1]} : vector<8x96xf32> to vector<8x8xf32>
    %12 = tpu.transpose %10, [1, 0] : vector<8x8xf32> -> vector<8x8xf32>
    %cst_8 = arith.constant dense<0.000000e+00> : vector<8x8xf32>
    %13 = tpu.matmul %9, %12, %cst_8 {dimension_numbers = #tpu.dot_dimension_numbers<[1], [0], [0], [1], [0, 0, 1, 1], [], []>} : vector<8x8xf32>, vector<8x8xf32>, vector<8x8xf32> -> vector<8x8xf32>
    %cst_9 = arith.constant 0.353553385 : f32
    %14 = vector.broadcast %cst_9 : f32 to vector<8x8xf32>
    %15 = arith.mulf %13, %14 : vector<8x8xf32>
    %cst_10 = arith.constant dense<0xFF800000> : vector<8xf32>
    %16 = vector.multi_reduction <maximumf>, %15, %cst_10 [1] : vector<8x8xf32> to vector<8xf32>
    %17 = vector.shape_cast %16 : vector<8xf32> to vector<8x1xf32>
    %18 = vector.broadcast %17 : vector<8x1xf32> to vector<8x8xf32>
    %19 = arith.subf %15, %18 : vector<8x8xf32>
    %20 = math.exp %19 : vector<8x8xf32>
    %cst_11 = arith.constant dense<0.000000e+00> : vector<8xf32>
    %21 = vector.multi_reduction <add>, %20, %cst_11 [1] : vector<8x8xf32> to vector<8xf32>
    %22 = vector.shape_cast %21 : vector<8xf32> to vector<8x1xf32>
    %23 = tpu.reciprocal %22 {approx = true} : vector<8x1xf32> -> vector<8x1xf32>
    %24 = vector.broadcast %23 : vector<8x1xf32> to vector<8x8xf32>
    %25 = arith.mulf %20, %24 : vector<8x8xf32>
    %cst_12 = arith.constant dense<0.000000e+00> : vector<8x8xf32>
    %26 = tpu.matmul %25, %11, %cst_12 {dimension_numbers = #tpu.dot_dimension_numbers<[1], [0], [0], [1], [0, 0, 1, 1], [], []>} : vector<8x8xf32>, vector<8x8xf32>, vector<8x8xf32> -> vector<8x8xf32>
    %27 = vector.extract_strided_slice %8 {offsets = [0, 8], sizes = [8, 8], strides = [1, 1]} : vector<8x96xf32> to vector<8x8xf32>
    %28 = vector.extract_strided_slice %8 {offsets = [0, 40], sizes = [8, 8], strides = [1, 1]} : vector<8x96xf32> to vector<8x8xf32>
    %29 = vector.extract_strided_slice %8 {offsets = [0, 72], sizes = [8, 8], strides = [1, 1]} : vector<8x96xf32> to vector<8x8xf32>
    %30 = tpu.transpose %28, [1, 0] : vector<8x8xf32> -> vector<8x8xf32>
    %cst_13 = arith.constant dense<0.000000e+00> : vector<8x8xf32>
    %31 = tpu.matmul %27, %30, %cst_13 {dimension_numbers = #tpu.dot_dimension_numbers<[1], [0], [0], [1], [0, 0, 1, 1], [], []>} : vector<8x8xf32>, vector<8x8xf32>, vector<8x8xf32> -> vector<8x8xf32>
    %cst_14 = arith.constant 0.353553385 : f32
    %32 = vector.broadcast %cst_14 : f32 to vector<8x8xf32>
    %33 = arith.mulf %31, %32 : vector<8x8xf32>
    %cst_15 = arith.constant dense<0xFF800000> : vector<8xf32>
    %34 = vector.multi_reduction <maximumf>, %33, %cst_15 [1] : vector<8x8xf32> to vector<8xf32>
    %35 = vector.shape_cast %34 : vector<8xf32> to vector<8x1xf32>
    %36 = vector.broadcast %35 : vector<8x1xf32> to vector<8x8xf32>
    %37 = arith.subf %33, %36 : vector<8x8xf32>
    %38 = math.exp %37 : vector<8x8xf32>
    %cst_16 = arith.constant dense<0.000000e+00> : vector<8xf32>
    %39 = vector.multi_reduction <add>, %38, %cst_16 [1] : vector<8x8xf32> to vector<8xf32>
    %40 = vector.shape_cast %39 : vector<8xf32> to vector<8x1xf32>
    %41 = tpu.reciprocal %40 {approx = true} : vector<8x1xf32> -> vector<8x1xf32>
    %42 = vector.broadcast %41 : vector<8x1xf32> to vector<8x8xf32>
    %43 = arith.mulf %38, %42 : vector<8x8xf32>
    %cst_17 = arith.constant dense<0.000000e+00> : vector<8x8xf32>
    %44 = tpu.matmul %43, %29, %cst_17 {dimension_numbers = #tpu.dot_dimension_numbers<[1], [0], [0], [1], [0, 0, 1, 1], [], []>} : vector<8x8xf32>, vector<8x8xf32>, vector<8x8xf32> -> vector<8x8xf32>
    %45 = vector.extract_strided_slice %8 {offsets = [0, 16], sizes = [8, 8], strides = [1, 1]} : vector<8x96xf32> to vector<8x8xf32>
    %46 = vector.extract_strided_slice %8 {offsets = [0, 48], sizes = [8, 8], strides = [1, 1]} : vector<8x96xf32> to vector<8x8xf32>
    %47 = vector.extract_strided_slice %8 {offsets = [0, 80], sizes = [8, 8], strides = [1, 1]} : vector<8x96xf32> to vector<8x8xf32>
    %48 = tpu.transpose %46, [1, 0] : vector<8x8xf32> -> vector<8x8xf32>
    %cst_18 = arith.constant dense<0.000000e+00> : vector<8x8xf32>
    %49 = tpu.matmul %45, %48, %cst_18 {dimension_numbers = #tpu.dot_dimension_numbers<[1], [0], [0], [1], [0, 0, 1, 1], [], []>} : vector<8x8xf32>, vector<8x8xf32>, vector<8x8xf32> -> vector<8x8xf32>
    %cst_19 = arith.constant 0.353553385 : f32
    %50 = vector.broadcast %cst_19 : f32 to vector<8x8xf32>
    %51 = arith.mulf %49, %50 : vector<8x8xf32>
    %cst_20 = arith.constant dense<0xFF800000> : vector<8xf32>
    %52 = vector.multi_reduction <maximumf>, %51, %cst_20 [1] : vector<8x8xf32> to vector<8xf32>
    %53 = vector.shape_cast %52 : vector<8xf32> to vector<8x1xf32>
    %54 = vector.broadcast %53 : vector<8x1xf32> to vector<8x8xf32>
    %55 = arith.subf %51, %54 : vector<8x8xf32>
    %56 = math.exp %55 : vector<8x8xf32>
    %cst_21 = arith.constant dense<0.000000e+00> : vector<8xf32>
    %57 = vector.multi_reduction <add>, %56, %cst_21 [1] : vector<8x8xf32> to vector<8xf32>
    %58 = vector.shape_cast %57 : vector<8xf32> to vector<8x1xf32>
    %59 = tpu.reciprocal %58 {approx = true} : vector<8x1xf32> -> vector<8x1xf32>
    %60 = vector.broadcast %59 : vector<8x1xf32> to vector<8x8xf32>
    %61 = arith.mulf %56, %60 : vector<8x8xf32>
    %cst_22 = arith.constant dense<0.000000e+00> : vector<8x8xf32>
    %62 = tpu.matmul %61, %47, %cst_22 {dimension_numbers = #tpu.dot_dimension_numbers<[1], [0], [0], [1], [0, 0, 1, 1], [], []>} : vector<8x8xf32>, vector<8x8xf32>, vector<8x8xf32> -> vector<8x8xf32>
    %63 = vector.extract_strided_slice %8 {offsets = [0, 24], sizes = [8, 8], strides = [1, 1]} : vector<8x96xf32> to vector<8x8xf32>
    %64 = vector.extract_strided_slice %8 {offsets = [0, 56], sizes = [8, 8], strides = [1, 1]} : vector<8x96xf32> to vector<8x8xf32>
    %65 = vector.extract_strided_slice %8 {offsets = [0, 88], sizes = [8, 8], strides = [1, 1]} : vector<8x96xf32> to vector<8x8xf32>
    %66 = tpu.transpose %64, [1, 0] : vector<8x8xf32> -> vector<8x8xf32>
    %cst_23 = arith.constant dense<0.000000e+00> : vector<8x8xf32>
    %67 = tpu.matmul %63, %66, %cst_23 {dimension_numbers = #tpu.dot_dimension_numbers<[1], [0], [0], [1], [0, 0, 1, 1], [], []>} : vector<8x8xf32>, vector<8x8xf32>, vector<8x8xf32> -> vector<8x8xf32>
    %cst_24 = arith.constant 0.353553385 : f32
    %68 = vector.broadcast %cst_24 : f32 to vector<8x8xf32>
    %69 = arith.mulf %67, %68 : vector<8x8xf32>
    %cst_25 = arith.constant dense<0xFF800000> : vector<8xf32>
    %70 = vector.multi_reduction <maximumf>, %69, %cst_25 [1] : vector<8x8xf32> to vector<8xf32>
    %71 = vector.shape_cast %70 : vector<8xf32> to vector<8x1xf32>
    %72 = vector.broadcast %71 : vector<8x1xf32> to vector<8x8xf32>
    %73 = arith.subf %69, %72 : vector<8x8xf32>
    %74 = math.exp %73 : vector<8x8xf32>
    %cst_26 = arith.constant dense<0.000000e+00> : vector<8xf32>
    %75 = vector.multi_reduction <add>, %74, %cst_26 [1] : vector<8x8xf32> to vector<8xf32>
    %76 = vector.shape_cast %75 : vector<8xf32> to vector<8x1xf32>
    %77 = tpu.reciprocal %76 {approx = true} : vector<8x1xf32> -> vector<8x1xf32>
    %78 = vector.broadcast %77 : vector<8x1xf32> to vector<8x8xf32>
    %79 = arith.mulf %74, %78 : vector<8x8xf32>
    %cst_27 = arith.constant dense<0.000000e+00> : vector<8x8xf32>
    %80 = tpu.matmul %79, %65, %cst_27 {dimension_numbers = #tpu.dot_dimension_numbers<[1], [0], [0], [1], [0, 0, 1, 1], [], []>} : vector<8x8xf32>, vector<8x8xf32>, vector<8x8xf32> -> vector<8x8xf32>
    %81 = tpu.concatenate %26, %44, %62, %80 in 1 : vector<8x8xf32>, vector<8x8xf32>, vector<8x8xf32>, vector<8x8xf32> -> vector<8x32xf32>
    %c0_28 = arith.constant 0 : index
    %c0_29 = arith.constant 0 : index
    %c0_30 = arith.constant 0 : index
    %82 = vector.load %arg4[%c0_28, %c0_29, %c0_30] : memref<2x32x32xf32, #tpu.memory_space<vmem>>, vector<1x32x32xf32>
    %83 = vector.shape_cast %82 : vector<1x32x32xf32> to vector<32x32xf32>
    %cst_31 = arith.constant dense<0.000000e+00> : vector<8x32xf32>
    %84 = tpu.matmul %81, %83, %cst_31 {dimension_numbers = #tpu.dot_dimension_numbers<[1], [0], [0], [1], [0, 0, 1, 1], [], []>} : vector<8x32xf32>, vector<32x32xf32>, vector<8x32xf32> -> vector<8x32xf32>
    %c0_32 = arith.constant 0 : index
    %c0_33 = arith.constant 0 : index
    %c0_34 = arith.constant 0 : index
    %85 = vector.load %arg5[%c0_32, %c0_33, %c0_34] : memref<2x1x32xf32, #tpu.memory_space<vmem>>, vector<1x1x32xf32>
    %86 = vector.shape_cast %85 : vector<1x1x32xf32> to vector<1x32xf32>
    %87 = vector.broadcast %86 : vector<1x32xf32> to vector<8x32xf32>
    %88 = arith.addf %84, %87 : vector<8x32xf32>
    %89 = arith.addf %1, %88 : vector<8x32xf32>
    %c0_35 = arith.constant 0 : index
    %c0_36 = arith.constant 0 : index
    %c0_37 = arith.constant 0 : index
    %90 = vector.load %arg6[%c0_35, %c0_36, %c0_37] : memref<2x1x32xf32, #tpu.memory_space<vmem>>, vector<1x1x32xf32>
    %91 = vector.shape_cast %90 : vector<1x1x32xf32> to vector<1x32xf32>
    %c0_38 = arith.constant 0 : index
    %c0_39 = arith.constant 0 : index
    %c0_40 = arith.constant 0 : index
    %92 = vector.load %arg7[%c0_38, %c0_39, %c0_40] : memref<2x1x32xf32, #tpu.memory_space<vmem>>, vector<1x1x32xf32>
    %93 = vector.shape_cast %92 : vector<1x1x32xf32> to vector<1x32xf32>
    %cst_41 = arith.constant dense<0.000000e+00> : vector<8xf32>
    %94 = vector.multi_reduction <add>, %89, %cst_41 [1] : vector<8x32xf32> to vector<8xf32>
    %95 = vector.shape_cast %94 : vector<8xf32> to vector<8x1xf32>
    %cst_42 = arith.constant 3.200000e+01 : f32
    %96 = vector.broadcast %cst_42 : f32 to vector<8x1xf32>
    %97 = arith.divf %95, %96 : vector<8x1xf32>
    %98 = vector.broadcast %97 : vector<8x1xf32> to vector<8x32xf32>
    %99 = arith.subf %89, %98 : vector<8x32xf32>
    %100 = arith.mulf %99, %99 : vector<8x32xf32>
    %cst_43 = arith.constant dense<0.000000e+00> : vector<8xf32>
    %101 = vector.multi_reduction <add>, %100, %cst_43 [1] : vector<8x32xf32> to vector<8xf32>
    %102 = vector.shape_cast %101 : vector<8xf32> to vector<8x1xf32>
    %cst_44 = arith.constant 3.200000e+01 : f32
    %103 = vector.broadcast %cst_44 : f32 to vector<8x1xf32>
    %104 = arith.divf %102, %103 : vector<8x1xf32>
    %105 = vector.broadcast %97 : vector<8x1xf32> to vector<8x32xf32>
    %106 = arith.subf %89, %105 : vector<8x32xf32>
    %cst_45 = arith.constant 9.99999974E-6 : f32
    %107 = vector.broadcast %cst_45 : f32 to vector<8x1xf32>
    %108 = arith.addf %104, %107 : vector<8x1xf32>
    %109 = math.rsqrt %108 : vector<8x1xf32>
    %110 = vector.broadcast %109 : vector<8x1xf32> to vector<8x32xf32>
    %111 = arith.mulf %106, %110 : vector<8x32xf32>
    %112 = vector.broadcast %91 : vector<1x32xf32> to vector<8x32xf32>
    %113 = arith.mulf %111, %112 : vector<8x32xf32>
    %114 = vector.broadcast %93 : vector<1x32xf32> to vector<8x32xf32>
    %115 = arith.addf %113, %114 : vector<8x32xf32>
    %c0_46 = arith.constant 0 : index
    %c0_47 = arith.constant 0 : index
    %c0_48 = arith.constant 0 : index
    %116 = vector.load %arg8[%c0_46, %c0_47, %c0_48] : memref<2x32x128xf32, #tpu.memory_space<vmem>>, vector<1x32x128xf32>
    %117 = vector.shape_cast %116 : vector<1x32x128xf32> to vector<32x128xf32>
    %cst_49 = arith.constant dense<0.000000e+00> : vector<8x128xf32>
    %118 = tpu.matmul %115, %117, %cst_49 {dimension_numbers = #tpu.dot_dimension_numbers<[1], [0], [0], [1], [0, 0, 1, 1], [], []>} : vector<8x32xf32>, vector<32x128xf32>, vector<8x128xf32> -> vector<8x128xf32>
    %c0_50 = arith.constant 0 : index
    %c0_51 = arith.constant 0 : index
    %c0_52 = arith.constant 0 : index
    %119 = vector.load %arg9[%c0_50, %c0_51, %c0_52] : memref<2x1x128xf32, #tpu.memory_space<vmem>>, vector<1x1x128xf32>
    %120 = vector.shape_cast %119 : vector<1x1x128xf32> to vector<1x128xf32>
    %121 = vector.broadcast %120 : vector<1x128xf32> to vector<8x128xf32>
    %122 = arith.addf %118, %121 : vector<8x128xf32>
    %cst_53 = arith.constant 0.000000e+00 : f32
    %123 = vector.broadcast %cst_53 : f32 to vector<8x128xf32>
    %124 = arith.maximumf %122, %123 : vector<8x128xf32>
    %c0_54 = arith.constant 0 : index
    %c0_55 = arith.constant 0 : index
    %c0_56 = arith.constant 0 : index
    %125 = vector.load %arg10[%c0_54, %c0_55, %c0_56] : memref<2x128x32xf32, #tpu.memory_space<vmem>>, vector<1x128x32xf32>
    %126 = vector.shape_cast %125 : vector<1x128x32xf32> to vector<128x32xf32>
    %cst_57 = arith.constant dense<0.000000e+00> : vector<8x32xf32>
    %127 = tpu.matmul %124, %126, %cst_57 {dimension_numbers = #tpu.dot_dimension_numbers<[1], [0], [0], [1], [0, 0, 1, 1], [], []>} : vector<8x128xf32>, vector<128x32xf32>, vector<8x32xf32> -> vector<8x32xf32>
    %c0_58 = arith.constant 0 : index
    %c0_59 = arith.constant 0 : index
    %c0_60 = arith.constant 0 : index
    %128 = vector.load %arg11[%c0_58, %c0_59, %c0_60] : memref<2x1x32xf32, #tpu.memory_space<vmem>>, vector<1x1x32xf32>
    %129 = vector.shape_cast %128 : vector<1x1x32xf32> to vector<1x32xf32>
    %130 = vector.broadcast %129 : vector<1x32xf32> to vector<8x32xf32>
    %131 = arith.addf %127, %130 : vector<8x32xf32>
    %132 = arith.addf %115, %131 : vector<8x32xf32>
    %c0_61 = arith.constant 0 : index
    %c0_62 = arith.constant 0 : index
    %c0_63 = arith.constant 0 : index
    %133 = vector.load %arg12[%c0_61, %c0_62, %c0_63] : memref<2x1x32xf32, #tpu.memory_space<vmem>>, vector<1x1x32xf32>
    %134 = vector.shape_cast %133 : vector<1x1x32xf32> to vector<1x32xf32>
    %c0_64 = arith.constant 0 : index
    %c0_65 = arith.constant 0 : index
    %c0_66 = arith.constant 0 : index
    %135 = vector.load %arg13[%c0_64, %c0_65, %c0_66] : memref<2x1x32xf32, #tpu.memory_space<vmem>>, vector<1x1x32xf32>
    %136 = vector.shape_cast %135 : vector<1x1x32xf32> to vector<1x32xf32>
    %cst_67 = arith.constant dense<0.000000e+00> : vector<8xf32>
    %137 = vector.multi_reduction <add>, %132, %cst_67 [1] : vector<8x32xf32> to vector<8xf32>
    %138 = vector.shape_cast %137 : vector<8xf32> to vector<8x1xf32>
    %cst_68 = arith.constant 3.200000e+01 : f32
    %139 = vector.broadcast %cst_68 : f32 to vector<8x1xf32>
    %140 = arith.divf %138, %139 : vector<8x1xf32>
    %141 = vector.broadcast %140 : vector<8x1xf32> to vector<8x32xf32>
    %142 = arith.subf %132, %141 : vector<8x32xf32>
    %143 = arith.mulf %142, %142 : vector<8x32xf32>
    %cst_69 = arith.constant dense<0.000000e+00> : vector<8xf32>
    %144 = vector.multi_reduction <add>, %143, %cst_69 [1] : vector<8x32xf32> to vector<8xf32>
    %145 = vector.shape_cast %144 : vector<8xf32> to vector<8x1xf32>
    %cst_70 = arith.constant 3.200000e+01 : f32
    %146 = vector.broadcast %cst_70 : f32 to vector<8x1xf32>
    %147 = arith.divf %145, %146 : vector<8x1xf32>
    %148 = vector.broadcast %140 : vector<8x1xf32> to vector<8x32xf32>
    %149 = arith.subf %132, %148 : vector<8x32xf32>
    %cst_71 = arith.constant 9.99999974E-6 : f32
    %150 = vector.broadcast %cst_71 : f32 to vector<8x1xf32>
    %151 = arith.addf %147, %150 : vector<8x1xf32>
    %152 = math.rsqrt %151 : vector<8x1xf32>
    %153 = vector.broadcast %152 : vector<8x1xf32> to vector<8x32xf32>
    %154 = arith.mulf %149, %153 : vector<8x32xf32>
    %155 = vector.broadcast %134 : vector<1x32xf32> to vector<8x32xf32>
    %156 = arith.mulf %154, %155 : vector<8x32xf32>
    %157 = vector.broadcast %136 : vector<1x32xf32> to vector<8x32xf32>
    %158 = arith.addf %156, %157 : vector<8x32xf32>
    %c1 = arith.constant 1 : index
    %c0_72 = arith.constant 0 : index
    %c0_73 = arith.constant 0 : index
    %159 = vector.load %arg2[%c1, %c0_72, %c0_73] : memref<2x32x96xf32, #tpu.memory_space<vmem>>, vector<1x32x96xf32>
    %160 = vector.shape_cast %159 : vector<1x32x96xf32> to vector<32x96xf32>
    %cst_74 = arith.constant dense<0.000000e+00> : vector<8x96xf32>
    %161 = tpu.matmul %158, %160, %cst_74 {dimension_numbers = #tpu.dot_dimension_numbers<[1], [0], [0], [1], [0, 0, 1, 1], [], []>} : vector<8x32xf32>, vector<32x96xf32>, vector<8x96xf32> -> vector<8x96xf32>
    %c1_75 = arith.constant 1 : index
    %c0_76 = arith.constant 0 : index
    %c0_77 = arith.constant 0 : index
    %162 = vector.load %arg3[%c1_75, %c0_76, %c0_77] : memref<2x1x96xf32, #tpu.memory_space<vmem>>, vector<1x1x96xf32>
    %163 = vector.shape_cast %162 : vector<1x1x96xf32> to vector<1x96xf32>
    %164 = vector.broadcast %163 : vector<1x96xf32> to vector<8x96xf32>
    %165 = arith.addf %161, %164 : vector<8x96xf32>
    %166 = vector.extract_strided_slice %165 {offsets = [0, 0], sizes = [8, 8], strides = [1, 1]} : vector<8x96xf32> to vector<8x8xf32>
    %167 = vector.extract_strided_slice %165 {offsets = [0, 32], sizes = [8, 8], strides = [1, 1]} : vector<8x96xf32> to vector<8x8xf32>
    %168 = vector.extract_strided_slice %165 {offsets = [0, 64], sizes = [8, 8], strides = [1, 1]} : vector<8x96xf32> to vector<8x8xf32>
    %169 = tpu.transpose %167, [1, 0] : vector<8x8xf32> -> vector<8x8xf32>
    %cst_78 = arith.constant dense<0.000000e+00> : vector<8x8xf32>
    %170 = tpu.matmul %166, %169, %cst_78 {dimension_numbers = #tpu.dot_dimension_numbers<[1], [0], [0], [1], [0, 0, 1, 1], [], []>} : vector<8x8xf32>, vector<8x8xf32>, vector<8x8xf32> -> vector<8x8xf32>
    %cst_79 = arith.constant 0.353553385 : f32
    %171 = vector.broadcast %cst_79 : f32 to vector<8x8xf32>
    %172 = arith.mulf %170, %171 : vector<8x8xf32>
    %cst_80 = arith.constant dense<0xFF800000> : vector<8xf32>
    %173 = vector.multi_reduction <maximumf>, %172, %cst_80 [1] : vector<8x8xf32> to vector<8xf32>
    %174 = vector.shape_cast %173 : vector<8xf32> to vector<8x1xf32>
    %175 = vector.broadcast %174 : vector<8x1xf32> to vector<8x8xf32>
    %176 = arith.subf %172, %175 : vector<8x8xf32>
    %177 = math.exp %176 : vector<8x8xf32>
    %cst_81 = arith.constant dense<0.000000e+00> : vector<8xf32>
    %178 = vector.multi_reduction <add>, %177, %cst_81 [1] : vector<8x8xf32> to vector<8xf32>
    %179 = vector.shape_cast %178 : vector<8xf32> to vector<8x1xf32>
    %180 = tpu.reciprocal %179 {approx = true} : vector<8x1xf32> -> vector<8x1xf32>
    %181 = vector.broadcast %180 : vector<8x1xf32> to vector<8x8xf32>
    %182 = arith.mulf %177, %181 : vector<8x8xf32>
    %cst_82 = arith.constant dense<0.000000e+00> : vector<8x8xf32>
    %183 = tpu.matmul %182, %168, %cst_82 {dimension_numbers = #tpu.dot_dimension_numbers<[1], [0], [0], [1], [0, 0, 1, 1], [], []>} : vector<8x8xf32>, vector<8x8xf32>, vector<8x8xf32> -> vector<8x8xf32>
    %184 = vector.extract_strided_slice %165 {offsets = [0, 8], sizes = [8, 8], strides = [1, 1]} : vector<8x96xf32> to vector<8x8xf32>
    %185 = vector.extract_strided_slice %165 {offsets = [0, 40], sizes = [8, 8], strides = [1, 1]} : vector<8x96xf32> to vector<8x8xf32>
    %186 = vector.extract_strided_slice %165 {offsets = [0, 72], sizes = [8, 8], strides = [1, 1]} : vector<8x96xf32> to vector<8x8xf32>
    %187 = tpu.transpose %185, [1, 0] : vector<8x8xf32> -> vector<8x8xf32>
    %cst_83 = arith.constant dense<0.000000e+00> : vector<8x8xf32>
    %188 = tpu.matmul %184, %187, %cst_83 {dimension_numbers = #tpu.dot_dimension_numbers<[1], [0], [0], [1], [0, 0, 1, 1], [], []>} : vector<8x8xf32>, vector<8x8xf32>, vector<8x8xf32> -> vector<8x8xf32>
    %cst_84 = arith.constant 0.353553385 : f32
    %189 = vector.broadcast %cst_84 : f32 to vector<8x8xf32>
    %190 = arith.mulf %188, %189 : vector<8x8xf32>
    %cst_85 = arith.constant dense<0xFF800000> : vector<8xf32>
    %191 = vector.multi_reduction <maximumf>, %190, %cst_85 [1] : vector<8x8xf32> to vector<8xf32>
    %192 = vector.shape_cast %191 : vector<8xf32> to vector<8x1xf32>
    %193 = vector.broadcast %192 : vector<8x1xf32> to vector<8x8xf32>
    %194 = arith.subf %190, %193 : vector<8x8xf32>
    %195 = math.exp %194 : vector<8x8xf32>
    %cst_86 = arith.constant dense<0.000000e+00> : vector<8xf32>
    %196 = vector.multi_reduction <add>, %195, %cst_86 [1] : vector<8x8xf32> to vector<8xf32>
    %197 = vector.shape_cast %196 : vector<8xf32> to vector<8x1xf32>
    %198 = tpu.reciprocal %197 {approx = true} : vector<8x1xf32> -> vector<8x1xf32>
    %199 = vector.broadcast %198 : vector<8x1xf32> to vector<8x8xf32>
    %200 = arith.mulf %195, %199 : vector<8x8xf32>
    %cst_87 = arith.constant dense<0.000000e+00> : vector<8x8xf32>
    %201 = tpu.matmul %200, %186, %cst_87 {dimension_numbers = #tpu.dot_dimension_numbers<[1], [0], [0], [1], [0, 0, 1, 1], [], []>} : vector<8x8xf32>, vector<8x8xf32>, vector<8x8xf32> -> vector<8x8xf32>
    %202 = vector.extract_strided_slice %165 {offsets = [0, 16], sizes = [8, 8], strides = [1, 1]} : vector<8x96xf32> to vector<8x8xf32>
    %203 = vector.extract_strided_slice %165 {offsets = [0, 48], sizes = [8, 8], strides = [1, 1]} : vector<8x96xf32> to vector<8x8xf32>
    %204 = vector.extract_strided_slice %165 {offsets = [0, 80], sizes = [8, 8], strides = [1, 1]} : vector<8x96xf32> to vector<8x8xf32>
    %205 = tpu.transpose %203, [1, 0] : vector<8x8xf32> -> vector<8x8xf32>
    %cst_88 = arith.constant dense<0.000000e+00> : vector<8x8xf32>
    %206 = tpu.matmul %202, %205, %cst_88 {dimension_numbers = #tpu.dot_dimension_numbers<[1], [0], [0], [1], [0, 0, 1, 1], [], []>} : vector<8x8xf32>, vector<8x8xf32>, vector<8x8xf32> -> vector<8x8xf32>
    %cst_89 = arith.constant 0.353553385 : f32
    %207 = vector.broadcast %cst_89 : f32 to vector<8x8xf32>
    %208 = arith.mulf %206, %207 : vector<8x8xf32>
    %cst_90 = arith.constant dense<0xFF800000> : vector<8xf32>
    %209 = vector.multi_reduction <maximumf>, %208, %cst_90 [1] : vector<8x8xf32> to vector<8xf32>
    %210 = vector.shape_cast %209 : vector<8xf32> to vector<8x1xf32>
    %211 = vector.broadcast %210 : vector<8x1xf32> to vector<8x8xf32>
    %212 = arith.subf %208, %211 : vector<8x8xf32>
    %213 = math.exp %212 : vector<8x8xf32>
    %cst_91 = arith.constant dense<0.000000e+00> : vector<8xf32>
    %214 = vector.multi_reduction <add>, %213, %cst_91 [1] : vector<8x8xf32> to vector<8xf32>
    %215 = vector.shape_cast %214 : vector<8xf32> to vector<8x1xf32>
    %216 = tpu.reciprocal %215 {approx = true} : vector<8x1xf32> -> vector<8x1xf32>
    %217 = vector.broadcast %216 : vector<8x1xf32> to vector<8x8xf32>
    %218 = arith.mulf %213, %217 : vector<8x8xf32>
    %cst_92 = arith.constant dense<0.000000e+00> : vector<8x8xf32>
    %219 = tpu.matmul %218, %204, %cst_92 {dimension_numbers = #tpu.dot_dimension_numbers<[1], [0], [0], [1], [0, 0, 1, 1], [], []>} : vector<8x8xf32>, vector<8x8xf32>, vector<8x8xf32> -> vector<8x8xf32>
    %220 = vector.extract_strided_slice %165 {offsets = [0, 24], sizes = [8, 8], strides = [1, 1]} : vector<8x96xf32> to vector<8x8xf32>
    %221 = vector.extract_strided_slice %165 {offsets = [0, 56], sizes = [8, 8], strides = [1, 1]} : vector<8x96xf32> to vector<8x8xf32>
    %222 = vector.extract_strided_slice %165 {offsets = [0, 88], sizes = [8, 8], strides = [1, 1]} : vector<8x96xf32> to vector<8x8xf32>
    %223 = tpu.transpose %221, [1, 0] : vector<8x8xf32> -> vector<8x8xf32>
    %cst_93 = arith.constant dense<0.000000e+00> : vector<8x8xf32>
    %224 = tpu.matmul %220, %223, %cst_93 {dimension_numbers = #tpu.dot_dimension_numbers<[1], [0], [0], [1], [0, 0, 1, 1], [], []>} : vector<8x8xf32>, vector<8x8xf32>, vector<8x8xf32> -> vector<8x8xf32>
    %cst_94 = arith.constant 0.353553385 : f32
    %225 = vector.broadcast %cst_94 : f32 to vector<8x8xf32>
    %226 = arith.mulf %224, %225 : vector<8x8xf32>
    %cst_95 = arith.constant dense<0xFF800000> : vector<8xf32>
    %227 = vector.multi_reduction <maximumf>, %226, %cst_95 [1] : vector<8x8xf32> to vector<8xf32>
    %228 = vector.shape_cast %227 : vector<8xf32> to vector<8x1xf32>
    %229 = vector.broadcast %228 : vector<8x1xf32> to vector<8x8xf32>
    %230 = arith.subf %226, %229 : vector<8x8xf32>
    %231 = math.exp %230 : vector<8x8xf32>
    %cst_96 = arith.constant dense<0.000000e+00> : vector<8xf32>
    %232 = vector.multi_reduction <add>, %231, %cst_96 [1] : vector<8x8xf32> to vector<8xf32>
    %233 = vector.shape_cast %232 : vector<8xf32> to vector<8x1xf32>
    %234 = tpu.reciprocal %233 {approx = true} : vector<8x1xf32> -> vector<8x1xf32>
    %235 = vector.broadcast %234 : vector<8x1xf32> to vector<8x8xf32>
    %236 = arith.mulf %231, %235 : vector<8x8xf32>
    %cst_97 = arith.constant dense<0.000000e+00> : vector<8x8xf32>
    %237 = tpu.matmul %236, %222, %cst_97 {dimension_numbers = #tpu.dot_dimension_numbers<[1], [0], [0], [1], [0, 0, 1, 1], [], []>} : vector<8x8xf32>, vector<8x8xf32>, vector<8x8xf32> -> vector<8x8xf32>
    %238 = tpu.concatenate %183, %201, %219, %237 in 1 : vector<8x8xf32>, vector<8x8xf32>, vector<8x8xf32>, vector<8x8xf32> -> vector<8x32xf32>
    %c1_98 = arith.constant 1 : index
    %c0_99 = arith.constant 0 : index
    %c0_100 = arith.constant 0 : index
    %239 = vector.load %arg4[%c1_98, %c0_99, %c0_100] : memref<2x32x32xf32, #tpu.memory_space<vmem>>, vector<1x32x32xf32>
    %240 = vector.shape_cast %239 : vector<1x32x32xf32> to vector<32x32xf32>
    %cst_101 = arith.constant dense<0.000000e+00> : vector<8x32xf32>
    %241 = tpu.matmul %238, %240, %cst_101 {dimension_numbers = #tpu.dot_dimension_numbers<[1], [0], [0], [1], [0, 0, 1, 1], [], []>} : vector<8x32xf32>, vector<32x32xf32>, vector<8x32xf32> -> vector<8x32xf32>
    %c1_102 = arith.constant 1 : index
    %c0_103 = arith.constant 0 : index
    %c0_104 = arith.constant 0 : index
    %242 = vector.load %arg5[%c1_102, %c0_103, %c0_104] : memref<2x1x32xf32, #tpu.memory_space<vmem>>, vector<1x1x32xf32>
    %243 = vector.shape_cast %242 : vector<1x1x32xf32> to vector<1x32xf32>
    %244 = vector.broadcast %243 : vector<1x32xf32> to vector<8x32xf32>
    %245 = arith.addf %241, %244 : vector<8x32xf32>
    %246 = arith.addf %158, %245 : vector<8x32xf32>
    %c1_105 = arith.constant 1 : index
    %c0_106 = arith.constant 0 : index
    %c0_107 = arith.constant 0 : index
    %247 = vector.load %arg6[%c1_105, %c0_106, %c0_107] : memref<2x1x32xf32, #tpu.memory_space<vmem>>, vector<1x1x32xf32>
    %248 = vector.shape_cast %247 : vector<1x1x32xf32> to vector<1x32xf32>
    %c1_108 = arith.constant 1 : index
    %c0_109 = arith.constant 0 : index
    %c0_110 = arith.constant 0 : index
    %249 = vector.load %arg7[%c1_108, %c0_109, %c0_110] : memref<2x1x32xf32, #tpu.memory_space<vmem>>, vector<1x1x32xf32>
    %250 = vector.shape_cast %249 : vector<1x1x32xf32> to vector<1x32xf32>
    %cst_111 = arith.constant dense<0.000000e+00> : vector<8xf32>
    %251 = vector.multi_reduction <add>, %246, %cst_111 [1] : vector<8x32xf32> to vector<8xf32>
    %252 = vector.shape_cast %251 : vector<8xf32> to vector<8x1xf32>
    %cst_112 = arith.constant 3.200000e+01 : f32
    %253 = vector.broadcast %cst_112 : f32 to vector<8x1xf32>
    %254 = arith.divf %252, %253 : vector<8x1xf32>
    %255 = vector.broadcast %254 : vector<8x1xf32> to vector<8x32xf32>
    %256 = arith.subf %246, %255 : vector<8x32xf32>
    %257 = arith.mulf %256, %256 : vector<8x32xf32>
    %cst_113 = arith.constant dense<0.000000e+00> : vector<8xf32>
    %258 = vector.multi_reduction <add>, %257, %cst_113 [1] : vector<8x32xf32> to vector<8xf32>
    %259 = vector.shape_cast %258 : vector<8xf32> to vector<8x1xf32>
    %cst_114 = arith.constant 3.200000e+01 : f32
    %260 = vector.broadcast %cst_114 : f32 to vector<8x1xf32>
    %261 = arith.divf %259, %260 : vector<8x1xf32>
    %262 = vector.broadcast %254 : vector<8x1xf32> to vector<8x32xf32>
    %263 = arith.subf %246, %262 : vector<8x32xf32>
    %cst_115 = arith.constant 9.99999974E-6 : f32
    %264 = vector.broadcast %cst_115 : f32 to vector<8x1xf32>
    %265 = arith.addf %261, %264 : vector<8x1xf32>
    %266 = math.rsqrt %265 : vector<8x1xf32>
    %267 = vector.broadcast %266 : vector<8x1xf32> to vector<8x32xf32>
    %268 = arith.mulf %263, %267 : vector<8x32xf32>
    %269 = vector.broadcast %248 : vector<1x32xf32> to vector<8x32xf32>
    %270 = arith.mulf %268, %269 : vector<8x32xf32>
    %271 = vector.broadcast %250 : vector<1x32xf32> to vector<8x32xf32>
    %272 = arith.addf %270, %271 : vector<8x32xf32>
    %c1_116 = arith.constant 1 : index
    %c0_117 = arith.constant 0 : index
    %c0_118 = arith.constant 0 : index
    %273 = vector.load %arg8[%c1_116, %c0_117, %c0_118] : memref<2x32x128xf32, #tpu.memory_space<vmem>>, vector<1x32x128xf32>
    %274 = vector.shape_cast %273 : vector<1x32x128xf32> to vector<32x128xf32>
    %cst_119 = arith.constant dense<0.000000e+00> : vector<8x128xf32>
    %275 = tpu.matmul %272, %274, %cst_119 {dimension_numbers = #tpu.dot_dimension_numbers<[1], [0], [0], [1], [0, 0, 1, 1], [], []>} : vector<8x32xf32>, vector<32x128xf32>, vector<8x128xf32> -> vector<8x128xf32>
    %c1_120 = arith.constant 1 : index
    %c0_121 = arith.constant 0 : index
    %c0_122 = arith.constant 0 : index
    %276 = vector.load %arg9[%c1_120, %c0_121, %c0_122] : memref<2x1x128xf32, #tpu.memory_space<vmem>>, vector<1x1x128xf32>
    %277 = vector.shape_cast %276 : vector<1x1x128xf32> to vector<1x128xf32>
    %278 = vector.broadcast %277 : vector<1x128xf32> to vector<8x128xf32>
    %279 = arith.addf %275, %278 : vector<8x128xf32>
    %cst_123 = arith.constant 0.000000e+00 : f32
    %280 = vector.broadcast %cst_123 : f32 to vector<8x128xf32>
    %281 = arith.maximumf %279, %280 : vector<8x128xf32>
    %c1_124 = arith.constant 1 : index
    %c0_125 = arith.constant 0 : index
    %c0_126 = arith.constant 0 : index
    %282 = vector.load %arg10[%c1_124, %c0_125, %c0_126] : memref<2x128x32xf32, #tpu.memory_space<vmem>>, vector<1x128x32xf32>
    %283 = vector.shape_cast %282 : vector<1x128x32xf32> to vector<128x32xf32>
    %cst_127 = arith.constant dense<0.000000e+00> : vector<8x32xf32>
    %284 = tpu.matmul %281, %283, %cst_127 {dimension_numbers = #tpu.dot_dimension_numbers<[1], [0], [0], [1], [0, 0, 1, 1], [], []>} : vector<8x128xf32>, vector<128x32xf32>, vector<8x32xf32> -> vector<8x32xf32>
    %c1_128 = arith.constant 1 : index
    %c0_129 = arith.constant 0 : index
    %c0_130 = arith.constant 0 : index
    %285 = vector.load %arg11[%c1_128, %c0_129, %c0_130] : memref<2x1x32xf32, #tpu.memory_space<vmem>>, vector<1x1x32xf32>
    %286 = vector.shape_cast %285 : vector<1x1x32xf32> to vector<1x32xf32>
    %287 = vector.broadcast %286 : vector<1x32xf32> to vector<8x32xf32>
    %288 = arith.addf %284, %287 : vector<8x32xf32>
    %289 = arith.addf %272, %288 : vector<8x32xf32>
    %c1_131 = arith.constant 1 : index
    %c0_132 = arith.constant 0 : index
    %c0_133 = arith.constant 0 : index
    %290 = vector.load %arg12[%c1_131, %c0_132, %c0_133] : memref<2x1x32xf32, #tpu.memory_space<vmem>>, vector<1x1x32xf32>
    %291 = vector.shape_cast %290 : vector<1x1x32xf32> to vector<1x32xf32>
    %c1_134 = arith.constant 1 : index
    %c0_135 = arith.constant 0 : index
    %c0_136 = arith.constant 0 : index
    %292 = vector.load %arg13[%c1_134, %c0_135, %c0_136] : memref<2x1x32xf32, #tpu.memory_space<vmem>>, vector<1x1x32xf32>
    %293 = vector.shape_cast %292 : vector<1x1x32xf32> to vector<1x32xf32>
    %cst_137 = arith.constant dense<0.000000e+00> : vector<8xf32>
    %294 = vector.multi_reduction <add>, %289, %cst_137 [1] : vector<8x32xf32> to vector<8xf32>
    %295 = vector.shape_cast %294 : vector<8xf32> to vector<8x1xf32>
    %cst_138 = arith.constant 3.200000e+01 : f32
    %296 = vector.broadcast %cst_138 : f32 to vector<8x1xf32>
    %297 = arith.divf %295, %296 : vector<8x1xf32>
    %298 = vector.broadcast %297 : vector<8x1xf32> to vector<8x32xf32>
    %299 = arith.subf %289, %298 : vector<8x32xf32>
    %300 = arith.mulf %299, %299 : vector<8x32xf32>
    %cst_139 = arith.constant dense<0.000000e+00> : vector<8xf32>
    %301 = vector.multi_reduction <add>, %300, %cst_139 [1] : vector<8x32xf32> to vector<8xf32>
    %302 = vector.shape_cast %301 : vector<8xf32> to vector<8x1xf32>
    %cst_140 = arith.constant 3.200000e+01 : f32
    %303 = vector.broadcast %cst_140 : f32 to vector<8x1xf32>
    %304 = arith.divf %302, %303 : vector<8x1xf32>
    %305 = vector.broadcast %297 : vector<8x1xf32> to vector<8x32xf32>
    %306 = arith.subf %289, %305 : vector<8x32xf32>
    %cst_141 = arith.constant 9.99999974E-6 : f32
    %307 = vector.broadcast %cst_141 : f32 to vector<8x1xf32>
    %308 = arith.addf %304, %307 : vector<8x1xf32>
    %309 = math.rsqrt %308 : vector<8x1xf32>
    %310 = vector.broadcast %309 : vector<8x1xf32> to vector<8x32xf32>
    %311 = arith.mulf %306, %310 : vector<8x32xf32>
    %312 = vector.broadcast %291 : vector<1x32xf32> to vector<8x32xf32>
    %313 = arith.mulf %311, %312 : vector<8x32xf32>
    %314 = vector.broadcast %293 : vector<1x32xf32> to vector<8x32xf32>
    %315 = arith.addf %313, %314 : vector<8x32xf32>
    %316 = vector.extract_strided_slice %315 {offsets = [7, 0], sizes = [1, 32], strides = [1, 1]} : vector<8x32xf32> to vector<1x32xf32>
    %c0_142 = arith.constant 0 : index
    %c0_143 = arith.constant 0 : index
    %317 = vector.load %arg14[%c0_142, %c0_143] : memref<32x1xf32, #tpu.memory_space<vmem>>, vector<32x1xf32>
    %cst_144 = arith.constant dense<0.000000e+00> : vector<1x1xf32>
    %318 = tpu.matmul %316, %317, %cst_144 {dimension_numbers = #tpu.dot_dimension_numbers<[1], [0], [0], [1], [0, 0, 1, 1], [], []>} : vector<1x32xf32>, vector<32x1xf32>, vector<1x1xf32> -> vector<1x1xf32>
    %c0_145 = arith.constant 0 : index
    %c0_146 = arith.constant 0 : index
    %319 = vector.load %arg15[%c0_145, %c0_146] : memref<1x1xf32, #tpu.memory_space<vmem>>, vector<1x1xf32>
    %320 = arith.addf %318, %319 : vector<1x1xf32>
    %c0_147 = arith.constant 0 : index
    %c0_148 = arith.constant 0 : index
    %c0_149 = arith.constant 0 : index
    %321 = vector.load %arg16[%c0_147, %c0_148, %c0_149] : memref<1x1x1xf32, #tpu.memory_space<vmem>>, vector<1x1x1xf32>
    %322 = vector.shape_cast %321 : vector<1x1x1xf32> to vector<1x1xf32>
    %323 = vector.shape_cast %320 : vector<1x1xf32> to vector<1x1x1xf32>
    tpu.vector_store %arg16[%c0_147, %c0_148, %c0_149], %323 {strides = array<i32>} : memref<1x1x1xf32, #tpu.memory_space<vmem>>, vector<1x1x1xf32>,
    return
  }
  func.func @transform_0(%arg0: i32) -> (i32, i32, i32) {
    %c0_i32 = arith.constant 0 : i32
    %c0_i32_0 = arith.constant 0 : i32
    %c0_i32_1 = arith.constant 0 : i32
    return %arg0, %c0_i32, %c0_i32_0 : i32, i32, i32
  }
  func.func @transform_1(%arg0: i32) -> (i32, i32, i32) {
    %c0_i32 = arith.constant 0 : i32
    %c0_i32_0 = arith.constant 0 : i32
    %c0_i32_1 = arith.constant 0 : i32
    %c0_i32_2 = arith.constant 0 : i32
    return %c0_i32, %c0_i32_0, %c0_i32_1 : i32, i32, i32
  }
  func.func @transform_2(%arg0: i32) -> (i32, i32, i32) {
    %c0_i32 = arith.constant 0 : i32
    %c0_i32_0 = arith.constant 0 : i32
    %c0_i32_1 = arith.constant 0 : i32
    %c0_i32_2 = arith.constant 0 : i32
    return %c0_i32, %c0_i32_0, %c0_i32_1 : i32, i32, i32
  }
  func.func @transform_3(%arg0: i32) -> (i32, i32, i32) {
    %c0_i32 = arith.constant 0 : i32
    %c0_i32_0 = arith.constant 0 : i32
    %c0_i32_1 = arith.constant 0 : i32
    %c0_i32_2 = arith.constant 0 : i32
    return %c0_i32, %c0_i32_0, %c0_i32_1 : i32, i32, i32
  }
  func.func @transform_4(%arg0: i32) -> (i32, i32, i32) {
    %c0_i32 = arith.constant 0 : i32
    %c0_i32_0 = arith.constant 0 : i32
    %c0_i32_1 = arith.constant 0 : i32
    %c0_i32_2 = arith.constant 0 : i32
    return %c0_i32, %c0_i32_0, %c0_i32_1 : i32, i32, i32
  }
  func.func @transform_5(%arg0: i32) -> (i32, i32, i32) {
    %c0_i32 = arith.constant 0 : i32
    %c0_i32_0 = arith.constant 0 : i32
    %c0_i32_1 = arith.constant 0 : i32
    %c0_i32_2 = arith.constant 0 : i32
    return %c0_i32, %c0_i32_0, %c0_i32_1 : i32, i32, i32
  }
  func.func @transform_6(%arg0: i32) -> (i32, i32, i32) {
    %c0_i32 = arith.constant 0 : i32
    %c0_i32_0 = arith.constant 0 : i32
    %c0_i32_1 = arith.constant 0 : i32
    %c0_i32_2 = arith.constant 0 : i32
    return %c0_i32, %c0_i32_0, %c0_i32_1 : i32, i32, i32
  }
  func.func @transform_7(%arg0: i32) -> (i32, i32, i32) {
    %c0_i32 = arith.constant 0 : i32
    %c0_i32_0 = arith.constant 0 : i32
    %c0_i32_1 = arith.constant 0 : i32
    %c0_i32_2 = arith.constant 0 : i32
    return %c0_i32, %c0_i32_0, %c0_i32_1 : i32, i32, i32
  }
  func.func @transform_8(%arg0: i32) -> (i32, i32, i32) {
    %c0_i32 = arith.constant 0 : i32
    %c0_i32_0 = arith.constant 0 : i32
    %c0_i32_1 = arith.constant 0 : i32
    %c0_i32_2 = arith.constant 0 : i32
    return %c0_i32, %c0_i32_0, %c0_i32_1 : i32, i32, i32
  }
  func.func @transform_9(%arg0: i32) -> (i32, i32, i32) {
    %c0_i32 = arith.constant 0 : i32
    %c0_i32_0 = arith.constant 0 : i32
    %c0_i32_1 = arith.constant 0 : i32
    %c0_i32_2 = arith.constant 0 : i32
    return %c0_i32, %c0_i32_0, %c0_i32_1 : i32, i32, i32
  }
  func.func @transform_10(%arg0: i32) -> (i32, i32, i32) {
    %c0_i32 = arith.constant 0 : i32
    %c0_i32_0 = arith.constant 0 : i32
    %c0_i32_1 = arith.constant 0 : i32
    %c0_i32_2 = arith.constant 0 : i32
    return %c0_i32, %c0_i32_0, %c0_i32_1 : i32, i32, i32
  }
  func.func @transform_11(%arg0: i32) -> (i32, i32, i32) {
    %c0_i32 = arith.constant 0 : i32
    %c0_i32_0 = arith.constant 0 : i32
    %c0_i32_1 = arith.constant 0 : i32
    %c0_i32_2 = arith.constant 0 : i32
    return %c0_i32, %c0_i32_0, %c0_i32_1 : i32, i32, i32
  }
  func.func @transform_12(%arg0: i32) -> (i32, i32, i32) {
    %c0_i32 = arith.constant 0 : i32
    %c0_i32_0 = arith.constant 0 : i32
    %c0_i32_1 = arith.constant 0 : i32
    %c0_i32_2 = arith.constant 0 : i32
    return %c0_i32, %c0_i32_0, %c0_i32_1 : i32, i32, i32
  }
  func.func @transform_13(%arg0: i32) -> (i32, i32) {
    %c0_i32 = arith.constant 0 : i32
    %c0_i32_0 = arith.constant 0 : i32
    %c0_i32_1 = arith.constant 0 : i32
    return %c0_i32, %c0_i32_0 : i32, i32
  }
  func.func @transform_14(%arg0: i32) -> (i32, i32) {
    %c0_i32 = arith.constant 0 : i32
    %c0_i32_0 = arith.constant 0 : i32
    %c0_i32_1 = arith.constant 0 : i32
    return %c0_i32, %c0_i32_0 : i32, i32
  }
  func.func @transform_15(%arg0: i32) -> (i32, i32, i32) {
    %c0_i32 = arith.constant 0 : i32
    %c0_i32_0 = arith.constant 0 : i32
    %c0_i32_1 = arith.constant 0 : i32
    return %arg0, %c0_i32, %c0_i32_0 : i32, i32, i32
  }
}

</mosaic_0001>

<llo_original>
// kernel: transformer_baseline_forward.1
$region0: #{transformer_baseline_forward.1}
  #allocation0 [shape = 'u32[]', space=smem, size = 0x4, offset = 0x4, fixed_abs, tag = 'smem constant byte address 0x4 - core index']
  #allocation1 [shape = 'u32[144,128]{1,0:T(1,128)}', space=vmem, size = 0x12000, scoped, tag = 'internal scratch']
  #allocation2 [shape = 'f32[1,1]{1,0:T(1,128)S(1)}', space=vmem, size = 0x200, scoped, tag = 'scoped memory for transformer_baseline_forward.1']
  %s0 = inlined_call_operand.vmem [shape: f32[2,8,32], index: 0, kind: input, shape index: {}]
  %s1 = inlined_call_operand.vmem [shape: f32[2,32,96], index: 1, kind: input, shape index: {}]
  %s2 = inlined_call_operand.vmem [shape: f32[2,1,96], index: 2, kind: input, shape index: {}]
  %s3 = inlined_call_operand.vmem [shape: f32[2,32,32], index: 3, kind: input, shape index: {}]
  %s4 = inlined_call_operand.vmem [shape: f32[2,1,32], index: 4, kind: input, shape index: {}]
  %s5 = inlined_call_operand.vmem [shape: f32[2,1,32], index: 5, kind: input, shape index: {}]
  %s6 = inlined_call_operand.vmem [shape: f32[2,1,32], index: 6, kind: input, shape index: {}]
  %s7 = inlined_call_operand.vmem [shape: f32[2,32,128], index: 7, kind: input, shape index: {}]
  %s8 = inlined_call_operand.vmem [shape: f32[2,1,128], index: 8, kind: input, shape index: {}]
  %s9 = inlined_call_operand.vmem [shape: f32[2,128,32], index: 9, kind: input, shape index: {}]
  %s10 = inlined_call_operand.vmem [shape: f32[2,1,32], index: 10, kind: input, shape index: {}]
  %s11 = inlined_call_operand.vmem [shape: f32[2,1,32], index: 11, kind: input, shape index: {}]
  %s12 = inlined_call_operand.vmem [shape: f32[2,1,32], index: 12, kind: input, shape index: {}]
  %s13 = inlined_call_operand.vmem [shape: f32[32,1], index: 13, kind: input, shape index: {}]
  %s14 = inlined_call_operand.<no memory space> [shape: f32[1,1], index: 14, kind: input, shape index: {}]
  %s15 = inlined_call_operand.vmem [shape: f32[2,1,1], index: 15, kind: output, shape index: {}]
  %s16 = sld [smem:[#allocation0]]
  $region93: #{transformer_baseline_forward.1} parent=0
    _
  %s18 = ssub.s32 1, %s16
  %s19 = scalar_select 0, %s18, %s16
  %v20 = vstv %s14
  %21 = vst [vmem:[#allocation2] sm:$0x1] %v20
  loop: start=0, step=1, limit=4
  $region2: #{transformer_baseline_forward.1} parent=0 // loop_pre_header
    _
  $region3: #{transformer_baseline_forward.1} parent=0 // loop_header
    %s23 = sphi 0, %s27
    %p24 = scmp.ge.s32.totalorder %s23, 4
    %s33 = sphi 0, %s35
    %s36 = sphi 0, %s33
    %s37 = sphi 0, %s36
    %s53 = sphi 0, %s37
    %s57 = sphi 0, %s57
    %s59 = sphi 0, %s57
    %s60 = sphi 0, %s59
    %s74 = sphi 0, %s60
    %s78 = sphi 0, %s78
    %s80 = sphi 0, %s78
    %s81 = sphi 0, %s80
    %s95 = sphi 0, %s81
    %s99 = sphi 0, %s99
    %s101 = sphi 0, %s99
    %s102 = sphi 0, %s101
    %s116 = sphi 0, %s102
    %s120 = sphi 0, %s120
    %s122 = sphi 0, %s120
    %s123 = sphi 0, %s122
    %s137 = sphi 0, %s123
    %s141 = sphi 0, %s141
    %s143 = sphi 0, %s141
    %s144 = sphi 0, %s143
    %s158 = sphi 0, %s144
    %s162 = sphi 0, %s162
    %s164 = sphi 0, %s162
    %s165 = sphi 0, %s164
    %s179 = sphi 0, %s165
    %s183 = sphi 0, %s183
    %s185 = sphi 0, %s183
    %s186 = sphi 0, %s185
    %s200 = sphi 0, %s186
    %s204 = sphi 0, %s204
    %s206 = sphi 0, %s204
    %s207 = sphi 0, %s206
    %s221 = sphi 0, %s207
    %s225 = sphi 0, %s225
    %s227 = sphi 0, %s225
    %s228 = sphi 0, %s227
    %s242 = sphi 0, %s228
    %s246 = sphi 0, %s246
    %s248 = sphi 0, %s246
    %s249 = sphi 0, %s248
    %s263 = sphi 0, %s249
    %s267 = sphi 0, %s267
    %s269 = sphi 0, %s267
    %s270 = sphi 0, %s269
    %s284 = sphi 0, %s270
    %s288 = sphi 0, %s288
    %s290 = sphi 0, %s288
    %s291 = sphi 0, %s290
    %s305 = sphi 0, %s291
    %s309 = sphi 0, %s309
    %s311 = sphi 0, %s309
    %s312 = sphi 0, %s311
    %s326 = sphi 0, %s312
    %s330 = sphi 0, %s330
    %s332 = sphi 0, %s330
    %s333 = sphi 0, %s332
    %s347 = sphi 0, %s333
    %s353 = sphi 0, %s355
    %s356 = sphi 0, %s353
    %s357 = sphi 0, %s356
    %s373 = sphi 0, %s357
  $region4: #{transformer_baseline_forward.1} parent=0 // loop_header_branch
    %26 = sbr.rel (%p24) target = $region8
  $region5: #{transformer_baseline_forward.1} parent=0 // loop_body
    %s28 = ssub.s32 %s23, 1
    %s29 = ssub.s32 %s23, 2
    %s30 = sadd.s32 %s23, 1
    %s31 = ssub.s32 %s23, %s30
    %p32 = scmp.eq.s32.totalorder %s31, 0
    %s34 = sadd.s32 %s33, 1
    %s35 = scalar_select %p32, %s33, %s34
    %p38 = pneg %p32
    %p39 = scmp.eq.s32.totalorder %s23, 1
    %p40 = por %p38, %p39
    %p41 = scmp.ne.s32.totalorder %s33, %s36
    %p42 = scmp.eq.s32.totalorder %s23, 0
    %p43 = por %p41, %p42
    %p44 = scmp.ne.s32.totalorder %s33, %s36
    %p45 = scmp.eq.s32.totalorder %s28, 1
    %p46 = por %p44, %p45
    %p47 = scmp.ne.s32.totalorder %s36, %s37
    %p48 = scmp.eq.s32.totalorder %s28, 0
    %p49 = por %p47, %p48
    %p50 = scmp.ne.s32.totalorder %s36, %s37
    %p51 = scmp.eq.s32.totalorder %s29, 1
    %p52 = por %p50, %p51
    %p54 = scmp.ne.s32.totalorder %s37, %s53
    %p55 = scmp.eq.s32.totalorder %s29, 0
    %p56 = por %p54, %p55
    %s58 = sadd.s32 %s57, 1
    %p61 = scmp.eq.s32.totalorder %s23, 1
    %p62 = scmp.ne.s32.totalorder %s57, %s59
    %p63 = scmp.eq.s32.totalorder %s23, 0
    %p64 = por %p62, %p63
    %p65 = scmp.ne.s32.totalorder %s57, %s59
    %p66 = scmp.eq.s32.totalorder %s28, 1
    %p67 = por %p65, %p66
    %p68 = scmp.ne.s32.totalorder %s59, %s60
    %p69 = scmp.eq.s32.totalorder %s28, 0
    %p70 = por %p68, %p69
    %p71 = scmp.ne.s32.totalorder %s59, %s60
    %p72 = scmp.eq.s32.totalorder %s29, 1
    %p73 = por %p71, %p72
    %p75 = scmp.ne.s32.totalorder %s60, %s74
    %p76 = scmp.eq.s32.totalorder %s29, 0
    %p77 = por %p75, %p76
    %s79 = sadd.s32 %s78, 1
    %p82 = scmp.eq.s32.totalorder %s23, 1
    %p83 = scmp.ne.s32.totalorder %s78, %s80
    %p84 = scmp.eq.s32.totalorder %s23, 0
    %p85 = por %p83, %p84
    %p86 = scmp.ne.s32.totalorder %s78, %s80
    %p87 = scmp.eq.s32.totalorder %s28, 1
    %p88 = por %p86, %p87
    %p89 = scmp.ne.s32.totalorder %s80, %s81
    %p90 = scmp.eq.s32.totalorder %s28, 0
    %p91 = por %p89, %p90
    %p92 = scmp.ne.s32.totalorder %s80, %s81
    %p93 = scmp.eq.s32.totalorder %s29, 1
    %p94 = por %p92, %p93
    %p96 = scmp.ne.s32.totalorder %s81, %s95
    %p97 = scmp.eq.s32.totalorder %s29, 0
    %p98 = por %p96, %p97
    %s100 = sadd.s32 %s99, 1
    %p103 = scmp.eq.s32.totalorder %s23, 1
    %p104 = scmp.ne.s32.totalorder %s99, %s101
    %p105 = scmp.eq.s32.totalorder %s23, 0
    %p106 = por %p104, %p105
    %p107 = scmp.ne.s32.totalorder %s99, %s101
    %p108 = scmp.eq.s32.totalorder %s28, 1
    %p109 = por %p107, %p108
    %p110 = scmp.ne.s32.totalorder %s101, %s102
    %p111 = scmp.eq.s32.totalorder %s28, 0
    %p112 = por %p110, %p111
    %p113 = scmp.ne.s32.totalorder %s101, %s102
    %p114 = scmp.eq.s32.totalorder %s29, 1
    %p115 = por %p113, %p114
    %p117 = scmp.ne.s32.totalorder %s102, %s116
    %p118 = scmp.eq.s32.totalorder %s29, 0
    %p119 = por %p117, %p118
    %s121 = sadd.s32 %s120, 1
    %p124 = scmp.eq.s32.totalorder %s23, 1
    %p125 = scmp.ne.s32.totalorder %s120, %s122
    %p126 = scmp.eq.s32.totalorder %s23, 0
    %p127 = por %p125, %p126
    %p128 = scmp.ne.s32.totalorder %s120, %s122
    %p129 = scmp.eq.s32.totalorder %s28, 1
    %p130 = por %p128, %p129
    %p131 = scmp.ne.s32.totalorder %s122, %s123
    %p132 = scmp.eq.s32.totalorder %s28, 0
    %p133 = por %p131, %p132
    %p134 = scmp.ne.s32.totalorder %s122, %s123
    %p135 = scmp.eq.s32.totalorder %s29, 1
    %p136 = por %p134, %p135
    %p138 = scmp.ne.s32.totalorder %s123, %s137
    %p139 = scmp.eq.s32.totalorder %s29, 0
    %p140 = por %p138, %p139
    %s142 = sadd.s32 %s141, 1
    %p145 = scmp.eq.s32.totalorder %s23, 1
    %p146 = scmp.ne.s32.totalorder %s141, %s143
    %p147 = scmp.eq.s32.totalorder %s23, 0
    %p148 = por %p146, %p147
    %p149 = scmp.ne.s32.totalorder %s141, %s143
    %p150 = scmp.eq.s32.totalorder %s28, 1
    %p151 = por %p149, %p150
    %p152 = scmp.ne.s32.totalorder %s143, %s144
    %p153 = scmp.eq.s32.totalorder %s28, 0
    %p154 = por %p152, %p153
    %p155 = scmp.ne.s32.totalorder %s143, %s144
    %p156 = scmp.eq.s32.totalorder %s29, 1
    %p157 = por %p155, %p156
    %p159 = scmp.ne.s32.totalorder %s144, %s158
    %p160 = scmp.eq.s32.totalorder %s29, 0
    %p161 = por %p159, %p160
    %s163 = sadd.s32 %s162, 1
    %p166 = scmp.eq.s32.totalorder %s23, 1
    %p167 = scmp.ne.s32.totalorder %s162, %s164
    %p168 = scmp.eq.s32.totalorder %s23, 0
    %p169 = por %p167, %p168
    %p170 = scmp.ne.s32.totalorder %s162, %s164
    %p171 = scmp.eq.s32.totalorder %s28, 1
    %p172 = por %p170, %p171
    %p173 = scmp.ne.s32.totalorder %s164, %s165
    %p174 = scmp.eq.s32.totalorder %s28, 0
    %p175 = por %p173, %p174
    %p176 = scmp.ne.s32.totalorder %s164, %s165
    %p177 = scmp.eq.s32.totalorder %s29, 1
    %p178 = por %p176, %p177
    %p180 = scmp.ne.s32.totalorder %s165, %s179
    %p181 = scmp.eq.s32.totalorder %s29, 0
    %p182 = por %p180, %p181
    %s184 = sadd.s32 %s183, 1
    %p187 = scmp.eq.s32.totalorder %s23, 1
    %p188 = scmp.ne.s32.totalorder %s183, %s185
    %p189 = scmp.eq.s32.totalorder %s23, 0
    %p190 = por %p188, %p189
    %p191 = scmp.ne.s32.totalorder %s183, %s185
    %p192 = scmp.eq.s32.totalorder %s28, 1
    %p193 = por %p191, %p192
    %p194 = scmp.ne.s32.totalorder %s185, %s186
    %p195 = scmp.eq.s32.totalorder %s28, 0
    %p196 = por %p194, %p195
    %p197 = scmp.ne.s32.totalorder %s185, %s186
    %p198 = scmp.eq.s32.totalorder %s29, 1
    %p199 = por %p197, %p198
    %p201 = scmp.ne.s32.totalorder %s186, %s200
    %p202 = scmp.eq.s32.totalorder %s29, 0
    %p203 = por %p201, %p202
    %s205 = sadd.s32 %s204, 1
    %p208 = scmp.eq.s32.totalorder %s23, 1
    %p209 = scmp.ne.s32.totalorder %s204, %s206
    %p210 = scmp.eq.s32.totalorder %s23, 0
    %p211 = por %p209, %p210
    %p212 = scmp.ne.s32.totalorder %s204, %s206
    %p213 = scmp.eq.s32.totalorder %s28, 1
    %p214 = por %p212, %p213
    %p215 = scmp.ne.s32.totalorder %s206, %s207
    %p216 = scmp.eq.s32.totalorder %s28, 0
    %p217 = por %p215, %p216
    %p218 = scmp.ne.s32.totalorder %s206, %s207
    %p219 = scmp.eq.s32.totalorder %s29, 1
    %p220 = por %p218, %p219
    %p222 = scmp.ne.s32.totalorder %s207, %s221
    %p223 = scmp.eq.s32.totalorder %s29, 0
    %p224 = por %p222, %p223
    %s226 = sadd.s32 %s225, 1
    %p229 = scmp.eq.s32.totalorder %s23, 1
    %p230 = scmp.ne.s32.totalorder %s225, %s227
    %p231 = scmp.eq.s32.totalorder %s23, 0
    %p232 = por %p230, %p231
    %p233 = scmp.ne.s32.totalorder %s225, %s227
    %p234 = scmp.eq.s32.totalorder %s28, 1
    %p235 = por %p233, %p234
    %p236 = scmp.ne.s32.totalorder %s227, %s228
    %p237 = scmp.eq.s32.totalorder %s28, 0
    %p238 = por %p236, %p237
    %p239 = scmp.ne.s32.totalorder %s227, %s228
    %p240 = scmp.eq.s32.totalorder %s29, 1
    %p241 = por %p239, %p240
    %p243 = scmp.ne.s32.totalorder %s228, %s242
    %p244 = scmp.eq.s32.totalorder %s29, 0
    %p245 = por %p243, %p244
    %s247 = sadd.s32 %s246, 1
    %p250 = scmp.eq.s32.totalorder %s23, 1
    %p251 = scmp.ne.s32.totalorder %s246, %s248
    %p252 = scmp.eq.s32.totalorder %s23, 0
    %p253 = por %p251, %p252
    %p254 = scmp.ne.s32.totalorder %s246, %s248
    %p255 = scmp.eq.s32.totalorder %s28, 1
    %p256 = por %p254, %p255
    %p257 = scmp.ne.s32.totalorder %s248, %s249
    %p258 = scmp.eq.s32.totalorder %s28, 0
    %p259 = por %p257, %p258
    %p260 = scmp.ne.s32.totalorder %s248, %s249
    %p261 = scmp.eq.s32.totalorder %s29, 1
    %p262 = por %p260, %p261
    %p264 = scmp.ne.s32.totalorder %s249, %s263
    %p265 = scmp.eq.s32.totalorder %s29, 0
    %p266 = por %p264, %p265
    %s268 = sadd.s32 %s267, 1
    %p271 = scmp.eq.s32.totalorder %s23, 1
    %p272 = scmp.ne.s32.totalorder %s267, %s269
    %p273 = scmp.eq.s32.totalorder %s23, 0
    %p274 = por %p272, %p273
    %p275 = scmp.ne.s32.totalorder %s267, %s269
    %p276 = scmp.eq.s32.totalorder %s28, 1
    %p277 = por %p275, %p276
    %p278 = scmp.ne.s32.totalorder %s269, %s270
    %p279 = scmp.eq.s32.totalorder %s28, 0
    %p280 = por %p278, %p279
    %p281 = scmp.ne.s32.totalorder %s269, %s270
    %p282 = scmp.eq.s32.totalorder %s29, 1
    %p283 = por %p281, %p282
    %p285 = scmp.ne.s32.totalorder %s270, %s284
    %p286 = scmp.eq.s32.totalorder %s29, 0
    %p287 = por %p285, %p286
    %s289 = sadd.s32 %s288, 1
    %p292 = scmp.eq.s32.totalorder %s23, 1
    %p293 = scmp.ne.s32.totalorder %s288, %s290
    %p294 = scmp.eq.s32.totalorder %s23, 0
    %p295 = por %p293, %p294
    %p296 = scmp.ne.s32.totalorder %s288, %s290
    %p297 = scmp.eq.s32.totalorder %s28, 1
    %p298 = por %p296, %p297
    %p299 = scmp.ne.s32.totalorder %s290, %s291
    %p300 = scmp.eq.s32.totalorder %s28, 0
    %p301 = por %p299, %p300
    %p302 = scmp.ne.s32.totalorder %s290, %s291
    %p303 = scmp.eq.s32.totalorder %s29, 1
    %p304 = por %p302, %p303
    %p306 = scmp.ne.s32.totalorder %s291, %s305
    %p307 = scmp.eq.s32.totalorder %s29, 0
    %p308 = por %p306, %p307
    %s310 = sadd.s32 %s309, 1
    %p313 = scmp.eq.s32.totalorder %s23, 1
    %p314 = scmp.ne.s32.totalorder %s309, %s311
    %p315 = scmp.eq.s32.totalorder %s23, 0
    %p316 = por %p314, %p315
    %p317 = scmp.ne.s32.totalorder %s309, %s311
    %p318 = scmp.eq.s32.totalorder %s28, 1
    %p319 = por %p317, %p318
    %p320 = scmp.ne.s32.totalorder %s311, %s312
    %p321 = scmp.eq.s32.totalorder %s28, 0
    %p322 = por %p320, %p321
    %p323 = scmp.ne.s32.totalorder %s311, %s312
    %p324 = scmp.eq.s32.totalorder %s29, 1
    %p325 = por %p323, %p324
    %p327 = scmp.ne.s32.totalorder %s312, %s326
    %p328 = scmp.eq.s32.totalorder %s29, 0
    %p329 = por %p327, %p328
    %s331 = sadd.s32 %s330, 1
    %p334 = scmp.eq.s32.totalorder %s23, 1
    %p335 = scmp.ne.s32.totalorder %s330, %s332
    %p336 = scmp.eq.s32.totalorder %s23, 0
    %p337 = por %p335, %p336
    %p338 = scmp.ne.s32.totalorder %s330, %s332
    %p339 = scmp.eq.s32.totalorder %s28, 1
    %p340 = por %p338, %p339
    %p341 = scmp.ne.s32.totalorder %s332, %s333
    %p342 = scmp.eq.s32.totalorder %s28, 0
    %p343 = por %p341, %p342
    %p344 = scmp.ne.s32.totalorder %s332, %s333
    %p345 = scmp.eq.s32.totalorder %s29, 1
    %p346 = por %p344, %p345
    %p348 = scmp.ne.s32.totalorder %s333, %s347
    %p349 = scmp.eq.s32.totalorder %s29, 0
    %p350 = por %p348, %p349
    %s351 = ssub.s32 %s23, %s30
    %p352 = scmp.eq.s32.totalorder %s351, 0
    %s354 = sadd.s32 %s353, 1
    %s355 = scalar_select %p352, %s353, %s354
    %p358 = pneg %p352
    %p359 = scmp.eq.s32.totalorder %s23, 1
    %p360 = por %p358, %p359
    %p361 = scmp.ne.s32.totalorder %s353, %s356
    %p362 = scmp.eq.s32.totalorder %s23, 0
    %p363 = por %p361, %p362
    %p364 = scmp.ne.s32.totalorder %s353, %s356
    %p365 = scmp.eq.s32.totalorder %s28, 1
    %p366 = por %p364, %p365
    %p367 = scmp.ne.s32.totalorder %s356, %s357
    %p368 = scmp.eq.s32.totalorder %s28, 0
    %p369 = por %p367, %p368
    %p370 = scmp.ne.s32.totalorder %s356, %s357
    %p371 = scmp.eq.s32.totalorder %s29, 1
    %p372 = por %p370, %p371
    %p374 = scmp.ne.s32.totalorder %s357, %s373
    %p375 = scmp.eq.s32.totalorder %s29, 0
    %p376 = por %p374, %p375
    %p377 = scmp.le.s32.totalorder 1, %s23
    %p378 = scmp.lt.s32.totalorder %s23, 3
    %p379 = pnand %p377, %p378
    %p380 = pneg %p379
    // Predicated region
    $region9: #{transformer_baseline_forward.1} parent=5 // pred_check
      _
    $region10: #{transformer_baseline_forward.1} parent=5 // pred_check_branch
      %382 = sbr.rel (%p379) target = $region12
    $region11: #{transformer_baseline_forward.1} parent=5 // pred_region
      %s383 = ssub.s32 %s23, 1
      // Predicated region
      $region13: #{transformer_baseline_forward.1} parent=11 // pred_check
        %p384 = pneg %p70
      $region14: #{transformer_baseline_forward.1} parent=11 // pred_check_branch
        %386 = sbr.rel (%p384) target = $region16
      $region15: #{transformer_baseline_forward.1} parent=11 // pred_region
        _
      $region16: #{transformer_baseline_forward.1} parent=11 // pred_fallthru
        _
      // Predicated region
      $region17: #{transformer_baseline_forward.1} parent=11 // pred_check
        %p387 = pneg %p91
      $region18: #{transformer_baseline_forward.1} parent=11 // pred_check_branch
        %389 = sbr.rel (%p387) target = $region20
      $region19: #{transformer_baseline_forward.1} parent=11 // pred_region
        _
      $region20: #{transformer_baseline_forward.1} parent=11 // pred_fallthru
        _
      // Predicated region
      $region21: #{transformer_baseline_forward.1} parent=11 // pred_check
        %p390 = pneg %p112
      $region22: #{transformer_baseline_forward.1} parent=11 // pred_check_branch
        %392 = sbr.rel (%p390) target = $region24
      $region23: #{transformer_baseline_forward.1} parent=11 // pred_region
        _
      $region24: #{transformer_baseline_forward.1} parent=11 // pred_fallthru
        _
      // Predicated region
      $region25: #{transformer_baseline_forward.1} parent=11 // pred_check
        %p393 = pneg %p133
      $region26: #{transformer_baseline_forward.1} parent=11 // pred_check_branch
        %395 = sbr.rel (%p393) target = $region28
      $region27: #{transformer_baseline_forward.1} parent=11 // pred_region
        _
      $region28: #{transformer_baseline_forward.1} parent=11 // pred_fallthru
        _
      // Predicated region
      $region29: #{transformer_baseline_forward.1} parent=11 // pred_check
        %p396 = pneg %p154
      $region30: #{transformer_baseline_forward.1} parent=11 // pred_check_branch
        %398 = sbr.rel (%p396) target = $region32
      $region31: #{transformer_baseline_forward.1} parent=11 // pred_region
        _
      $region32: #{transformer_baseline_forward.1} parent=11 // pred_fallthru
        _
      // Predicated region
      $region33: #{transformer_baseline_forward.1} parent=11 // pred_check
        %p399 = pneg %p175
      $region34: #{transformer_baseline_forward.1} parent=11 // pred_check_branch
        %401 = sbr.rel (%p399) target = $region36
      $region35: #{transformer_baseline_forward.1} parent=11 // pred_region
        _
      $region36: #{transformer_baseline_forward.1} parent=11 // pred_fallthru
        _
      // Predicated region
      $region37: #{transformer_baseline_forward.1} parent=11 // pred_check
        %p402 = pneg %p196
      $region38: #{transformer_baseline_forward.1} parent=11 // pred_check_branch
        %404 = sbr.rel (%p402) target = $region40
      $region39: #{transformer_baseline_forward.1} parent=11 // pred_region
        _
      $region40: #{transformer_baseline_forward.1} parent=11 // pred_fallthru
        _
      // Predicated region
      $region41: #{transformer_baseline_forward.1} parent=11 // pred_check
        %p405 = pneg %p217
      $region42: #{transformer_baseline_forward.1} parent=11 // pred_check_branch
        %407 = sbr.rel (%p405) target = $region44
      $region43: #{transformer_baseline_forward.1} parent=11 // pred_region
        _
      $region44: #{transformer_baseline_forward.1} parent=11 // pred_fallthru
        _
      // Predicated region
      $region45: #{transformer_baseline_forward.1} parent=11 // pred_check
        %p408 = pneg %p238
      $region46: #{transformer_baseline_forward.1} parent=11 // pred_check_branch
        %410 = sbr.rel (%p408) target = $region48
      $region47: #{transformer_baseline_forward.1} parent=11 // pred_region
        _
      $region48: #{transformer_baseline_forward.1} parent=11 // pred_fallthru
        _
      // Predicated region
      $region49: #{transformer_baseline_forward.1} parent=11 // pred_check
        %p411 = pneg %p259
      $region50: #{transformer_baseline_forward.1} parent=11 // pred_check_branch
        %413 = sbr.rel (%p411) target = $region52
      $region51: #{transformer_baseline_forward.1} parent=11 // pred_region
        _
      $region52: #{transformer_baseline_forward.1} parent=11 // pred_fallthru
        _
      // Predicated region
      $region53: #{transformer_baseline_forward.1} parent=11 // pred_check
        %p414 = pneg %p280
      $region54: #{transformer_baseline_forward.1} parent=11 // pred_check_branch
        %416 = sbr.rel (%p414) target = $region56
      $region55: #{transformer_baseline_forward.1} parent=11 // pred_region
        _
      $region56: #{transformer_baseline_forward.1} parent=11 // pred_fallthru
        _
      // Predicated region
      $region57: #{transformer_baseline_forward.1} parent=11 // pred_check
        %p417 = pneg %p301
      $region58: #{transformer_baseline_forward.1} parent=11 // pred_check_branch
        %419 = sbr.rel (%p417) target = $region60
      $region59: #{transformer_baseline_forward.1} parent=11 // pred_region
        _
      $region60: #{transformer_baseline_forward.1} parent=11 // pred_fallthru
        _
      // Predicated region
      $region61: #{transformer_baseline_forward.1} parent=11 // pred_check
        %p420 = pneg %p322
      $region62: #{transformer_baseline_forward.1} parent=11 // pred_check_branch
        %422 = sbr.rel (%p420) target = $region64
      $region63: #{transformer_baseline_forward.1} parent=11 // pred_region
        _
      $region64: #{transformer_baseline_forward.1} parent=11 // pred_fallthru
        _
      // Predicated region
      $region65: #{transformer_baseline_forward.1} parent=11 // pred_check
        %p423 = pneg %p343
      $region66: #{transformer_baseline_forward.1} parent=11 // pred_check_branch
        %425 = sbr.rel (%p423) target = $region68
      $region67: #{transformer_baseline_forward.1} parent=11 // pred_region
        _
      $region68: #{transformer_baseline_forward.1} parent=11 // pred_fallthru
        _
    $region12: #{transformer_baseline_forward.1} parent=5 // pred_fallthru
      _
    %p426 = scmp.lt.s32.totalorder %s23, 2
    // Predicated region
    $region69: #{transformer_baseline_forward.1} parent=5 // pred_check
      %p427 = pneg %p426
    $region70: #{transformer_baseline_forward.1} parent=5 // pred_check_branch
      %429 = sbr.rel (%p427) target = $region72
    $region71: #{transformer_baseline_forward.1} parent=5 // pred_region
      // Predicated region
      $region73: #{transformer_baseline_forward.1} parent=71 // pred_check
        %p430 = pneg %p43
      $region74: #{transformer_baseline_forward.1} parent=71 // pred_check_branch
        %432 = sbr.rel (%p430) target = $region76
      $region75: #{transformer_baseline_forward.1} parent=71 // pred_region
        %p433 = scmp.lt.s32.totalorder %s23, 1
        %s434 = scalar_select %p433, %s23, 1
        %s435 = smul.addr %s434, 8
        %s436 = scalar_lea.vmem %s0, %s435
      $region76: #{transformer_baseline_forward.1} parent=71 // pred_fallthru
        _
    $region72: #{transformer_baseline_forward.1} parent=5 // pred_fallthru
      _
    %p437 = scmp.le.s32.totalorder 1, %s23
    %p438 = scmp.lt.s32.totalorder %s23, 3
    %p439 = pnand %p437, %p438
    %p440 = pneg %p439
    // Predicated region
    $region77: #{transformer_baseline_forward.1} parent=5 // pred_check
      _
    $region78: #{transformer_baseline_forward.1} parent=5 // pred_check_branch
      %442 = sbr.rel (%p439) target = $region80
    $region79: #{transformer_baseline_forward.1} parent=5 // pred_region
      %s443 = ssub.s32 %s23, 1
      %p444 = scmp.lt.s32.totalorder %s28, 1
      %s445 = scalar_select %p444, %s28, 1
      %s446 = smul.addr %s445, 8
      %s447 = scalar_lea.vmem %s0, %s446
      %p448 = pneg %p49
      %p449 = pneg %p46
      %p450 = pneg %p70
      %p451 = pneg %p67
      %p452 = pneg %p91
      %p453 = pneg %p88
      %p454 = pneg %p112
      %p455 = pneg %p109
      %p456 = pneg %p133
      %p457 = pneg %p130
      %p458 = pneg %p154
      %p459 = pneg %p151
      %p460 = pneg %p175
      %p461 = pneg %p172
      %p462 = pneg %p196
      %p463 = pneg %p193
      %p464 = pneg %p217
      %p465 = pneg %p214
      %p466 = pneg %p238
      %p467 = pneg %p235
      %p468 = pneg %p259
      %p469 = pneg %p256
      %p470 = pneg %p280
      %p471 = pneg %p277
      %p472 = pneg %p301
      %p473 = pneg %p298
      %p474 = pneg %p322
      %p475 = pneg %p319
      %p476 = pneg %p343
      %p477 = pneg %p340
      %p478 = pneg %p369
      %p479 = pneg %p366
      %p480 = scmp.lt.s32.totalorder %s28, 1
      %s481 = scalar_select %p480, %s28, 1
      %s482 = scalar_lea.vmem %s15, %s481
      %p483 = scmp.lt.s32.totalorder %s28, 1
      %s484 = scalar_select %p483, %s28, 1
      %s485 = smul.addr %s484, 8
      %s486 = scalar_lea.vmem %s0, %s485
      %p487 = scmp.lt.s32.totalorder %s28, 1
      %s488 = scalar_select %p487, %s28, 1
      %s489 = scalar_lea.vmem %s15, %s488
      %v490 = vld [vmem:[%s486] sm:$0xff]
      %v491 = vld [vmem:[%s1] sm:$0xff]
      %v492 = vld [vmem:[%s1 + $0x8] sm:$0xff]
      %v493 = vld [vmem:[%s1 + $0x10] sm:$0xff]
      %v494 = vld [vmem:[%s1 + $0x18] sm:$0xff]
      %v495 = vld [vmem:[%s2] sm:$0x1]
      %v497 = vlaneseq
      %v498 = vshrl.u32 %v497, 7
      %v499 = vsub.s32 0, %v498
      %v500 = vrot.slane %v495, %v499
      %vm502 = vcmask 261120
      %v504 = vsel %vm502, %v490, 0
      %506 = vmatprep.subr.mxu0 0.0
      %507 = vmatpush1.msra.mxu0 %v491
      %508 = vmatprep.subr.mxu0 0.0
      %509 = vmatpush1.msra.mxu0 %v492
      %510 = vmatprep.subr.mxu0 0.0
      %511 = vmatpush1.msra.mxu0 %v493
      %512 = vmatprep.subr.mxu0 0.0
      %513 = vmatpush1.msra.mxu0 %v494
      %514 = vmatprep.subr.mxu0 0.0
      %515 = vmatpush1.msra.mxu0 0.0
      %516 = vmatprep.subr.mxu0 0.0
      %517 = vmatpush1.msra.mxu0 0.0
      %518 = vmatprep.subr.mxu0 0.0
      %519 = vmatpush1.msra.mxu0 0.0
      %520 = vmatprep.subr.mxu0 0.0
      %521 = vmatpush1.msra.mxu0 0.0
      %522 = vmatprep.subr.mxu0 0.0
      %523 = vmatpush1.msra.mxu0 0.0
      %524 = vmatprep.subr.mxu0 0.0
      %525 = vmatpush1.msra.mxu0 0.0
      %526 = vmatprep.subr.mxu0 0.0
      %527 = vmatpush1.msra.mxu0 0.0
      %528 = vmatprep.subr.mxu0 0.0
      %529 = vmatpush1.msra.mxu0 0.0
      %530 = vmatprep.subr.mxu0 0.0
      %531 = vmatpush1.msra.mxu0 0.0
      %532 = vmatprep.subr.mxu0 0.0
      %533 = vmatpush1.msra.mxu0 0.0
      %534 = vmatprep.subr.mxu0 0.0
      %535 = vmatpush1.msra.mxu0 0.0
      %536 = vmatprep.subr.mxu0 0.0
      %537 = vmatpush1.msra.mxu0 0.0
      %538 = vmatprep.subr.mxu0 0.0
      %539 = vmatpush1.msra.mxu0 0.0
      %540 = vmatprep.subr.mxu0 0.0
      %541 = vmatpush1.msra.mxu0 0.0
      %542 = vmatprep.subr.mxu0 0.0
      %543 = vmatpush1.msra.mxu0 0.0
      %544 = vmatprep.subr.mxu0 0.0
      %545 = vmatpush1.msra.mxu0 0.0
      %546 = vmatprep.subr.mxu0 0.0
      %547 = vmatpush1.msra.mxu0 0.0
      %548 = vmatprep.subr.mxu0 0.0
      %549 = vmatpush1.msra.mxu0 0.0
      %550 = vmatprep.subr.mxu0 0.0
      %551 = vmatpush1.msra.mxu0 0.0
      %552 = vmatprep.subr.mxu0 0.0
      %553 = vmatpush1.msra.mxu0 0.0
      %554 = vmatprep.subr.mxu0 0.0
      %555 = vmatpush1.msra.mxu0 0.0
      %556 = vmatprep.subr.mxu0 0.0
      %557 = vmatpush1.msra.mxu0 0.0
      %558 = vmatprep.subr.mxu0 0.0
      %559 = vmatpush1.msra.mxu0 0.0
      %560 = vmatprep.subr.mxu0 0.0
      %561 = vmatpush1.msra.mxu0 0.0
      %562 = vmatprep.subr.mxu0 0.0
      %563 = vmatpush1.msra.mxu0 0.0
      %564 = vmatprep.subr.mxu0 0.0
      %565 = vmatpush1.msra.mxu0 0.0
      %566 = vmatprep.subr.mxu0 0.0
      %567 = vmatpush1.msra.mxu0 0.0
      %568 = vmatprep.subr.mxu0 0.0
      %569 = vmatpush1.msra.mxu0 0.0
      %570 = vmatprep.mubr.f32.mxu0 0.0
      %571 = vmatmul.mubr.f32.gmra.mrb[0].mxu0 %v504
      %v572 = vpop.f32.mrb[0].mxu0
      %v573 = vadd.f32 %v500, %v572
      %v574 = vpop.f32.mrb[0].mxu0
      %575 = vdwg.mxu0
      %577 = vrot.lane.b32.xlu0 %v573, 96
      %v578 = vpop.permute.xlu0 %577
      %vm579 = vcmask 64512
      %v580 = vsel %vm579, %v573, 0
      %v582 = vsel %vm579, %v578, 0
      %584 = vmatprep.subr.mxu0 0.0
      %585 = vmatpush1.xpose.msra.mxu0 %v582
      %586 = vmatprep.subr.mxu0 0.0
      %587 = vmatpush1.xpose.msra.mxu0 0.0
      %588 = vmatprep.subr.mxu0 0.0
      %589 = vmatpush1.xpose.msra.mxu0 0.0
      %590 = vmatprep.subr.mxu0 0.0
      %591 = vmatpush1.xpose.msra.mxu0 0.0
      %592 = vmatprep.subr.mxu0 0.0
      %593 = vmatpush1.xpose.msra.mxu0 0.0
      %594 = vmatprep.subr.mxu0 0.0
      %595 = vmatpush1.xpose.msra.mxu0 0.0
      %596 = vmatprep.subr.mxu0 0.0
      %597 = vmatpush1.xpose.msra.mxu0 0.0
      %598 = vmatprep.subr.mxu0 0.0
      %599 = vmatpush1.xpose.msra.mxu0 0.0
      %600 = vmatprep.subr.mxu0 0.0
      %601 = vmatpush1.xpose.msra.mxu0 0.0
      %602 = vmatprep.subr.mxu0 0.0
      %603 = vmatpush1.xpose.msra.mxu0 0.0
      %604 = vmatprep.subr.mxu0 0.0
      %605 = vmatpush1.xpose.msra.mxu0 0.0
      %606 = vmatprep.subr.mxu0 0.0
      %607 = vmatpush1.xpose.msra.mxu0 0.0
      %608 = vmatprep.subr.mxu0 0.0
      %609 = vmatpush1.xpose.msra.mxu0 0.0
      %610 = vmatprep.subr.mxu0 0.0
      %611 = vmatpush1.xpose.msra.mxu0 0.0
      %612 = vmatprep.subr.mxu0 0.0
      %613 = vmatpush1.xpose.msra.mxu0 0.0
      %614 = vmatprep.subr.mxu0 0.0
      %615 = vmatpush1.xpose.msra.mxu0 0.0
      %616 = vmatprep.subr.mxu0 0.0
      %617 = vmatpush1.xpose.msra.mxu0 0.0
      %618 = vmatprep.subr.mxu0 0.0
      %619 = vmatpush1.xpose.msra.mxu0 0.0
      %620 = vmatprep.subr.mxu0 0.0
      %621 = vmatpush1.xpose.msra.mxu0 0.0
      %622 = vmatprep.subr.mxu0 0.0
      %623 = vmatpush1.xpose.msra.mxu0 0.0
      %624 = vmatprep.subr.mxu0 0.0
      %625 = vmatpush1.xpose.msra.mxu0 0.0
      %626 = vmatprep.subr.mxu0 0.0
      %627 = vmatpush1.xpose.msra.mxu0 0.0
      %628 = vmatprep.subr.mxu0 0.0
      %629 = vmatpush1.xpose.msra.mxu0 0.0
      %630 = vmatprep.subr.mxu0 0.0
      %631 = vmatpush1.xpose.msra.mxu0 0.0
      %632 = vmatprep.subr.mxu0 0.0
      %633 = vmatpush1.xpose.msra.mxu0 0.0
      %634 = vmatprep.subr.mxu0 0.0
      %635 = vmatpush1.xpose.msra.mxu0 0.0
      %636 = vmatprep.subr.mxu0 0.0
      %637 = vmatpush1.xpose.msra.mxu0 0.0
      %638 = vmatprep.subr.mxu0 0.0
      %639 = vmatpush1.xpose.msra.mxu0 0.0
      %640 = vmatprep.subr.mxu0 0.0
      %641 = vmatpush1.xpose.msra.mxu0 0.0
      %642 = vmatprep.subr.mxu0 0.0
      %643 = vmatpush1.xpose.msra.mxu0 0.0
      %644 = vmatprep.subr.mxu0 0.0
      %645 = vmatpush1.xpose.msra.mxu0 0.0
      %646 = vmatprep.subr.mxu0 0.0
      %647 = vmatpush1.xpose.msra.mxu0 0.0
      %648 = vmatprep.mubr.f32.mxu0 0.0
      %649 = vmatmul.mubr.f32.gmra.mrb[0].mxu0 %v580
      %v650 = vpop.f32.mrb[0].mxu0
      %v651 = vadd.f32 0.0, %v650
      %v652 = vpop.f32.mrb[0].mxu0
      %653 = vdwg.mxu0
      %v654 = vmul.f32 %v651, 0.35355338
      %v655 = vsel %vm579, %v654, -inf
      %656 = vmax.xlane.f32.xlu0 %v655
      %v657 = vpop.xlane.xlu0 %656
      %v658 = vsub.f32 %v654, %v657
      %v659 = vmul.f32 %v658, 1.442695
      %v660 = vpow.pop %v659
      %v661 = vsel %vm579, %v660, 0.0
      %662 = vadd.xlane.f32.xlu0 %v661
      %v663 = vpop.xlane.xlu0 %662
      %v664 = vrcp.pop %v663
      %v665 = vmul.f32 %v660, %v664
      %666 = vrot.lane.b32.xlu0 %v573, 64
      %v667 = vpop.permute.xlu0 %666
      %v670 = vsel %vm579, %v665, 0
      %672 = vmatprep.subr.mxu0 0.0
      %673 = vmatpush1.msra.mxu0 %v667
      %674 = vmatprep.subr.mxu0 0.0
      %675 = vmatpush1.msra.mxu0 0.0
      %676 = vmatprep.subr.mxu0 0.0
      %677 = vmatpush1.msra.mxu0 0.0
      %678 = vmatprep.subr.mxu0 0.0
      %679 = vmatpush1.msra.mxu0 0.0
      %680 = vmatprep.subr.mxu0 0.0
      %681 = vmatpush1.msra.mxu0 0.0
      %682 = vmatprep.subr.mxu0 0.0
      %683 = vmatpush1.msra.mxu0 0.0
      %684 = vmatprep.subr.mxu0 0.0
      %685 = vmatpush1.msra.mxu0 0.0
      %686 = vmatprep.subr.mxu0 0.0
      %687 = vmatpush1.msra.mxu0 0.0
      %688 = vmatprep.subr.mxu0 0.0
      %689 = vmatpush1.msra.mxu0 0.0
      %690 = vmatprep.subr.mxu0 0.0
      %691 = vmatpush1.msra.mxu0 0.0
      %692 = vmatprep.subr.mxu0 0.0
      %693 = vmatpush1.msra.mxu0 0.0
      %694 = vmatprep.subr.mxu0 0.0
      %695 = vmatpush1.msra.mxu0 0.0
      %696 = vmatprep.subr.mxu0 0.0
      %697 = vmatpush1.msra.mxu0 0.0
      %698 = vmatprep.subr.mxu0 0.0
      %699 = vmatpush1.msra.mxu0 0.0
      %700 = vmatprep.subr.mxu0 0.0
      %701 = vmatpush1.msra.mxu0 0.0
      %702 = vmatprep.subr.mxu0 0.0
      %703 = vmatpush1.msra.mxu0 0.0
      %704 = vmatprep.subr.mxu0 0.0
      %705 = vmatpush1.msra.mxu0 0.0
      %706 = vmatprep.subr.mxu0 0.0
      %707 = vmatpush1.msra.mxu0 0.0
      %708 = vmatprep.subr.mxu0 0.0
      %709 = vmatpush1.msra.mxu0 0.0
      %710 = vmatprep.subr.mxu0 0.0
      %711 = vmatpush1.msra.mxu0 0.0
      %712 = vmatprep.subr.mxu0 0.0
      %713 = vmatpush1.msra.mxu0 0.0
      %714 = vmatprep.subr.mxu0 0.0
      %715 = vmatpush1.msra.mxu0 0.0
      %716 = vmatprep.subr.mxu0 0.0
      %717 = vmatpush1.msra.mxu0 0.0
      %718 = vmatprep.subr.mxu0 0.0
      %719 = vmatpush1.msra.mxu0 0.0
      %720 = vmatprep.subr.mxu0 0.0
      %721 = vmatpush1.msra.mxu0 0.0
      %722 = vmatprep.subr.mxu0 0.0
      %723 = vmatpush1.msra.mxu0 0.0
      %724 = vmatprep.subr.mxu0 0.0
      %725 = vmatpush1.msra.mxu0 0.0
      %726 = vmatprep.subr.mxu0 0.0
      %727 = vmatpush1.msra.mxu0 0.0
      %728 = vmatprep.subr.mxu0 0.0
      %729 = vmatpush1.msra.mxu0 0.0
      %730 = vmatprep.subr.mxu0 0.0
      %731 = vmatpush1.msra.mxu0 0.0
      %732 = vmatprep.subr.mxu0 0.0
      %733 = vmatpush1.msra.mxu0 0.0
      %734 = vmatprep.subr.mxu0 0.0
      %735 = vmatpush1.msra.mxu0 0.0
      %736 = vmatprep.mubr.f32.mxu0 0.0
      %737 = vmatmul.mubr.f32.gmra.mrb[0].mxu0 %v670
      %v738 = vpop.f32.mrb[0].mxu0
      %v739 = vadd.f32 0.0, %v738
      %v740 = vpop.f32.mrb[0].mxu0
      %741 = vdwg.mxu0
      %742 = vrot.lane.b32.xlu0 %v573, 120
      %v743 = vpop.permute.xlu0 %742
      %744 = vrot.lane.b32.xlu0 %v573, 88
      %v745 = vpop.permute.xlu0 %744
      %v746 = vsel %vm579, %v743, 0
      %v748 = vsel %vm579, %v745, 0
      %750 = vmatprep.subr.mxu0 0.0
      %751 = vmatpush1.xpose.msra.mxu0 %v748
      %752 = vmatprep.subr.mxu0 0.0
      %753 = vmatpush1.xpose.msra.mxu0 0.0
      %754 = vmatprep.subr.mxu0 0.0
      %755 = vmatpush1.xpose.msra.mxu0 0.0
      %756 = vmatprep.subr.mxu0 0.0
      %757 = vmatpush1.xpose.msra.mxu0 0.0
      %758 = vmatprep.subr.mxu0 0.0
      %759 = vmatpush1.xpose.msra.mxu0 0.0
      %760 = vmatprep.subr.mxu0 0.0
      %761 = vmatpush1.xpose.msra.mxu0 0.0
      %762 = vmatprep.subr.mxu0 0.0
      %763 = vmatpush1.xpose.msra.mxu0 0.0
      %764 = vmatprep.subr.mxu0 0.0
      %765 = vmatpush1.xpose.msra.mxu0 0.0
      %766 = vmatprep.subr.mxu0 0.0
      %767 = vmatpush1.xpose.msra.mxu0 0.0
      %768 = vmatprep.subr.mxu0 0.0
      %769 = vmatpush1.xpose.msra.mxu0 0.0
      %770 = vmatprep.subr.mxu0 0.0
      %771 = vmatpush1.xpose.msra.mxu0 0.0
      %772 = vmatprep.subr.mxu0 0.0
      %773 = vmatpush1.xpose.msra.mxu0 0.0
      %774 = vmatprep.subr.mxu0 0.0
      %775 = vmatpush1.xpose.msra.mxu0 0.0
      %776 = vmatprep.subr.mxu0 0.0
      %777 = vmatpush1.xpose.msra.mxu0 0.0
      %778 = vmatprep.subr.mxu0 0.0
      %779 = vmatpush1.xpose.msra.mxu0 0.0
      %780 = vmatprep.subr.mxu0 0.0
      %781 = vmatpush1.xpose.msra.mxu0 0.0
      %782 = vmatprep.subr.mxu0 0.0
      %783 = vmatpush1.xpose.msra.mxu0 0.0
      %784 = vmatprep.subr.mxu0 0.0
      %785 = vmatpush1.xpose.msra.mxu0 0.0
      %786 = vmatprep.subr.mxu0 0.0
      %787 = vmatpush1.xpose.msra.mxu0 0.0
      %788 = vmatprep.subr.mxu0 0.0
      %789 = vmatpush1.xpose.msra.mxu0 0.0
      %790 = vmatprep.subr.mxu0 0.0
      %791 = vmatpush1.xpose.msra.mxu0 0.0
      %792 = vmatprep.subr.mxu0 0.0
      %793 = vmatpush1.xpose.msra.mxu0 0.0
      %794 = vmatprep.subr.mxu0 0.0
      %795 = vmatpush1.xpose.msra.mxu0 0.0
      %796 = vmatprep.subr.mxu0 0.0
      %797 = vmatpush1.xpose.msra.mxu0 0.0
      %798 = vmatprep.subr.mxu0 0.0
      %799 = vmatpush1.xpose.msra.mxu0 0.0
      %800 = vmatprep.subr.mxu0 0.0
      %801 = vmatpush1.xpose.msra.mxu0 0.0
      %802 = vmatprep.subr.mxu0 0.0
      %803 = vmatpush1.xpose.msra.mxu0 0.0
      %804 = vmatprep.subr.mxu0 0.0
      %805 = vmatpush1.xpose.msra.mxu0 0.0
      %806 = vmatprep.subr.mxu0 0.0
      %807 = vmatpush1.xpose.msra.mxu0 0.0
      %808 = vmatprep.subr.mxu0 0.0
      %809 = vmatpush1.xpose.msra.mxu0 0.0
      %810 = vmatprep.subr.mxu0 0.0
      %811 = vmatpush1.xpose.msra.mxu0 0.0
      %812 = vmatprep.subr.mxu0 0.0
      %813 = vmatpush1.xpose.msra.mxu0 0.0
      %814 = vmatprep.mubr.f32.mxu0 0.0
      %815 = vmatmul.mubr.f32.gmra.mrb[0].mxu0 %v746
      %v816 = vpop.f32.mrb[0].mxu0
      %v817 = vadd.f32 0.0, %v816
      %v818 = vpop.f32.mrb[0].mxu0
      %819 = vdwg.mxu0
      %v820 = vmul.f32 %v817, 0.35355338
      %v821 = vsel %vm579, %v820, -inf
      %822 = vmax.xlane.f32.xlu0 %v821
      %v823 = vpop.xlane.xlu0 %822
      %v824 = vsub.f32 %v820, %v823
      %v825 = vmul.f32 %v824, 1.442695
      %v826 = vpow.pop %v825
      %v827 = vsel %vm579, %v826, 0.0
      %828 = vadd.xlane.f32.xlu0 %v827
      %v829 = vpop.xlane.xlu0 %828
      %v830 = vrcp.pop %v829
      %v831 = vmul.f32 %v826, %v830
      %832 = vrot.lane.b32.xlu0 %v573, 56
      %v833 = vpop.permute.xlu0 %832
      %v836 = vsel %vm579, %v831, 0
      %838 = vmatprep.subr.mxu0 0.0
      %839 = vmatpush1.msra.mxu0 %v833
      %840 = vmatprep.subr.mxu0 0.0
      %841 = vmatpush1.msra.mxu0 0.0
      %842 = vmatprep.subr.mxu0 0.0
      %843 = vmatpush1.msra.mxu0 0.0
      %844 = vmatprep.subr.mxu0 0.0
      %845 = vmatpush1.msra.mxu0 0.0
      %846 = vmatprep.subr.mxu0 0.0
      %847 = vmatpush1.msra.mxu0 0.0
      %848 = vmatprep.subr.mxu0 0.0
      %849 = vmatpush1.msra.mxu0 0.0
      %850 = vmatprep.subr.mxu0 0.0
      %851 = vmatpush1.msra.mxu0 0.0
      %852 = vmatprep.subr.mxu0 0.0
      %853 = vmatpush1.msra.mxu0 0.0
      %854 = vmatprep.subr.mxu0 0.0
      %855 = vmatpush1.msra.mxu0 0.0
      %856 = vmatprep.subr.mxu0 0.0
      %857 = vmatpush1.msra.mxu0 0.0
      %858 = vmatprep.subr.mxu0 0.0
      %859 = vmatpush1.msra.mxu0 0.0
      %860 = vmatprep.subr.mxu0 0.0
      %861 = vmatpush1.msra.mxu0 0.0
      %862 = vmatprep.subr.mxu0 0.0
      %863 = vmatpush1.msra.mxu0 0.0
      %864 = vmatprep.subr.mxu0 0.0
      %865 = vmatpush1.msra.mxu0 0.0
      %866 = vmatprep.subr.mxu0 0.0
      %867 = vmatpush1.msra.mxu0 0.0
      %868 = vmatprep.subr.mxu0 0.0
      %869 = vmatpush1.msra.mxu0 0.0
      %870 = vmatprep.subr.mxu0 0.0
      %871 = vmatpush1.msra.mxu0 0.0
      %872 = vmatprep.subr.mxu0 0.0
      %873 = vmatpush1.msra.mxu0 0.0
      %874 = vmatprep.subr.mxu0 0.0
      %875 = vmatpush1.msra.mxu0 0.0
      %876 = vmatprep.subr.mxu0 0.0
      %877 = vmatpush1.msra.mxu0 0.0
      %878 = vmatprep.subr.mxu0 0.0
      %879 = vmatpush1.msra.mxu0 0.0
      %880 = vmatprep.subr.mxu0 0.0
      %881 = vmatpush1.msra.mxu0 0.0
      %882 = vmatprep.subr.mxu0 0.0
      %883 = vmatpush1.msra.mxu0 0.0
      %884 = vmatprep.subr.mxu0 0.0
      %885 = vmatpush1.msra.mxu0 0.0
      %886 = vmatprep.subr.mxu0 0.0
      %887 = vmatpush1.msra.mxu0 0.0
      %888 = vmatprep.subr.mxu0 0.0
      %889 = vmatpush1.msra.mxu0 0.0
      %890 = vmatprep.subr.mxu0 0.0
      %891 = vmatpush1.msra.mxu0 0.0
      %892 = vmatprep.subr.mxu0 0.0
      %893 = vmatpush1.msra.mxu0 0.0
      %894 = vmatprep.subr.mxu0 0.0
      %895 = vmatpush1.msra.mxu0 0.0
      %896 = vmatprep.subr.mxu0 0.0
      %897 = vmatpush1.msra.mxu0 0.0
      %898 = vmatprep.subr.mxu0 0.0
      %899 = vmatpush1.msra.mxu0 0.0
      %900 = vmatprep.subr.mxu0 0.0
      %901 = vmatpush1.msra.mxu0 0.0
      %902 = vmatprep.mubr.f32.mxu0 0.0
      %903 = vmatmul.mubr.f32.gmra.mrb[0].mxu0 %v836
      %v904 = vpop.f32.mrb[0].mxu0
      %v905 = vadd.f32 0.0, %v904
      %v906 = vpop.f32.mrb[0].mxu0
      %907 = vdwg.mxu0
      %908 = vrot.lane.b32.xlu0 %v573, 112
      %v909 = vpop.permute.xlu0 %908
      %910 = vrot.lane.b32.xlu0 %v573, 80
      %v911 = vpop.permute.xlu0 %910
      %v912 = vsel %vm579, %v909, 0
      %v914 = vsel %vm579, %v911, 0
      %916 = vmatprep.subr.mxu0 0.0
      %917 = vmatpush1.xpose.msra.mxu0 %v914
      %918 = vmatprep.subr.mxu0 0.0
      %919 = vmatpush1.xpose.msra.mxu0 0.0
      %920 = vmatprep.subr.mxu0 0.0
      %921 = vmatpush1.xpose.msra.mxu0 0.0
      %922 = vmatprep.subr.mxu0 0.0
      %923 = vmatpush1.xpose.msra.mxu0 0.0
      %924 = vmatprep.subr.mxu0 0.0
      %925 = vmatpush1.xpose.msra.mxu0 0.0
      %926 = vmatprep.subr.mxu0 0.0
      %927 = vmatpush1.xpose.msra.mxu0 0.0
      %928 = vmatprep.subr.mxu0 0.0
      %929 = vmatpush1.xpose.msra.mxu0 0.0
      %930 = vmatprep.subr.mxu0 0.0
      %931 = vmatpush1.xpose.msra.mxu0 0.0
      %932 = vmatprep.subr.mxu0 0.0
      %933 = vmatpush1.xpose.msra.mxu0 0.0
      %934 = vmatprep.subr.mxu0 0.0
      %935 = vmatpush1.xpose.msra.mxu0 0.0
      %936 = vmatprep.subr.mxu0 0.0
      %937 = vmatpush1.xpose.msra.mxu0 0.0
      %938 = vmatprep.subr.mxu0 0.0
      %939 = vmatpush1.xpose.msra.mxu0 0.0
      %940 = vmatprep.subr.mxu0 0.0
      %941 = vmatpush1.xpose.msra.mxu0 0.0
      %942 = vmatprep.subr.mxu0 0.0
      %943 = vmatpush1.xpose.msra.mxu0 0.0
      %944 = vmatprep.subr.mxu0 0.0
      %945 = vmatpush1.xpose.msra.mxu0 0.0
      %946 = vmatprep.subr.mxu0 0.0
      %947 = vmatpush1.xpose.msra.mxu0 0.0
      %948 = vmatprep.subr.mxu0 0.0
      %949 = vmatpush1.xpose.msra.mxu0 0.0
      %950 = vmatprep.subr.mxu0 0.0
      %951 = vmatpush1.xpose.msra.mxu0 0.0
      %952 = vmatprep.subr.mxu0 0.0
      %953 = vmatpush1.xpose.msra.mxu0 0.0
      %954 = vmatprep.subr.mxu0 0.0
      %955 = vmatpush1.xpose.msra.mxu0 0.0
      %956 = vmatprep.subr.mxu0 0.0
      %957 = vmatpush1.xpose.msra.mxu0 0.0
      %958 = vmatprep.subr.mxu0 0.0
      %959 = vmatpush1.xpose.msra.mxu0 0.0
      %960 = vmatprep.subr.mxu0 0.0
      %961 = vmatpush1.xpose.msra.mxu0 0.0
      %962 = vmatprep.subr.mxu0 0.0
      %963 = vmatpush1.xpose.msra.mxu0 0.0
      %964 = vmatprep.subr.mxu0 0.0
      %965 = vmatpush1.xpose.msra.mxu0 0.0
      %966 = vmatprep.subr.mxu0 0.0
      %967 = vmatpush1.xpose.msra.mxu0 0.0
      %968 = vmatprep.subr.mxu0 0.0
      %969 = vmatpush1.xpose.msra.mxu0 0.0
      %970 = vmatprep.subr.mxu0 0.0
      %971 = vmatpush1.xpose.msra.mxu0 0.0
      %972 = vmatprep.subr.mxu0 0.0
      %973 = vmatpush1.xpose.msra.mxu0 0.0
      %974 = vmatprep.subr.mxu0 0.0
      %975 = vmatpush1.xpose.msra.mxu0 0.0
      %976 = vmatprep.subr.mxu0 0.0
      %977 = vmatpush1.xpose.msra.mxu0 0.0
      %978 = vmatprep.subr.mxu0 0.0
      %979 = vmatpush1.xpose.msra.mxu0 0.0
      %980 = vmatprep.mubr.f32.mxu0 0.0
      %981 = vmatmul.mubr.f32.gmra.mrb[0].mxu0 %v912
      %v982 = vpop.f32.mrb[0].mxu0
      %v983 = vadd.f32 0.0, %v982
      %v984 = vpop.f32.mrb[0].mxu0
      %985 = vdwg.mxu0
      %v986 = vmul.f32 %v983, 0.35355338
      %v987 = vsel %vm579, %v986, -inf
      %988 = vmax.xlane.f32.xlu0 %v987
      %v989 = vpop.xlane.xlu0 %988
      %v990 = vsub.f32 %v986, %v989
      %v991 = vmul.f32 %v990, 1.442695
      %v992 = vpow.pop %v991
      %v993 = vsel %vm579, %v992, 0.0
      %994 = vadd.xlane.f32.xlu0 %v993
      %v995 = vpop.xlane.xlu0 %994
      %v996 = vrcp.pop %v995
      %v997 = vmul.f32 %v992, %v996
      %998 = vrot.lane.b32.xlu0 %v573, 48
      %v999 = vpop.permute.xlu0 %998
      %v1002 = vsel %vm579, %v997, 0
      %1004 = vmatprep.subr.mxu0 0.0
      %1005 = vmatpush1.msra.mxu0 %v999
      %1006 = vmatprep.subr.mxu0 0.0
      %1007 = vmatpush1.msra.mxu0 0.0
      %1008 = vmatprep.subr.mxu0 0.0
      %1009 = vmatpush1.msra.mxu0 0.0
      %1010 = vmatprep.subr.mxu0 0.0
      %1011 = vmatpush1.msra.mxu0 0.0
      %1012 = vmatprep.subr.mxu0 0.0
      %1013 = vmatpush1.msra.mxu0 0.0
      %1014 = vmatprep.subr.mxu0 0.0
      %1015 = vmatpush1.msra.mxu0 0.0
      %1016 = vmatprep.subr.mxu0 0.0
      %1017 = vmatpush1.msra.mxu0 0.0
      %1018 = vmatprep.subr.mxu0 0.0
      %1019 = vmatpush1.msra.mxu0 0.0
      %1020 = vmatprep.subr.mxu0 0.0
      %1021 = vmatpush1.msra.mxu0 0.0
      %1022 = vmatprep.subr.mxu0 0.0
      %1023 = vmatpush1.msra.mxu0 0.0
      %1024 = vmatprep.subr.mxu0 0.0
      %1025 = vmatpush1.msra.mxu0 0.0
      %1026 = vmatprep.subr.mxu0 0.0
      %1027 = vmatpush1.msra.mxu0 0.0
      %1028 = vmatprep.subr.mxu0 0.0
      %1029 = vmatpush1.msra.mxu0 0.0
      %1030 = vmatprep.subr.mxu0 0.0
      %1031 = vmatpush1.msra.mxu0 0.0
      %1032 = vmatprep.subr.mxu0 0.0
      %1033 = vmatpush1.msra.mxu0 0.0
      %1034 = vmatprep.subr.mxu0 0.0
      %1035 = vmatpush1.msra.mxu0 0.0
      %1036 = vmatprep.subr.mxu0 0.0
      %1037 = vmatpush1.msra.mxu0 0.0
      %1038 = vmatprep.subr.mxu0 0.0
      %1039 = vmatpush1.msra.mxu0 0.0
      %1040 = vmatprep.subr.mxu0 0.0
      %1041 = vmatpush1.msra.mxu0 0.0
      %1042 = vmatprep.subr.mxu0 0.0
      %1043 = vmatpush1.msra.mxu0 0.0
      %1044 = vmatprep.subr.mxu0 0.0
      %1045 = vmatpush1.msra.mxu0 0.0
      %1046 = vmatprep.subr.mxu0 0.0
      %1047 = vmatpush1.msra.mxu0 0.0
      %1048 = vmatprep.subr.mxu0 0.0
      %1049 = vmatpush1.msra.mxu0 0.0
      %1050 = vmatprep.subr.mxu0 0.0
      %1051 = vmatpush1.msra.mxu0 0.0
      %1052 = vmatprep.subr.mxu0 0.0
      %1053 = vmatpush1.msra.mxu0 0.0
      %1054 = vmatprep.subr.mxu0 0.0
      %1055 = vmatpush1.msra.mxu0 0.0
      %1056 = vmatprep.subr.mxu0 0.0
      %1057 = vmatpush1.msra.mxu0 0.0
      %1058 = vmatprep.subr.mxu0 0.0
      %1059 = vmatpush1.msra.mxu0 0.0
      %1060 = vmatprep.subr.mxu0 0.0
      %1061 = vmatpush1.msra.mxu0 0.0
      %1062 = vmatprep.subr.mxu0 0.0
      %1063 = vmatpush1.msra.mxu0 0.0
      %1064 = vmatprep.subr.mxu0 0.0
      %1065 = vmatpush1.msra.mxu0 0.0
      %1066 = vmatprep.subr.mxu0 0.0
      %1067 = vmatpush1.msra.mxu0 0.0
      %1068 = vmatprep.mubr.f32.mxu0 0.0
      %1069 = vmatmul.mubr.f32.gmra.mrb[0].mxu0 %v1002
      %v1070 = vpop.f32.mrb[0].mxu0
      %v1071 = vadd.f32 0.0, %v1070
      %v1072 = vpop.f32.mrb[0].mxu0
      %1073 = vdwg.mxu0
      %1074 = vrot.lane.b32.xlu0 %v573, 104
      %v1075 = vpop.permute.xlu0 %1074
      %1076 = vrot.lane.b32.xlu0 %v573, 72
      %v1077 = vpop.permute.xlu0 %1076
      %v1078 = vsel %vm579, %v1075, 0
      %v1080 = vsel %vm579, %v1077, 0
      %1082 = vmatprep.subr.mxu0 0.0
      %1083 = vmatpush1.xpose.msra.mxu0 %v1080
      %1084 = vmatprep.subr.mxu0 0.0
      %1085 = vmatpush1.xpose.msra.mxu0 0.0
      %1086 = vmatprep.subr.mxu0 0.0
      %1087 = vmatpush1.xpose.msra.mxu0 0.0
      %1088 = vmatprep.subr.mxu0 0.0
      %1089 = vmatpush1.xpose.msra.mxu0 0.0
      %1090 = vmatprep.subr.mxu0 0.0
      %1091 = vmatpush1.xpose.msra.mxu0 0.0
      %1092 = vmatprep.subr.mxu0 0.0
      %1093 = vmatpush1.xpose.msra.mxu0 0.0
      %1094 = vmatprep.subr.mxu0 0.0
      %1095 = vmatpush1.xpose.msra.mxu0 0.0
      %1096 = vmatprep.subr.mxu0 0.0
      %1097 = vmatpush1.xpose.msra.mxu0 0.0
      %1098 = vmatprep.subr.mxu0 0.0
      %1099 = vmatpush1.xpose.msra.mxu0 0.0
      %1100 = vmatprep.subr.mxu0 0.0
      %1101 = vmatpush1.xpose.msra.mxu0 0.0
      %1102 = vmatprep.subr.mxu0 0.0
      %1103 = vmatpush1.xpose.msra.mxu0 0.0
      %1104 = vmatprep.subr.mxu0 0.0
      %1105 = vmatpush1.xpose.msra.mxu0 0.0
      %1106 = vmatprep.subr.mxu0 0.0
      %1107 = vmatpush1.xpose.msra.mxu0 0.0
      %1108 = vmatprep.subr.mxu0 0.0
      %1109 = vmatpush1.xpose.msra.mxu0 0.0
      %1110 = vmatprep.subr.mxu0 0.0
      %1111 = vmatpush1.xpose.msra.mxu0 0.0
      %1112 = vmatprep.subr.mxu0 0.0
      %1113 = vmatpush1.xpose.msra.mxu0 0.0
      %1114 = vmatprep.subr.mxu0 0.0
      %1115 = vmatpush1.xpose.msra.mxu0 0.0
      %1116 = vmatprep.subr.mxu0 0.0
      %1117 = vmatpush1.xpose.msra.mxu0 0.0
      %1118 = vmatprep.subr.mxu0 0.0
      %1119 = vmatpush1.xpose.msra.mxu0 0.0
      %1120 = vmatprep.subr.mxu0 0.0
      %1121 = vmatpush1.xpose.msra.mxu0 0.0
      %1122 = vmatprep.subr.mxu0 0.0
      %1123 = vmatpush1.xpose.msra.mxu0 0.0
      %1124 = vmatprep.subr.mxu0 0.0
      %1125 = vmatpush1.xpose.msra.mxu0 0.0
      %1126 = vmatprep.subr.mxu0 0.0
      %1127 = vmatpush1.xpose.msra.mxu0 0.0
      %1128 = vmatprep.subr.mxu0 0.0
      %1129 = vmatpush1.xpose.msra.mxu0 0.0
      %1130 = vmatprep.subr.mxu0 0.0
      %1131 = vmatpush1.xpose.msra.mxu0 0.0
      %1132 = vmatprep.subr.mxu0 0.0
      %1133 = vmatpush1.xpose.msra.mxu0 0.0
      %1134 = vmatprep.subr.mxu0 0.0
      %1135 = vmatpush1.xpose.msra.mxu0 0.0
      %1136 = vmatprep.subr.mxu0 0.0
      %1137 = vmatpush1.xpose.msra.mxu0 0.0
      %1138 = vmatprep.subr.mxu0 0.0
      %1139 = vmatpush1.xpose.msra.mxu0 0.0
      %1140 = vmatprep.subr.mxu0 0.0
      %1141 = vmatpush1.xpose.msra.mxu0 0.0
      %1142 = vmatprep.subr.mxu0 0.0
      %1143 = vmatpush1.xpose.msra.mxu0 0.0
      %1144 = vmatprep.subr.mxu0 0.0
      %1145 = vmatpush1.xpose.msra.mxu0 0.0
      %1146 = vmatprep.mubr.f32.mxu0 0.0
      %1147 = vmatmul.mubr.f32.gmra.mrb[0].mxu0 %v1078
      %v1148 = vpop.f32.mrb[0].mxu0
      %v1149 = vadd.f32 0.0, %v1148
      %v1150 = vpop.f32.mrb[0].mxu0
      %1151 = vdwg.mxu0
      %v1152 = vmul.f32 %v1149, 0.35355338
      %v1153 = vsel %vm579, %v1152, -inf
      %1154 = vmax.xlane.f32.xlu0 %v1153
      %v1155 = vpop.xlane.xlu0 %1154
      %v1156 = vsub.f32 %v1152, %v1155
      %v1157 = vmul.f32 %v1156, 1.442695
      %v1158 = vpow.pop %v1157
      %v1159 = vsel %vm579, %v1158, 0.0
      %1160 = vadd.xlane.f32.xlu0 %v1159
      %v1161 = vpop.xlane.xlu0 %1160
      %v1162 = vrcp.pop %v1161
      %v1163 = vmul.f32 %v1158, %v1162
      %1164 = vrot.lane.b32.xlu0 %v573, 40
      %v1165 = vpop.permute.xlu0 %1164
      %v1168 = vsel %vm579, %v1163, 0
      %1170 = vmatprep.subr.mxu0 0.0
      %1171 = vmatpush1.msra.mxu0 %v1165
      %1172 = vmatprep.subr.mxu0 0.0
      %1173 = vmatpush1.msra.mxu0 0.0
      %1174 = vmatprep.subr.mxu0 0.0
      %1175 = vmatpush1.msra.mxu0 0.0
      %1176 = vmatprep.subr.mxu0 0.0
      %1177 = vmatpush1.msra.mxu0 0.0
      %1178 = vmatprep.subr.mxu0 0.0
      %1179 = vmatpush1.msra.mxu0 0.0
      %1180 = vmatprep.subr.mxu0 0.0
      %1181 = vmatpush1.msra.mxu0 0.0
      %1182 = vmatprep.subr.mxu0 0.0
      %1183 = vmatpush1.msra.mxu0 0.0
      %1184 = vmatprep.subr.mxu0 0.0
      %1185 = vmatpush1.msra.mxu0 0.0
      %1186 = vmatprep.subr.mxu0 0.0
      %1187 = vmatpush1.msra.mxu0 0.0
      %1188 = vmatprep.subr.mxu0 0.0
      %1189 = vmatpush1.msra.mxu0 0.0
      %1190 = vmatprep.subr.mxu0 0.0
      %1191 = vmatpush1.msra.mxu0 0.0
      %1192 = vmatprep.subr.mxu0 0.0
      %1193 = vmatpush1.msra.mxu0 0.0
      %1194 = vmatprep.subr.mxu0 0.0
      %1195 = vmatpush1.msra.mxu0 0.0
      %1196 = vmatprep.subr.mxu0 0.0
      %1197 = vmatpush1.msra.mxu0 0.0
      %1198 = vmatprep.subr.mxu0 0.0
      %1199 = vmatpush1.msra.mxu0 0.0
      %1200 = vmatprep.subr.mxu0 0.0
      %1201 = vmatpush1.msra.mxu0 0.0
      %1202 = vmatprep.subr.mxu0 0.0
      %1203 = vmatpush1.msra.mxu0 0.0
      %1204 = vmatprep.subr.mxu0 0.0
      %1205 = vmatpush1.msra.mxu0 0.0
      %1206 = vmatprep.subr.mxu0 0.0
      %1207 = vmatpush1.msra.mxu0 0.0
      %1208 = vmatprep.subr.mxu0 0.0
      %1209 = vmatpush1.msra.mxu0 0.0
      %1210 = vmatprep.subr.mxu0 0.0
      %1211 = vmatpush1.msra.mxu0 0.0
      %1212 = vmatprep.subr.mxu0 0.0
      %1213 = vmatpush1.msra.mxu0 0.0
      %1214 = vmatprep.subr.mxu0 0.0
      %1215 = vmatpush1.msra.mxu0 0.0
      %1216 = vmatprep.subr.mxu0 0.0
      %1217 = vmatpush1.msra.mxu0 0.0
      %1218 = vmatprep.subr.mxu0 0.0
      %1219 = vmatpush1.msra.mxu0 0.0
      %1220 = vmatprep.subr.mxu0 0.0
      %1221 = vmatpush1.msra.mxu0 0.0
      %1222 = vmatprep.subr.mxu0 0.0
      %1223 = vmatpush1.msra.mxu0 0.0
      %1224 = vmatprep.subr.mxu0 0.0
      %1225 = vmatpush1.msra.mxu0 0.0
      %1226 = vmatprep.subr.mxu0 0.0
      %1227 = vmatpush1.msra.mxu0 0.0
      %1228 = vmatprep.subr.mxu0 0.0
      %1229 = vmatpush1.msra.mxu0 0.0
      %1230 = vmatprep.subr.mxu0 0.0
      %1231 = vmatpush1.msra.mxu0 0.0
      %1232 = vmatprep.subr.mxu0 0.0
      %1233 = vmatpush1.msra.mxu0 0.0
      %1234 = vmatprep.mubr.f32.mxu0 0.0
      %1235 = vmatmul.mubr.f32.gmra.mrb[0].mxu0 %v1168
      %v1236 = vpop.f32.mrb[0].mxu0
      %v1237 = vadd.f32 0.0, %v1236
      %v1238 = vpop.f32.mrb[0].mxu0
      %1239 = vdwg.mxu0
      %1241 = vrot.lane.b32.xlu0 %v905, 8
      %v1242 = vpop.permute.xlu0 %1241
      %1245 = vrot.lane.b32.xlu0 %v1071, 16
      %v1246 = vpop.permute.xlu0 %1245
      %1249 = vrot.lane.b32.xlu0 %v1237, 24
      %v1250 = vpop.permute.xlu0 %1249
      %v1252 = vsel %vm579, %v739, %v1242
      %vm1253 = vcmask 130048
      %v1254 = vsel %vm1253, %v1252, %v1246
      %vm1255 = vcmask 195584
      %v1256 = vsel %vm1255, %v1254, %v1250
      %v1257 = vld [vmem:[%s3] sm:$0xff]
      %v1258 = vld [vmem:[%s3 + $0x8] sm:$0xff]
      %v1259 = vld [vmem:[%s3 + $0x10] sm:$0xff]
      %v1260 = vld [vmem:[%s3 + $0x18] sm:$0xff]
      %v1261 = vld [vmem:[%s4] sm:$0x1]
      %v1263 = vlaneseq
      %v1264 = vshrl.u32 %v1263, 7
      %v1265 = vsub.s32 0, %v1264
      %v1266 = vrot.slane %v1261, %v1265
      %v1269 = vsel %vm502, %v1256, 0
      %1271 = vmatprep.subr.mxu0 0.0
      %1272 = vmatpush1.msra.mxu0 %v1257
      %1273 = vmatprep.subr.mxu0 0.0
      %1274 = vmatpush1.msra.mxu0 %v1258
      %1275 = vmatprep.subr.mxu0 0.0
      %1276 = vmatpush1.msra.mxu0 %v1259
      %1277 = vmatprep.subr.mxu0 0.0
      %1278 = vmatpush1.msra.mxu0 %v1260
      %1279 = vmatprep.subr.mxu0 0.0
      %1280 = vmatpush1.msra.mxu0 0.0
      %1281 = vmatprep.subr.mxu0 0.0
      %1282 = vmatpush1.msra.mxu0 0.0
      %1283 = vmatprep.subr.mxu0 0.0
      %1284 = vmatpush1.msra.mxu0 0.0
      %1285 = vmatprep.subr.mxu0 0.0
      %1286 = vmatpush1.msra.mxu0 0.0
      %1287 = vmatprep.subr.mxu0 0.0
      %1288 = vmatpush1.msra.mxu0 0.0
      %1289 = vmatprep.subr.mxu0 0.0
      %1290 = vmatpush1.msra.mxu0 0.0
      %1291 = vmatprep.subr.mxu0 0.0
      %1292 = vmatpush1.msra.mxu0 0.0
      %1293 = vmatprep.subr.mxu0 0.0
      %1294 = vmatpush1.msra.mxu0 0.0
      %1295 = vmatprep.subr.mxu0 0.0
      %1296 = vmatpush1.msra.mxu0 0.0
      %1297 = vmatprep.subr.mxu0 0.0
      %1298 = vmatpush1.msra.mxu0 0.0
      %1299 = vmatprep.subr.mxu0 0.0
      %1300 = vmatpush1.msra.mxu0 0.0
      %1301 = vmatprep.subr.mxu0 0.0
      %1302 = vmatpush1.msra.mxu0 0.0
      %1303 = vmatprep.subr.mxu0 0.0
      %1304 = vmatpush1.msra.mxu0 0.0
      %1305 = vmatprep.subr.mxu0 0.0
      %1306 = vmatpush1.msra.mxu0 0.0
      %1307 = vmatprep.subr.mxu0 0.0
      %1308 = vmatpush1.msra.mxu0 0.0
      %1309 = vmatprep.subr.mxu0 0.0
      %1310 = vmatpush1.msra.mxu0 0.0
      %1311 = vmatprep.subr.mxu0 0.0
      %1312 = vmatpush1.msra.mxu0 0.0
      %1313 = vmatprep.subr.mxu0 0.0
      %1314 = vmatpush1.msra.mxu0 0.0
      %1315 = vmatprep.subr.mxu0 0.0
      %1316 = vmatpush1.msra.mxu0 0.0
      %1317 = vmatprep.subr.mxu0 0.0
      %1318 = vmatpush1.msra.mxu0 0.0
      %1319 = vmatprep.subr.mxu0 0.0
      %1320 = vmatpush1.msra.mxu0 0.0
      %1321 = vmatprep.subr.mxu0 0.0
      %1322 = vmatpush1.msra.mxu0 0.0
      %1323 = vmatprep.subr.mxu0 0.0
      %1324 = vmatpush1.msra.mxu0 0.0
      %1325 = vmatprep.subr.mxu0 0.0
      %1326 = vmatpush1.msra.mxu0 0.0
      %1327 = vmatprep.subr.mxu0 0.0
      %1328 = vmatpush1.msra.mxu0 0.0
      %1329 = vmatprep.subr.mxu0 0.0
      %1330 = vmatpush1.msra.mxu0 0.0
      %1331 = vmatprep.subr.mxu0 0.0
      %1332 = vmatpush1.msra.mxu0 0.0
      %1333 = vmatprep.subr.mxu0 0.0
      %1334 = vmatpush1.msra.mxu0 0.0
      %1335 = vmatprep.mubr.f32.mxu0 0.0
      %1336 = vmatmul.mubr.f32.gmra.mrb[0].mxu0 %v1269
      %v1337 = vpop.f32.mrb[0].mxu0
      %v1338 = vadd.f32 %v1266, %v1337
      %v1339 = vpop.f32.mrb[0].mxu0
      %1340 = vdwg.mxu0
      %v1341 = vadd.f32 %v490, %v1338
      %v1342 = vld [vmem:[%s5] sm:$0x1]
      %v1343 = vld [vmem:[%s6] sm:$0x1]
      %v1344 = vsel %vm502, %v1341, 0.0
      %1345 = vadd.xlane.f32.xlu0 %v1344
      %v1346 = vpop.xlane.xlu0 %1345
      %v1347 = vrcp.pop 32.0
      %v1348 = vmul.f32 %v1346, %v1347
      %v1349 = vsub.f32 %v1341, %v1348
      %v1350 = vmul.f32 %v1349, %v1349
      %v1351 = vsel %vm502, %v1350, 0.0
      %1352 = vadd.xlane.f32.xlu0 %v1351
      %v1353 = vpop.xlane.xlu0 %1352
      %v1354 = vmul.f32 %v1353, %v1347
      %v1355 = vadd.f32 %v1354, 1e-05
      %v1356 = vrsqrt.pop %v1355
      %v1357 = vmul.f32 %v1349, %v1356
      %v1359 = vlaneseq
      %v1360 = vshrl.u32 %v1359, 7
      %v1361 = vsub.s32 0, %v1360
      %v1362 = vrot.slane %v1342, %v1361
      %v1364 = vmul.f32 %v1357, %v1362
      %v1366 = vlaneseq
      %v1367 = vshrl.u32 %v1366, 7
      %v1368 = vsub.s32 0, %v1367
      %v1369 = vrot.slane %v1343, %v1368
      %v1371 = vadd.f32 %v1364, %v1369
      %v1372 = vld [vmem:[%s7] sm:$0xff]
      %v1373 = vld [vmem:[%s7 + $0x8] sm:$0xff]
      %v1374 = vld [vmem:[%s7 + $0x10] sm:$0xff]
      %v1375 = vld [vmem:[%s7 + $0x18] sm:$0xff]
      %v1376 = vld [vmem:[%s8] sm:$0x1]
      %v1378 = vlaneseq
      %v1379 = vshrl.u32 %v1378, 7
      %v1380 = vsub.s32 0, %v1379
      %v1381 = vrot.slane %v1376, %v1380
      %v1384 = vsel %vm502, %v1371, 0
      %1386 = vmatprep.subr.mxu0 0.0
      %1387 = vmatpush1.msra.mxu0 %v1372
      %1388 = vmatprep.subr.mxu0 0.0
      %1389 = vmatpush1.msra.mxu0 %v1373
      %1390 = vmatprep.subr.mxu0 0.0
      %1391 = vmatpush1.msra.mxu0 %v1374
      %1392 = vmatprep.subr.mxu0 0.0
      %1393 = vmatpush1.msra.mxu0 %v1375
      %1394 = vmatprep.subr.mxu0 0.0
      %1395 = vmatpush1.msra.mxu0 0.0
      %1396 = vmatprep.subr.mxu0 0.0
      %1397 = vmatpush1.msra.mxu0 0.0
      %1398 = vmatprep.subr.mxu0 0.0
      %1399 = vmatpush1.msra.mxu0 0.0
      %1400 = vmatprep.subr.mxu0 0.0
      %1401 = vmatpush1.msra.mxu0 0.0
      %1402 = vmatprep.subr.mxu0 0.0
      %1403 = vmatpush1.msra.mxu0 0.0
      %1404 = vmatprep.subr.mxu0 0.0
      %1405 = vmatpush1.msra.mxu0 0.0
      %1406 = vmatprep.subr.mxu0 0.0
      %1407 = vmatpush1.msra.mxu0 0.0
      %1408 = vmatprep.subr.mxu0 0.0
      %1409 = vmatpush1.msra.mxu0 0.0
      %1410 = vmatprep.subr.mxu0 0.0
      %1411 = vmatpush1.msra.mxu0 0.0
      %1412 = vmatprep.subr.mxu0 0.0
      %1413 = vmatpush1.msra.mxu0 0.0
      %1414 = vmatprep.subr.mxu0 0.0
      %1415 = vmatpush1.msra.mxu0 0.0
      %1416 = vmatprep.subr.mxu0 0.0
      %1417 = vmatpush1.msra.mxu0 0.0
      %1418 = vmatprep.subr.mxu0 0.0
      %1419 = vmatpush1.msra.mxu0 0.0
      %1420 = vmatprep.subr.mxu0 0.0
      %1421 = vmatpush1.msra.mxu0 0.0
      %1422 = vmatprep.subr.mxu0 0.0
      %1423 = vmatpush1.msra.mxu0 0.0
      %1424 = vmatprep.subr.mxu0 0.0
      %1425 = vmatpush1.msra.mxu0 0.0
      %1426 = vmatprep.subr.mxu0 0.0
      %1427 = vmatpush1.msra.mxu0 0.0
      %1428 = vmatprep.subr.mxu0 0.0
      %1429 = vmatpush1.msra.mxu0 0.0
      %1430 = vmatprep.subr.mxu0 0.0
      %1431 = vmatpush1.msra.mxu0 0.0
      %1432 = vmatprep.subr.mxu0 0.0
      %1433 = vmatpush1.msra.mxu0 0.0
      %1434 = vmatprep.subr.mxu0 0.0
      %1435 = vmatpush1.msra.mxu0 0.0
      %1436 = vmatprep.subr.mxu0 0.0
      %1437 = vmatpush1.msra.mxu0 0.0
      %1438 = vmatprep.subr.mxu0 0.0
      %1439 = vmatpush1.msra.mxu0 0.0
      %1440 = vmatprep.subr.mxu0 0.0
      %1441 = vmatpush1.msra.mxu0 0.0
      %1442 = vmatprep.subr.mxu0 0.0
      %1443 = vmatpush1.msra.mxu0 0.0
      %1444 = vmatprep.subr.mxu0 0.0
      %1445 = vmatpush1.msra.mxu0 0.0
      %1446 = vmatprep.subr.mxu0 0.0
      %1447 = vmatpush1.msra.mxu0 0.0
      %1448 = vmatprep.subr.mxu0 0.0
      %1449 = vmatpush1.msra.mxu0 0.0
      %1450 = vmatprep.mubr.f32.mxu0 0.0
      %1451 = vmatmul.mubr.f32.gmra.mrb[0].mxu0 %v1384
      %v1452 = vpop.f32.mrb[0].mxu0
      %v1453 = vadd.f32 %v1381, %v1452
      %v1454 = vpop.f32.mrb[0].mxu0
      %1455 = vdwg.mxu0
      %v1456 = vmax.f32 %v1453, 0.0
      %v1457 = vld [vmem:[%s9] sm:$0xff]
      %v1458 = vld [vmem:[%s9 + $0x8] sm:$0xff]
      %v1459 = vld [vmem:[%s9 + $0x10] sm:$0xff]
      %v1460 = vld [vmem:[%s9 + $0x18] sm:$0xff]
      %v1461 = vld [vmem:[%s9 + $0x20] sm:$0xff]
      %v1462 = vld [vmem:[%s9 + $0x28] sm:$0xff]
      %v1463 = vld [vmem:[%s9 + $0x30] sm:$0xff]
      %v1464 = vld [vmem:[%s9 + $0x38] sm:$0xff]
      %v1465 = vld [vmem:[%s9 + $0x40] sm:$0xff]
      %v1466 = vld [vmem:[%s9 + $0x48] sm:$0xff]
      %v1467 = vld [vmem:[%s9 + $0x50] sm:$0xff]
      %v1468 = vld [vmem:[%s9 + $0x58] sm:$0xff]
      %v1469 = vld [vmem:[%s9 + $0x60] sm:$0xff]
      %v1470 = vld [vmem:[%s9 + $0x68] sm:$0xff]
      %v1471 = vld [vmem:[%s9 + $0x70] sm:$0xff]
      %v1472 = vld [vmem:[%s9 + $0x78] sm:$0xff]
      %v1473 = vld [vmem:[%s10] sm:$0x1]
      %v1475 = vlaneseq
      %v1476 = vshrl.u32 %v1475, 7
      %v1477 = vsub.s32 0, %v1476
      %v1478 = vrot.slane %v1473, %v1477
      %1480 = vmatprep.subr.mxu0 0.0
      %1481 = vmatpush1.msra.mxu0 %v1457
      %1482 = vmatprep.subr.mxu0 0.0
      %1483 = vmatpush1.msra.mxu0 %v1458
      %1484 = vmatprep.subr.mxu0 0.0
      %1485 = vmatpush1.msra.mxu0 %v1459
      %1486 = vmatprep.subr.mxu0 0.0
      %1487 = vmatpush1.msra.mxu0 %v1460
      %1488 = vmatprep.subr.mxu0 0.0
      %1489 = vmatpush1.msra.mxu0 %v1461
      %1490 = vmatprep.subr.mxu0 0.0
      %1491 = vmatpush1.msra.mxu0 %v1462
      %1492 = vmatprep.subr.mxu0 0.0
      %1493 = vmatpush1.msra.mxu0 %v1463
      %1494 = vmatprep.subr.mxu0 0.0
      %1495 = vmatpush1.msra.mxu0 %v1464
      %1496 = vmatprep.subr.mxu0 0.0
      %1497 = vmatpush1.msra.mxu0 %v1465
      %1498 = vmatprep.subr.mxu0 0.0
      %1499 = vmatpush1.msra.mxu0 %v1466
      %1500 = vmatprep.subr.mxu0 0.0
      %1501 = vmatpush1.msra.mxu0 %v1467
      %1502 = vmatprep.subr.mxu0 0.0
      %1503 = vmatpush1.msra.mxu0 %v1468
      %1504 = vmatprep.subr.mxu0 0.0
      %1505 = vmatpush1.msra.mxu0 %v1469
      %1506 = vmatprep.subr.mxu0 0.0
      %1507 = vmatpush1.msra.mxu0 %v1470
      %1508 = vmatprep.subr.mxu0 0.0
      %1509 = vmatpush1.msra.mxu0 %v1471
      %1510 = vmatprep.subr.mxu0 0.0
      %1511 = vmatpush1.msra.mxu0 %v1472
      %1512 = vmatprep.subr.mxu0 0.0
      %1513 = vmatpush1.msra.mxu0 0.0
      %1514 = vmatprep.subr.mxu0 0.0
      %1515 = vmatpush1.msra.mxu0 0.0
      %1516 = vmatprep.subr.mxu0 0.0
      %1517 = vmatpush1.msra.mxu0 0.0
      %1518 = vmatprep.subr.mxu0 0.0
      %1519 = vmatpush1.msra.mxu0 0.0
      %1520 = vmatprep.subr.mxu0 0.0
      %1521 = vmatpush1.msra.mxu0 0.0
      %1522 = vmatprep.subr.mxu0 0.0
      %1523 = vmatpush1.msra.mxu0 0.0
      %1524 = vmatprep.subr.mxu0 0.0
      %1525 = vmatpush1.msra.mxu0 0.0
      %1526 = vmatprep.subr.mxu0 0.0
      %1527 = vmatpush1.msra.mxu0 0.0
      %1528 = vmatprep.subr.mxu0 0.0
      %1529 = vmatpush1.msra.mxu0 0.0
      %1530 = vmatprep.subr.mxu0 0.0
      %1531 = vmatpush1.msra.mxu0 0.0
      %1532 = vmatprep.subr.mxu0 0.0
      %1533 = vmatpush1.msra.mxu0 0.0
      %1534 = vmatprep.subr.mxu0 0.0
      %1535 = vmatpush1.msra.mxu0 0.0
      %1536 = vmatprep.subr.mxu0 0.0
      %1537 = vmatpush1.msra.mxu0 0.0
      %1538 = vmatprep.subr.mxu0 0.0
      %1539 = vmatpush1.msra.mxu0 0.0
      %1540 = vmatprep.subr.mxu0 0.0
      %1541 = vmatpush1.msra.mxu0 0.0
      %1542 = vmatprep.subr.mxu0 0.0
      %1543 = vmatpush1.msra.mxu0 0.0
      %1544 = vmatprep.mubr.f32.mxu0 0.0
      %1545 = vmatmul.mubr.f32.gmra.mrb[0].mxu0 %v1456
      %v1546 = vpop.f32.mrb[0].mxu0
      %v1547 = vadd.f32 %v1478, %v1546
      %v1548 = vpop.f32.mrb[0].mxu0
      %1549 = vdwg.mxu0
      %v1550 = vadd.f32 %v1371, %v1547
      %v1551 = vld [vmem:[%s11] sm:$0x1]
      %v1552 = vld [vmem:[%s12] sm:$0x1]
      %v1553 = vsel %vm502, %v1550, 0.0
      %1554 = vadd.xlane.f32.xlu0 %v1553
      %v1555 = vpop.xlane.xlu0 %1554
      %v1556 = vmul.f32 %v1555, %v1347
      %v1557 = vsub.f32 %v1550, %v1556
      %v1558 = vmul.f32 %v1557, %v1557
      %v1559 = vsel %vm502, %v1558, 0.0
      %1560 = vadd.xlane.f32.xlu0 %v1559
      %v1561 = vpop.xlane.xlu0 %1560
      %v1562 = vmul.f32 %v1561, %v1347
      %v1563 = vadd.f32 %v1562, 1e-05
      %v1564 = vrsqrt.pop %v1563
      %v1565 = vmul.f32 %v1557, %v1564
      %v1567 = vlaneseq
      %v1568 = vshrl.u32 %v1567, 7
      %v1569 = vsub.s32 0, %v1568
      %v1570 = vrot.slane %v1551, %v1569
      %v1572 = vmul.f32 %v1565, %v1570
      %v1574 = vlaneseq
      %v1575 = vshrl.u32 %v1574, 7
      %v1576 = vsub.s32 0, %v1575
      %v1577 = vrot.slane %v1552, %v1576
      %v1579 = vadd.f32 %v1572, %v1577
      %s1580 = scalar_lea.vmem %s1, 32
      %v1581 = vld [vmem:[%s1580] sm:$0xff]
      %v1582 = vld [vmem:[%s1580 + $0x8] sm:$0xff]
      %v1583 = vld [vmem:[%s1580 + $0x10] sm:$0xff]
      %v1584 = vld [vmem:[%s1580 + $0x18] sm:$0xff]
      %s1585 = scalar_lea.vmem %s2, 1
      %v1586 = vld [vmem:[%s1585] sm:$0x1]
      %v1588 = vlaneseq
      %v1589 = vshrl.u32 %v1588, 7
      %v1590 = vsub.s32 0, %v1589
      %v1591 = vrot.slane %v1586, %v1590
      %v1594 = vsel %vm502, %v1579, 0
      %1596 = vmatprep.subr.mxu0 0.0
      %1597 = vmatpush1.msra.mxu0 %v1581
      %1598 = vmatprep.subr.mxu0 0.0
      %1599 = vmatpush1.msra.mxu0 %v1582
      %1600 = vmatprep.subr.mxu0 0.0
      %1601 = vmatpush1.msra.mxu0 %v1583
      %1602 = vmatprep.subr.mxu0 0.0
      %1603 = vmatpush1.msra.mxu0 %v1584
      %1604 = vmatprep.subr.mxu0 0.0
      %1605 = vmatpush1.msra.mxu0 0.0
      %1606 = vmatprep.subr.mxu0 0.0
      %1607 = vmatpush1.msra.mxu0 0.0
      %1608 = vmatprep.subr.mxu0 0.0
      %1609 = vmatpush1.msra.mxu0 0.0
      %1610 = vmatprep.subr.mxu0 0.0
      %1611 = vmatpush1.msra.mxu0 0.0
      %1612 = vmatprep.subr.mxu0 0.0
      %1613 = vmatpush1.msra.mxu0 0.0
      %1614 = vmatprep.subr.mxu0 0.0
      %1615 = vmatpush1.msra.mxu0 0.0
      %1616 = vmatprep.subr.mxu0 0.0
      %1617 = vmatpush1.msra.mxu0 0.0
      %1618 = vmatprep.subr.mxu0 0.0
      %1619 = vmatpush1.msra.mxu0 0.0
      %1620 = vmatprep.subr.mxu0 0.0
      %1621 = vmatpush1.msra.mxu0 0.0
      %1622 = vmatprep.subr.mxu0 0.0
      %1623 = vmatpush1.msra.mxu0 0.0
      %1624 = vmatprep.subr.mxu0 0.0
      %1625 = vmatpush1.msra.mxu0 0.0
      %1626 = vmatprep.subr.mxu0 0.0
      %1627 = vmatpush1.msra.mxu0 0.0
      %1628 = vmatprep.subr.mxu0 0.0
      %1629 = vmatpush1.msra.mxu0 0.0
      %1630 = vmatprep.subr.mxu0 0.0
      %1631 = vmatpush1.msra.mxu0 0.0
      %1632 = vmatprep.subr.mxu0 0.0
      %1633 = vmatpush1.msra.mxu0 0.0
      %1634 = vmatprep.subr.mxu0 0.0
      %1635 = vmatpush1.msra.mxu0 0.0
      %1636 = vmatprep.subr.mxu0 0.0
      %1637 = vmatpush1.msra.mxu0 0.0
      %1638 = vmatprep.subr.mxu0 0.0
      %1639 = vmatpush1.msra.mxu0 0.0
      %1640 = vmatprep.subr.mxu0 0.0
      %1641 = vmatpush1.msra.mxu0 0.0
      %1642 = vmatprep.subr.mxu0 0.0
      %1643 = vmatpush1.msra.mxu0 0.0
      %1644 = vmatprep.subr.mxu0 0.0
      %1645 = vmatpush1.msra.mxu0 0.0
      %1646 = vmatprep.subr.mxu0 0.0
      %1647 = vmatpush1.msra.mxu0 0.0
      %1648 = vmatprep.subr.mxu0 0.0
      %1649 = vmatpush1.msra.mxu0 0.0
      %1650 = vmatprep.subr.mxu0 0.0
      %1651 = vmatpush1.msra.mxu0 0.0
      %1652 = vmatprep.subr.mxu0 0.0
      %1653 = vmatpush1.msra.mxu0 0.0
      %1654 = vmatprep.subr.mxu0 0.0
      %1655 = vmatpush1.msra.mxu0 0.0
      %1656 = vmatprep.subr.mxu0 0.0
      %1657 = vmatpush1.msra.mxu0 0.0
      %1658 = vmatprep.subr.mxu0 0.0
      %1659 = vmatpush1.msra.mxu0 0.0
      %1660 = vmatprep.mubr.f32.mxu0 0.0
      %1661 = vmatmul.mubr.f32.gmra.mrb[0].mxu0 %v1594
      %v1662 = vpop.f32.mrb[0].mxu0
      %v1663 = vadd.f32 %v1591, %v1662
      %v1664 = vpop.f32.mrb[0].mxu0
      %1665 = vdwg.mxu0
      %1667 = vrot.lane.b32.xlu0 %v1663, 96
      %v1668 = vpop.permute.xlu0 %1667
      %v1669 = vsel %vm579, %v1663, 0
      %v1671 = vsel %vm579, %v1668, 0
      %1673 = vmatprep.subr.mxu0 0.0
      %1674 = vmatpush1.xpose.msra.mxu0 %v1671
      %1675 = vmatprep.subr.mxu0 0.0
      %1676 = vmatpush1.xpose.msra.mxu0 0.0
      %1677 = vmatprep.subr.mxu0 0.0
      %1678 = vmatpush1.xpose.msra.mxu0 0.0
      %1679 = vmatprep.subr.mxu0 0.0
      %1680 = vmatpush1.xpose.msra.mxu0 0.0
      %1681 = vmatprep.subr.mxu0 0.0
      %1682 = vmatpush1.xpose.msra.mxu0 0.0
      %1683 = vmatprep.subr.mxu0 0.0
      %1684 = vmatpush1.xpose.msra.mxu0 0.0
      %1685 = vmatprep.subr.mxu0 0.0
      %1686 = vmatpush1.xpose.msra.mxu0 0.0
      %1687 = vmatprep.subr.mxu0 0.0
      %1688 = vmatpush1.xpose.msra.mxu0 0.0
      %1689 = vmatprep.subr.mxu0 0.0
      %1690 = vmatpush1.xpose.msra.mxu0 0.0
      %1691 = vmatprep.subr.mxu0 0.0
      %1692 = vmatpush1.xpose.msra.mxu0 0.0
      %1693 = vmatprep.subr.mxu0 0.0
      %1694 = vmatpush1.xpose.msra.mxu0 0.0
      %1695 = vmatprep.subr.mxu0 0.0
      %1696 = vmatpush1.xpose.msra.mxu0 0.0
      %1697 = vmatprep.subr.mxu0 0.0
      %1698 = vmatpush1.xpose.msra.mxu0 0.0
      %1699 = vmatprep.subr.mxu0 0.0
      %1700 = vmatpush1.xpose.msra.mxu0 0.0
      %1701 = vmatprep.subr.mxu0 0.0
      %1702 = vmatpush1.xpose.msra.mxu0 0.0
      %1703 = vmatprep.subr.mxu0 0.0
      %1704 = vmatpush1.xpose.msra.mxu0 0.0
      %1705 = vmatprep.subr.mxu0 0.0
      %1706 = vmatpush1.xpose.msra.mxu0 0.0
      %1707 = vmatprep.subr.mxu0 0.0
      %1708 = vmatpush1.xpose.msra.mxu0 0.0
      %1709 = vmatprep.subr.mxu0 0.0
      %1710 = vmatpush1.xpose.msra.mxu0 0.0
      %1711 = vmatprep.subr.mxu0 0.0
      %1712 = vmatpush1.xpose.msra.mxu0 0.0
      %1713 = vmatprep.subr.mxu0 0.0
      %1714 = vmatpush1.xpose.msra.mxu0 0.0
      %1715 = vmatprep.subr.mxu0 0.0
      %1716 = vmatpush1.xpose.msra.mxu0 0.0
      %1717 = vmatprep.subr.mxu0 0.0
      %1718 = vmatpush1.xpose.msra.mxu0 0.0
      %1719 = vmatprep.subr.mxu0 0.0
      %1720 = vmatpush1.xpose.msra.mxu0 0.0
      %1721 = vmatprep.subr.mxu0 0.0
      %1722 = vmatpush1.xpose.msra.mxu0 0.0
      %1723 = vmatprep.subr.mxu0 0.0
      %1724 = vmatpush1.xpose.msra.mxu0 0.0
      %1725 = vmatprep.subr.mxu0 0.0
      %1726 = vmatpush1.xpose.msra.mxu0 0.0
      %1727 = vmatprep.subr.mxu0 0.0
      %1728 = vmatpush1.xpose.msra.mxu0 0.0
      %1729 = vmatprep.subr.mxu0 0.0
      %1730 = vmatpush1.xpose.msra.mxu0 0.0
      %1731 = vmatprep.subr.mxu0 0.0
      %1732 = vmatpush1.xpose.msra.mxu0 0.0
      %1733 = vmatprep.subr.mxu0 0.0
      %1734 = vmatpush1.xpose.msra.mxu0 0.0
      %1735 = vmatprep.subr.mxu0 0.0
      %1736 = vmatpush1.xpose.msra.mxu0 0.0
      %1737 = vmatprep.mubr.f32.mxu0 0.0
      %1738 = vmatmul.mubr.f32.gmra.mrb[0].mxu0 %v1669
      %v1739 = vpop.f32.mrb[0].mxu0
      %v1740 = vadd.f32 0.0, %v1739
      %v1741 = vpop.f32.mrb[0].mxu0
      %1742 = vdwg.mxu0
      %v1743 = vmul.f32 %v1740, 0.35355338
      %v1744 = vsel %vm579, %v1743, -inf
      %1745 = vmax.xlane.f32.xlu0 %v1744
      %v1746 = vpop.xlane.xlu0 %1745
      %v1747 = vsub.f32 %v1743, %v1746
      %v1748 = vmul.f32 %v1747, 1.442695
      %v1749 = vpow.pop %v1748
      %v1750 = vsel %vm579, %v1749, 0.0
      %1751 = vadd.xlane.f32.xlu0 %v1750
      %v1752 = vpop.xlane.xlu0 %1751
      %v1753 = vrcp.pop %v1752
      %v1754 = vmul.f32 %v1749, %v1753
      %1755 = vrot.lane.b32.xlu0 %v1663, 64
      %v1756 = vpop.permute.xlu0 %1755
      %v1759 = vsel %vm579, %v1754, 0
      %1761 = vmatprep.subr.mxu0 0.0
      %1762 = vmatpush1.msra.mxu0 %v1756
      %1763 = vmatprep.subr.mxu0 0.0
      %1764 = vmatpush1.msra.mxu0 0.0
      %1765 = vmatprep.subr.mxu0 0.0
      %1766 = vmatpush1.msra.mxu0 0.0
      %1767 = vmatprep.subr.mxu0 0.0
      %1768 = vmatpush1.msra.mxu0 0.0
      %1769 = vmatprep.subr.mxu0 0.0
      %1770 = vmatpush1.msra.mxu0 0.0
      %1771 = vmatprep.subr.mxu0 0.0
      %1772 = vmatpush1.msra.mxu0 0.0
      %1773 = vmatprep.subr.mxu0 0.0
      %1774 = vmatpush1.msra.mxu0 0.0
      %1775 = vmatprep.subr.mxu0 0.0
      %1776 = vmatpush1.msra.mxu0 0.0
      %1777 = vmatprep.subr.mxu0 0.0
      %1778 = vmatpush1.msra.mxu0 0.0
      %1779 = vmatprep.subr.mxu0 0.0
      %1780 = vmatpush1.msra.mxu0 0.0
      %1781 = vmatprep.subr.mxu0 0.0
      %1782 = vmatpush1.msra.mxu0 0.0
      %1783 = vmatprep.subr.mxu0 0.0
      %1784 = vmatpush1.msra.mxu0 0.0
      %1785 = vmatprep.subr.mxu0 0.0
      %1786 = vmatpush1.msra.mxu0 0.0
      %1787 = vmatprep.subr.mxu0 0.0
      %1788 = vmatpush1.msra.mxu0 0.0
      %1789 = vmatprep.subr.mxu0 0.0
      %1790 = vmatpush1.msra.mxu0 0.0
      %1791 = vmatprep.subr.mxu0 0.0
      %1792 = vmatpush1.msra.mxu0 0.0
      %1793 = vmatprep.subr.mxu0 0.0
      %1794 = vmatpush1.msra.mxu0 0.0
      %1795 = vmatprep.subr.mxu0 0.0
      %1796 = vmatpush1.msra.mxu0 0.0
      %1797 = vmatprep.subr.mxu0 0.0
      %1798 = vmatpush1.msra.mxu0 0.0
      %1799 = vmatprep.subr.mxu0 0.0
      %1800 = vmatpush1.msra.mxu0 0.0
      %1801 = vmatprep.subr.mxu0 0.0
      %1802 = vmatpush1.msra.mxu0 0.0
      %1803 = vmatprep.subr.mxu0 0.0
      %1804 = vmatpush1.msra.mxu0 0.0
      %1805 = vmatprep.subr.mxu0 0.0
      %1806 = vmatpush1.msra.mxu0 0.0
      %1807 = vmatprep.subr.mxu0 0.0
      %1808 = vmatpush1.msra.mxu0 0.0
      %1809 = vmatprep.subr.mxu0 0.0
      %1810 = vmatpush1.msra.mxu0 0.0
      %1811 = vmatprep.subr.mxu0 0.0
      %1812 = vmatpush1.msra.mxu0 0.0
      %1813 = vmatprep.subr.mxu0 0.0
      %1814 = vmatpush1.msra.mxu0 0.0
      %1815 = vmatprep.subr.mxu0 0.0
      %1816 = vmatpush1.msra.mxu0 0.0
      %1817 = vmatprep.subr.mxu0 0.0
      %1818 = vmatpush1.msra.mxu0 0.0
      %1819 = vmatprep.subr.mxu0 0.0
      %1820 = vmatpush1.msra.mxu0 0.0
      %1821 = vmatprep.subr.mxu0 0.0
      %1822 = vmatpush1.msra.mxu0 0.0
      %1823 = vmatprep.subr.mxu0 0.0
      %1824 = vmatpush1.msra.mxu0 0.0
      %1825 = vmatprep.mubr.f32.mxu0 0.0
      %1826 = vmatmul.mubr.f32.gmra.mrb[0].mxu0 %v1759
      %v1827 = vpop.f32.mrb[0].mxu0
      %v1828 = vadd.f32 0.0, %v1827
      %v1829 = vpop.f32.mrb[0].mxu0
      %1830 = vdwg.mxu0
      %1831 = vrot.lane.b32.xlu0 %v1663, 120
      %v1832 = vpop.permute.xlu0 %1831
      %1833 = vrot.lane.b32.xlu0 %v1663, 88
      %v1834 = vpop.permute.xlu0 %1833
      %v1835 = vsel %vm579, %v1832, 0
      %v1837 = vsel %vm579, %v1834, 0
      %1839 = vmatprep.subr.mxu0 0.0
      %1840 = vmatpush1.xpose.msra.mxu0 %v1837
      %1841 = vmatprep.subr.mxu0 0.0
      %1842 = vmatpush1.xpose.msra.mxu0 0.0
      %1843 = vmatprep.subr.mxu0 0.0
      %1844 = vmatpush1.xpose.msra.mxu0 0.0
      %1845 = vmatprep.subr.mxu0 0.0
      %1846 = vmatpush1.xpose.msra.mxu0 0.0
      %1847 = vmatprep.subr.mxu0 0.0
      %1848 = vmatpush1.xpose.msra.mxu0 0.0
      %1849 = vmatprep.subr.mxu0 0.0
      %1850 = vmatpush1.xpose.msra.mxu0 0.0
      %1851 = vmatprep.subr.mxu0 0.0
      %1852 = vmatpush1.xpose.msra.mxu0 0.0
      %1853 = vmatprep.subr.mxu0 0.0
      %1854 = vmatpush1.xpose.msra.mxu0 0.0
      %1855 = vmatprep.subr.mxu0 0.0
      %1856 = vmatpush1.xpose.msra.mxu0 0.0
      %1857 = vmatprep.subr.mxu0 0.0
      %1858 = vmatpush1.xpose.msra.mxu0 0.0
      %1859 = vmatprep.subr.mxu0 0.0
      %1860 = vmatpush1.xpose.msra.mxu0 0.0
      %1861 = vmatprep.subr.mxu0 0.0
      %1862 = vmatpush1.xpose.msra.mxu0 0.0
      %1863 = vmatprep.subr.mxu0 0.0
      %1864 = vmatpush1.xpose.msra.mxu0 0.0
      %1865 = vmatprep.subr.mxu0 0.0
      %1866 = vmatpush1.xpose.msra.mxu0 0.0
      %1867 = vmatprep.subr.mxu0 0.0
      %1868 = vmatpush1.xpose.msra.mxu0 0.0
      %1869 = vmatprep.subr.mxu0 0.0
      %1870 = vmatpush1.xpose.msra.mxu0 0.0
      %1871 = vmatprep.subr.mxu0 0.0
      %1872 = vmatpush1.xpose.msra.mxu0 0.0
      %1873 = vmatprep.subr.mxu0 0.0
      %1874 = vmatpush1.xpose.msra.mxu0 0.0
      %1875 = vmatprep.subr.mxu0 0.0
      %1876 = vmatpush1.xpose.msra.mxu0 0.0
      %1877 = vmatprep.subr.mxu0 0.0
      %1878 = vmatpush1.xpose.msra.mxu0 0.0
      %1879 = vmatprep.subr.mxu0 0.0
      %1880 = vmatpush1.xpose.msra.mxu0 0.0
      %1881 = vmatprep.subr.mxu0 0.0
      %1882 = vmatpush1.xpose.msra.mxu0 0.0
      %1883 = vmatprep.subr.mxu0 0.0
      %1884 = vmatpush1.xpose.msra.mxu0 0.0
      %1885 = vmatprep.subr.mxu0 0.0
      %1886 = vmatpush1.xpose.msra.mxu0 0.0
      %1887 = vmatprep.subr.mxu0 0.0
      %1888 = vmatpush1.xpose.msra.mxu0 0.0
      %1889 = vmatprep.subr.mxu0 0.0
      %1890 = vmatpush1.xpose.msra.mxu0 0.0
      %1891 = vmatprep.subr.mxu0 0.0
      %1892 = vmatpush1.xpose.msra.mxu0 0.0
      %1893 = vmatprep.subr.mxu0 0.0
      %1894 = vmatpush1.xpose.msra.mxu0 0.0
      %1895 = vmatprep.subr.mxu0 0.0
      %1896 = vmatpush1.xpose.msra.mxu0 0.0
      %1897 = vmatprep.subr.mxu0 0.0
      %1898 = vmatpush1.xpose.msra.mxu0 0.0
      %1899 = vmatprep.subr.mxu0 0.0
      %1900 = vmatpush1.xpose.msra.mxu0 0.0
      %1901 = vmatprep.subr.mxu0 0.0
      %1902 = vmatpush1.xpose.msra.mxu0 0.0
      %1903 = vmatprep.mubr.f32.mxu0 0.0
      %1904 = vmatmul.mubr.f32.gmra.mrb[0].mxu0 %v1835
      %v1905 = vpop.f32.mrb[0].mxu0
      %v1906 = vadd.f32 0.0, %v1905
      %v1907 = vpop.f32.mrb[0].mxu0
      %1908 = vdwg.mxu0
      %v1909 = vmul.f32 %v1906, 0.35355338
      %v1910 = vsel %vm579, %v1909, -inf
      %1911 = vmax.xlane.f32.xlu0 %v1910
      %v1912 = vpop.xlane.xlu0 %1911
      %v1913 = vsub.f32 %v1909, %v1912
      %v1914 = vmul.f32 %v1913, 1.442695
      %v1915 = vpow.pop %v1914
      %v1916 = vsel %vm579, %v1915, 0.0
      %1917 = vadd.xlane.f32.xlu0 %v1916
      %v1918 = vpop.xlane.xlu0 %1917
      %v1919 = vrcp.pop %v1918
      %v1920 = vmul.f32 %v1915, %v1919
      %1921 = vrot.lane.b32.xlu0 %v1663, 56
      %v1922 = vpop.permute.xlu0 %1921
      %v1925 = vsel %vm579, %v1920, 0
      %1927 = vmatprep.subr.mxu0 0.0
      %1928 = vmatpush1.msra.mxu0 %v1922
      %1929 = vmatprep.subr.mxu0 0.0
      %1930 = vmatpush1.msra.mxu0 0.0
      %1931 = vmatprep.subr.mxu0 0.0
      %1932 = vmatpush1.msra.mxu0 0.0
      %1933 = vmatprep.subr.mxu0 0.0
      %1934 = vmatpush1.msra.mxu0 0.0
      %1935 = vmatprep.subr.mxu0 0.0
      %1936 = vmatpush1.msra.mxu0 0.0
      %1937 = vmatprep.subr.mxu0 0.0
      %1938 = vmatpush1.msra.mxu0 0.0
      %1939 = vmatprep.subr.mxu0 0.0
      %1940 = vmatpush1.msra.mxu0 0.0
      %1941 = vmatprep.subr.mxu0 0.0
      %1942 = vmatpush1.msra.mxu0 0.0
      %1943 = vmatprep.subr.mxu0 0.0
      %1944 = vmatpush1.msra.mxu0 0.0
      %1945 = vmatprep.subr.mxu0 0.0
      %1946 = vmatpush1.msra.mxu0 0.0
      %1947 = vmatprep.subr.mxu0 0.0
      %1948 = vmatpush1.msra.mxu0 0.0
      %1949 = vmatprep.subr.mxu0 0.0
      %1950 = vmatpush1.msra.mxu0 0.0
      %1951 = vmatprep.subr.mxu0 0.0
      %1952 = vmatpush1.msra.mxu0 0.0
      %1953 = vmatprep.subr.mxu0 0.0
      %1954 = vmatpush1.msra.mxu0 0.0
      %1955 = vmatprep.subr.mxu0 0.0
      %1956 = vmatpush1.msra.mxu0 0.0
      %1957 = vmatprep.subr.mxu0 0.0
      %1958 = vmatpush1.msra.mxu0 0.0
      %1959 = vmatprep.subr.mxu0 0.0
      %1960 = vmatpush1.msra.mxu0 0.0
      %1961 = vmatprep.subr.mxu0 0.0
      %1962 = vmatpush1.msra.mxu0 0.0
      %1963 = vmatprep.subr.mxu0 0.0
      %1964 = vmatpush1.msra.mxu0 0.0
      %1965 = vmatprep.subr.mxu0 0.0
      %1966 = vmatpush1.msra.mxu0 0.0
      %1967 = vmatprep.subr.mxu0 0.0
      %1968 = vmatpush1.msra.mxu0 0.0
      %1969 = vmatprep.subr.mxu0 0.0
      %1970 = vmatpush1.msra.mxu0 0.0
      %1971 = vmatprep.subr.mxu0 0.0
      %1972 = vmatpush1.msra.mxu0 0.0
      %1973 = vmatprep.subr.mxu0 0.0
      %1974 = vmatpush1.msra.mxu0 0.0
      %1975 = vmatprep.subr.mxu0 0.0
      %1976 = vmatpush1.msra.mxu0 0.0
      %1977 = vmatprep.subr.mxu0 0.0
      %1978 = vmatpush1.msra.mxu0 0.0
      %1979 = vmatprep.subr.mxu0 0.0
      %1980 = vmatpush1.msra.mxu0 0.0
      %1981 = vmatprep.subr.mxu0 0.0
      %1982 = vmatpush1.msra.mxu0 0.0
      %1983 = vmatprep.subr.mxu0 0.0
      %1984 = vmatpush1.msra.mxu0 0.0
      %1985 = vmatprep.subr.mxu0 0.0
      %1986 = vmatpush1.msra.mxu0 0.0
      %1987 = vmatprep.subr.mxu0 0.0
      %1988 = vmatpush1.msra.mxu0 0.0
      %1989 = vmatprep.subr.mxu0 0.0
      %1990 = vmatpush1.msra.mxu0 0.0
      %1991 = vmatprep.mubr.f32.mxu0 0.0
      %1992 = vmatmul.mubr.f32.gmra.mrb[0].mxu0 %v1925
      %v1993 = vpop.f32.mrb[0].mxu0
      %v1994 = vadd.f32 0.0, %v1993
      %v1995 = vpop.f32.mrb[0].mxu0
      %1996 = vdwg.mxu0
      %1997 = vrot.lane.b32.xlu0 %v1663, 112
      %v1998 = vpop.permute.xlu0 %1997
      %1999 = vrot.lane.b32.xlu0 %v1663, 80
      %v2000 = vpop.permute.xlu0 %1999
      %v2001 = vsel %vm579, %v1998, 0
      %v2003 = vsel %vm579, %v2000, 0
      %2005 = vmatprep.subr.mxu0 0.0
      %2006 = vmatpush1.xpose.msra.mxu0 %v2003
      %2007 = vmatprep.subr.mxu0 0.0
      %2008 = vmatpush1.xpose.msra.mxu0 0.0
      %2009 = vmatprep.subr.mxu0 0.0
      %2010 = vmatpush1.xpose.msra.mxu0 0.0
      %2011 = vmatprep.subr.mxu0 0.0
      %2012 = vmatpush1.xpose.msra.mxu0 0.0
      %2013 = vmatprep.subr.mxu0 0.0
      %2014 = vmatpush1.xpose.msra.mxu0 0.0
      %2015 = vmatprep.subr.mxu0 0.0
      %2016 = vmatpush1.xpose.msra.mxu0 0.0
      %2017 = vmatprep.subr.mxu0 0.0
      %2018 = vmatpush1.xpose.msra.mxu0 0.0
      %2019 = vmatprep.subr.mxu0 0.0
      %2020 = vmatpush1.xpose.msra.mxu0 0.0
      %2021 = vmatprep.subr.mxu0 0.0
      %2022 = vmatpush1.xpose.msra.mxu0 0.0
      %2023 = vmatprep.subr.mxu0 0.0
      %2024 = vmatpush1.xpose.msra.mxu0 0.0
      %2025 = vmatprep.subr.mxu0 0.0
      %2026 = vmatpush1.xpose.msra.mxu0 0.0
      %2027 = vmatprep.subr.mxu0 0.0
      %2028 = vmatpush1.xpose.msra.mxu0 0.0
      %2029 = vmatprep.subr.mxu0 0.0
      %2030 = vmatpush1.xpose.msra.mxu0 0.0
      %2031 = vmatprep.subr.mxu0 0.0
      %2032 = vmatpush1.xpose.msra.mxu0 0.0
      %2033 = vmatprep.subr.mxu0 0.0
      %2034 = vmatpush1.xpose.msra.mxu0 0.0
      %2035 = vmatprep.subr.mxu0 0.0
      %2036 = vmatpush1.xpose.msra.mxu0 0.0
      %2037 = vmatprep.subr.mxu0 0.0
      %2038 = vmatpush1.xpose.msra.mxu0 0.0
      %2039 = vmatprep.subr.mxu0 0.0
      %2040 = vmatpush1.xpose.msra.mxu0 0.0
      %2041 = vmatprep.subr.mxu0 0.0
      %2042 = vmatpush1.xpose.msra.mxu0 0.0
      %2043 = vmatprep.subr.mxu0 0.0
      %2044 = vmatpush1.xpose.msra.mxu0 0.0
      %2045 = vmatprep.subr.mxu0 0.0
      %2046 = vmatpush1.xpose.msra.mxu0 0.0
      %2047 = vmatprep.subr.mxu0 0.0
      %2048 = vmatpush1.xpose.msra.mxu0 0.0
      %2049 = vmatprep.subr.mxu0 0.0
      %2050 = vmatpush1.xpose.msra.mxu0 0.0
      %2051 = vmatprep.subr.mxu0 0.0
      %2052 = vmatpush1.xpose.msra.mxu0 0.0
      %2053 = vmatprep.subr.mxu0 0.0
      %2054 = vmatpush1.xpose.msra.mxu0 0.0
      %2055 = vmatprep.subr.mxu0 0.0
      %2056 = vmatpush1.xpose.msra.mxu0 0.0
      %2057 = vmatprep.subr.mxu0 0.0
      %2058 = vmatpush1.xpose.msra.mxu0 0.0
      %2059 = vmatprep.subr.mxu0 0.0
      %2060 = vmatpush1.xpose.msra.mxu0 0.0
      %2061 = vmatprep.subr.mxu0 0.0
      %2062 = vmatpush1.xpose.msra.mxu0 0.0
      %2063 = vmatprep.subr.mxu0 0.0
      %2064 = vmatpush1.xpose.msra.mxu0 0.0
      %2065 = vmatprep.subr.mxu0 0.0
      %2066 = vmatpush1.xpose.msra.mxu0 0.0
      %2067 = vmatprep.subr.mxu0 0.0
      %2068 = vmatpush1.xpose.msra.mxu0 0.0
      %2069 = vmatprep.mubr.f32.mxu0 0.0
      %2070 = vmatmul.mubr.f32.gmra.mrb[0].mxu0 %v2001
      %v2071 = vpop.f32.mrb[0].mxu0
      %v2072 = vadd.f32 0.0, %v2071
      %v2073 = vpop.f32.mrb[0].mxu0
      %2074 = vdwg.mxu0
      %v2075 = vmul.f32 %v2072, 0.35355338
      %v2076 = vsel %vm579, %v2075, -inf
      %2077 = vmax.xlane.f32.xlu0 %v2076
      %v2078 = vpop.xlane.xlu0 %2077
      %v2079 = vsub.f32 %v2075, %v2078
      %v2080 = vmul.f32 %v2079, 1.442695
      %v2081 = vpow.pop %v2080
      %v2082 = vsel %vm579, %v2081, 0.0
      %2083 = vadd.xlane.f32.xlu0 %v2082
      %v2084 = vpop.xlane.xlu0 %2083
      %v2085 = vrcp.pop %v2084
      %v2086 = vmul.f32 %v2081, %v2085
      %2087 = vrot.lane.b32.xlu0 %v1663, 48
      %v2088 = vpop.permute.xlu0 %2087
      %v2091 = vsel %vm579, %v2086, 0
      %2093 = vmatprep.subr.mxu0 0.0
      %2094 = vmatpush1.msra.mxu0 %v2088
      %2095 = vmatprep.subr.mxu0 0.0
      %2096 = vmatpush1.msra.mxu0 0.0
      %2097 = vmatprep.subr.mxu0 0.0
      %2098 = vmatpush1.msra.mxu0 0.0
      %2099 = vmatprep.subr.mxu0 0.0
      %2100 = vmatpush1.msra.mxu0 0.0
      %2101 = vmatprep.subr.mxu0 0.0
      %2102 = vmatpush1.msra.mxu0 0.0
      %2103 = vmatprep.subr.mxu0 0.0
      %2104 = vmatpush1.msra.mxu0 0.0
      %2105 = vmatprep.subr.mxu0 0.0
      %2106 = vmatpush1.msra.mxu0 0.0
      %2107 = vmatprep.subr.mxu0 0.0
      %2108 = vmatpush1.msra.mxu0 0.0
      %2109 = vmatprep.subr.mxu0 0.0
      %2110 = vmatpush1.msra.mxu0 0.0
      %2111 = vmatprep.subr.mxu0 0.0
      %2112 = vmatpush1.msra.mxu0 0.0
      %2113 = vmatprep.subr.mxu0 0.0
      %2114 = vmatpush1.msra.mxu0 0.0
      %2115 = vmatprep.subr.mxu0 0.0
      %2116 = vmatpush1.msra.mxu0 0.0
      %2117 = vmatprep.subr.mxu0 0.0
      %2118 = vmatpush1.msra.mxu0 0.0
      %2119 = vmatprep.subr.mxu0 0.0
      %2120 = vmatpush1.msra.mxu0 0.0
      %2121 = vmatprep.subr.mxu0 0.0
      %2122 = vmatpush1.msra.mxu0 0.0
      %2123 = vmatprep.subr.mxu0 0.0
      %2124 = vmatpush1.msra.mxu0 0.0
      %2125 = vmatprep.subr.mxu0 0.0
      %2126 = vmatpush1.msra.mxu0 0.0
      %2127 = vmatprep.subr.mxu0 0.0
      %2128 = vmatpush1.msra.mxu0 0.0
      %2129 = vmatprep.subr.mxu0 0.0
      %2130 = vmatpush1.msra.mxu0 0.0
      %2131 = vmatprep.subr.mxu0 0.0
      %2132 = vmatpush1.msra.mxu0 0.0
      %2133 = vmatprep.subr.mxu0 0.0
      %2134 = vmatpush1.msra.mxu0 0.0
      %2135 = vmatprep.subr.mxu0 0.0
      %2136 = vmatpush1.msra.mxu0 0.0
      %2137 = vmatprep.subr.mxu0 0.0
      %2138 = vmatpush1.msra.mxu0 0.0
      %2139 = vmatprep.subr.mxu0 0.0
      %2140 = vmatpush1.msra.mxu0 0.0
      %2141 = vmatprep.subr.mxu0 0.0
      %2142 = vmatpush1.msra.mxu0 0.0
      %2143 = vmatprep.subr.mxu0 0.0
      %2144 = vmatpush1.msra.mxu0 0.0
      %2145 = vmatprep.subr.mxu0 0.0
      %2146 = vmatpush1.msra.mxu0 0.0
      %2147 = vmatprep.subr.mxu0 0.0
      %2148 = vmatpush1.msra.mxu0 0.0
      %2149 = vmatprep.subr.mxu0 0.0
      %2150 = vmatpush1.msra.mxu0 0.0
      %2151 = vmatprep.subr.mxu0 0.0
      %2152 = vmatpush1.msra.mxu0 0.0
      %2153 = vmatprep.subr.mxu0 0.0
      %2154 = vmatpush1.msra.mxu0 0.0
      %2155 = vmatprep.subr.mxu0 0.0
      %2156 = vmatpush1.msra.mxu0 0.0
      %2157 = vmatprep.mubr.f32.mxu0 0.0
      %2158 = vmatmul.mubr.f32.gmra.mrb[0].mxu0 %v2091
      %v2159 = vpop.f32.mrb[0].mxu0
      %v2160 = vadd.f32 0.0, %v2159
      %v2161 = vpop.f32.mrb[0].mxu0
      %2162 = vdwg.mxu0
      %2163 = vrot.lane.b32.xlu0 %v1663, 104
      %v2164 = vpop.permute.xlu0 %2163
      %2165 = vrot.lane.b32.xlu0 %v1663, 72
      %v2166 = vpop.permute.xlu0 %2165
      %v2167 = vsel %vm579, %v2164, 0
      %v2169 = vsel %vm579, %v2166, 0
      %2171 = vmatprep.subr.mxu0 0.0
      %2172 = vmatpush1.xpose.msra.mxu0 %v2169
      %2173 = vmatprep.subr.mxu0 0.0
      %2174 = vmatpush1.xpose.msra.mxu0 0.0
      %2175 = vmatprep.subr.mxu0 0.0
      %2176 = vmatpush1.xpose.msra.mxu0 0.0
      %2177 = vmatprep.subr.mxu0 0.0
      %2178 = vmatpush1.xpose.msra.mxu0 0.0
      %2179 = vmatprep.subr.mxu0 0.0
      %2180 = vmatpush1.xpose.msra.mxu0 0.0
      %2181 = vmatprep.subr.mxu0 0.0
      %2182 = vmatpush1.xpose.msra.mxu0 0.0
      %2183 = vmatprep.subr.mxu0 0.0
      %2184 = vmatpush1.xpose.msra.mxu0 0.0
      %2185 = vmatprep.subr.mxu0 0.0
      %2186 = vmatpush1.xpose.msra.mxu0 0.0
      %2187 = vmatprep.subr.mxu0 0.0
      %2188 = vmatpush1.xpose.msra.mxu0 0.0
      %2189 = vmatprep.subr.mxu0 0.0
      %2190 = vmatpush1.xpose.msra.mxu0 0.0
      %2191 = vmatprep.subr.mxu0 0.0
      %2192 = vmatpush1.xpose.msra.mxu0 0.0
      %2193 = vmatprep.subr.mxu0 0.0
      %2194 = vmatpush1.xpose.msra.mxu0 0.0
      %2195 = vmatprep.subr.mxu0 0.0
      %2196 = vmatpush1.xpose.msra.mxu0 0.0
      %2197 = vmatprep.subr.mxu0 0.0
      %2198 = vmatpush1.xpose.msra.mxu0 0.0
      %2199 = vmatprep.subr.mxu0 0.0
      %2200 = vmatpush1.xpose.msra.mxu0 0.0
      %2201 = vmatprep.subr.mxu0 0.0
      %2202 = vmatpush1.xpose.msra.mxu0 0.0
      %2203 = vmatprep.subr.mxu0 0.0
      %2204 = vmatpush1.xpose.msra.mxu0 0.0
      %2205 = vmatprep.subr.mxu0 0.0
      %2206 = vmatpush1.xpose.msra.mxu0 0.0
      %2207 = vmatprep.subr.mxu0 0.0
      %2208 = vmatpush1.xpose.msra.mxu0 0.0
      %2209 = vmatprep.subr.mxu0 0.0
      %2210 = vmatpush1.xpose.msra.mxu0 0.0
      %2211 = vmatprep.subr.mxu0 0.0
      %2212 = vmatpush1.xpose.msra.mxu0 0.0
      %2213 = vmatprep.subr.mxu0 0.0
      %2214 = vmatpush1.xpose.msra.mxu0 0.0
      %2215 = vmatprep.subr.mxu0 0.0
      %2216 = vmatpush1.xpose.msra.mxu0 0.0
      %2217 = vmatprep.subr.mxu0 0.0
      %2218 = vmatpush1.xpose.msra.mxu0 0.0
      %2219 = vmatprep.subr.mxu0 0.0
      %2220 = vmatpush1.xpose.msra.mxu0 0.0
      %2221 = vmatprep.subr.mxu0 0.0
      %2222 = vmatpush1.xpose.msra.mxu0 0.0
      %2223 = vmatprep.subr.mxu0 0.0
      %2224 = vmatpush1.xpose.msra.mxu0 0.0
      %2225 = vmatprep.subr.mxu0 0.0
      %2226 = vmatpush1.xpose.msra.mxu0 0.0
      %2227 = vmatprep.subr.mxu0 0.0
      %2228 = vmatpush1.xpose.msra.mxu0 0.0
      %2229 = vmatprep.subr.mxu0 0.0
      %2230 = vmatpush1.xpose.msra.mxu0 0.0
      %2231 = vmatprep.subr.mxu0 0.0
      %2232 = vmatpush1.xpose.msra.mxu0 0.0
      %2233 = vmatprep.subr.mxu0 0.0
      %2234 = vmatpush1.xpose.msra.mxu0 0.0
      %2235 = vmatprep.mubr.f32.mxu0 0.0
      %2236 = vmatmul.mubr.f32.gmra.mrb[0].mxu0 %v2167
      %v2237 = vpop.f32.mrb[0].mxu0
      %v2238 = vadd.f32 0.0, %v2237
      %v2239 = vpop.f32.mrb[0].mxu0
      %2240 = vdwg.mxu0
      %v2241 = vmul.f32 %v2238, 0.35355338
      %v2242 = vsel %vm579, %v2241, -inf
      %2243 = vmax.xlane.f32.xlu0 %v2242
      %v2244 = vpop.xlane.xlu0 %2243
      %v2245 = vsub.f32 %v2241, %v2244
      %v2246 = vmul.f32 %v2245, 1.442695
      %v2247 = vpow.pop %v2246
      %v2248 = vsel %vm579, %v2247, 0.0
      %2249 = vadd.xlane.f32.xlu0 %v2248
      %v2250 = vpop.xlane.xlu0 %2249
      %v2251 = vrcp.pop %v2250
      %v2252 = vmul.f32 %v2247, %v2251
      %2253 = vrot.lane.b32.xlu0 %v1663, 40
      %v2254 = vpop.permute.xlu0 %2253
      %v2257 = vsel %vm579, %v2252, 0
      %2259 = vmatprep.subr.mxu0 0.0
      %2260 = vmatpush1.msra.mxu0 %v2254
      %2261 = vmatprep.subr.mxu0 0.0
      %2262 = vmatpush1.msra.mxu0 0.0
      %2263 = vmatprep.subr.mxu0 0.0
      %2264 = vmatpush1.msra.mxu0 0.0
      %2265 = vmatprep.subr.mxu0 0.0
      %2266 = vmatpush1.msra.mxu0 0.0
      %2267 = vmatprep.subr.mxu0 0.0
      %2268 = vmatpush1.msra.mxu0 0.0
      %2269 = vmatprep.subr.mxu0 0.0
      %2270 = vmatpush1.msra.mxu0 0.0
      %2271 = vmatprep.subr.mxu0 0.0
      %2272 = vmatpush1.msra.mxu0 0.0
      %2273 = vmatprep.subr.mxu0 0.0
      %2274 = vmatpush1.msra.mxu0 0.0
      %2275 = vmatprep.subr.mxu0 0.0
      %2276 = vmatpush1.msra.mxu0 0.0
      %2277 = vmatprep.subr.mxu0 0.0
      %2278 = vmatpush1.msra.mxu0 0.0
      %2279 = vmatprep.subr.mxu0 0.0
      %2280 = vmatpush1.msra.mxu0 0.0
      %2281 = vmatprep.subr.mxu0 0.0
      %2282 = vmatpush1.msra.mxu0 0.0
      %2283 = vmatprep.subr.mxu0 0.0
      %2284 = vmatpush1.msra.mxu0 0.0
      %2285 = vmatprep.subr.mxu0 0.0
      %2286 = vmatpush1.msra.mxu0 0.0
      %2287 = vmatprep.subr.mxu0 0.0
      %2288 = vmatpush1.msra.mxu0 0.0
      %2289 = vmatprep.subr.mxu0 0.0
      %2290 = vmatpush1.msra.mxu0 0.0
      %2291 = vmatprep.subr.mxu0 0.0
      %2292 = vmatpush1.msra.mxu0 0.0
      %2293 = vmatprep.subr.mxu0 0.0
      %2294 = vmatpush1.msra.mxu0 0.0
      %2295 = vmatprep.subr.mxu0 0.0
      %2296 = vmatpush1.msra.mxu0 0.0
      %2297 = vmatprep.subr.mxu0 0.0
      %2298 = vmatpush1.msra.mxu0 0.0
      %2299 = vmatprep.subr.mxu0 0.0
      %2300 = vmatpush1.msra.mxu0 0.0
      %2301 = vmatprep.subr.mxu0 0.0
      %2302 = vmatpush1.msra.mxu0 0.0
      %2303 = vmatprep.subr.mxu0 0.0
      %2304 = vmatpush1.msra.mxu0 0.0
      %2305 = vmatprep.subr.mxu0 0.0
      %2306 = vmatpush1.msra.mxu0 0.0
      %2307 = vmatprep.subr.mxu0 0.0
      %2308 = vmatpush1.msra.mxu0 0.0
      %2309 = vmatprep.subr.mxu0 0.0
      %2310 = vmatpush1.msra.mxu0 0.0
      %2311 = vmatprep.subr.mxu0 0.0
      %2312 = vmatpush1.msra.mxu0 0.0
      %2313 = vmatprep.subr.mxu0 0.0
      %2314 = vmatpush1.msra.mxu0 0.0
      %2315 = vmatprep.subr.mxu0 0.0
      %2316 = vmatpush1.msra.mxu0 0.0
      %2317 = vmatprep.subr.mxu0 0.0
      %2318 = vmatpush1.msra.mxu0 0.0
      %2319 = vmatprep.subr.mxu0 0.0
      %2320 = vmatpush1.msra.mxu0 0.0
      %2321 = vmatprep.subr.mxu0 0.0
      %2322 = vmatpush1.msra.mxu0 0.0
      %2323 = vmatprep.mubr.f32.mxu0 0.0
      %2324 = vmatmul.mubr.f32.gmra.mrb[0].mxu0 %v2257
      %v2325 = vpop.f32.mrb[0].mxu0
      %v2326 = vadd.f32 0.0, %v2325
      %v2327 = vpop.f32.mrb[0].mxu0
      %2328 = vdwg.mxu0
      %2330 = vrot.lane.b32.xlu0 %v1994, 8
      %v2331 = vpop.permute.xlu0 %2330
      %2334 = vrot.lane.b32.xlu0 %v2160, 16
      %v2335 = vpop.permute.xlu0 %2334
      %2338 = vrot.lane.b32.xlu0 %v2326, 24
      %v2339 = vpop.permute.xlu0 %2338
      %v2341 = vsel %vm579, %v1828, %v2331
      %v2342 = vsel %vm1253, %v2341, %v2335
      %v2343 = vsel %vm1255, %v2342, %v2339
      %s2344 = scalar_lea.vmem %s3, 32
      %v2345 = vld [vmem:[%s2344] sm:$0xff]
      %v2346 = vld [vmem:[%s2344 + $0x8] sm:$0xff]
      %v2347 = vld [vmem:[%s2344 + $0x10] sm:$0xff]
      %v2348 = vld [vmem:[%s2344 + $0x18] sm:$0xff]
      %s2349 = scalar_lea.vmem %s4, 1
      %v2350 = vld [vmem:[%s2349] sm:$0x1]
      %v2352 = vlaneseq
      %v2353 = vshrl.u32 %v2352, 7
      %v2354 = vsub.s32 0, %v2353
      %v2355 = vrot.slane %v2350, %v2354
      %v2358 = vsel %vm502, %v2343, 0
      %2360 = vmatprep.subr.mxu0 0.0
      %2361 = vmatpush1.msra.mxu0 %v2345
      %2362 = vmatprep.subr.mxu0 0.0
      %2363 = vmatpush1.msra.mxu0 %v2346
      %2364 = vmatprep.subr.mxu0 0.0
      %2365 = vmatpush1.msra.mxu0 %v2347
      %2366 = vmatprep.subr.mxu0 0.0
      %2367 = vmatpush1.msra.mxu0 %v2348
      %2368 = vmatprep.subr.mxu0 0.0
      %2369 = vmatpush1.msra.mxu0 0.0
      %2370 = vmatprep.subr.mxu0 0.0
      %2371 = vmatpush1.msra.mxu0 0.0
      %2372 = vmatprep.subr.mxu0 0.0
      %2373 = vmatpush1.msra.mxu0 0.0
      %2374 = vmatprep.subr.mxu0 0.0
      %2375 = vmatpush1.msra.mxu0 0.0
      %2376 = vmatprep.subr.mxu0 0.0
      %2377 = vmatpush1.msra.mxu0 0.0
      %2378 = vmatprep.subr.mxu0 0.0
      %2379 = vmatpush1.msra.mxu0 0.0
      %2380 = vmatprep.subr.mxu0 0.0
      %2381 = vmatpush1.msra.mxu0 0.0
      %2382 = vmatprep.subr.mxu0 0.0
      %2383 = vmatpush1.msra.mxu0 0.0
      %2384 = vmatprep.subr.mxu0 0.0
      %2385 = vmatpush1.msra.mxu0 0.0
      %2386 = vmatprep.subr.mxu0 0.0
      %2387 = vmatpush1.msra.mxu0 0.0
      %2388 = vmatprep.subr.mxu0 0.0
      %2389 = vmatpush1.msra.mxu0 0.0
      %2390 = vmatprep.subr.mxu0 0.0
      %2391 = vmatpush1.msra.mxu0 0.0
      %2392 = vmatprep.subr.mxu0 0.0
      %2393 = vmatpush1.msra.mxu0 0.0
      %2394 = vmatprep.subr.mxu0 0.0
      %2395 = vmatpush1.msra.mxu0 0.0
      %2396 = vmatprep.subr.mxu0 0.0
      %2397 = vmatpush1.msra.mxu0 0.0
      %2398 = vmatprep.subr.mxu0 0.0
      %2399 = vmatpush1.msra.mxu0 0.0
      %2400 = vmatprep.subr.mxu0 0.0
      %2401 = vmatpush1.msra.mxu0 0.0
      %2402 = vmatprep.subr.mxu0 0.0
      %2403 = vmatpush1.msra.mxu0 0.0
      %2404 = vmatprep.subr.mxu0 0.0
      %2405 = vmatpush1.msra.mxu0 0.0
      %2406 = vmatprep.subr.mxu0 0.0
      %2407 = vmatpush1.msra.mxu0 0.0
      %2408 = vmatprep.subr.mxu0 0.0
      %2409 = vmatpush1.msra.mxu0 0.0
      %2410 = vmatprep.subr.mxu0 0.0
      %2411 = vmatpush1.msra.mxu0 0.0
      %2412 = vmatprep.subr.mxu0 0.0
      %2413 = vmatpush1.msra.mxu0 0.0
      %2414 = vmatprep.subr.mxu0 0.0
      %2415 = vmatpush1.msra.mxu0 0.0
      %2416 = vmatprep.subr.mxu0 0.0
      %2417 = vmatpush1.msra.mxu0 0.0
      %2418 = vmatprep.subr.mxu0 0.0
      %2419 = vmatpush1.msra.mxu0 0.0
      %2420 = vmatprep.subr.mxu0 0.0
      %2421 = vmatpush1.msra.mxu0 0.0
      %2422 = vmatprep.subr.mxu0 0.0
      %2423 = vmatpush1.msra.mxu0 0.0
      %2424 = vmatprep.mubr.f32.mxu0 0.0
      %2425 = vmatmul.mubr.f32.gmra.mrb[0].mxu0 %v2358
      %v2426 = vpop.f32.mrb[0].mxu0
      %v2427 = vadd.f32 %v2355, %v2426
      %v2428 = vpop.f32.mrb[0].mxu0
      %2429 = vdwg.mxu0
      %v2430 = vadd.f32 %v1579, %v2427
      %s2431 = scalar_lea.vmem %s5, 1
      %v2432 = vld [vmem:[%s2431] sm:$0x1]
      %s2433 = scalar_lea.vmem %s6, 1
      %v2434 = vld [vmem:[%s2433] sm:$0x1]
      %v2435 = vsel %vm502, %v2430, 0.0
      %2436 = vadd.xlane.f32.xlu0 %v2435
      %v2437 = vpop.xlane.xlu0 %2436
      %v2438 = vmul.f32 %v2437, %v1347
      %v2439 = vsub.f32 %v2430, %v2438
      %v2440 = vmul.f32 %v2439, %v2439
      %v2441 = vsel %vm502, %v2440, 0.0
      %2442 = vadd.xlane.f32.xlu0 %v2441
      %v2443 = vpop.xlane.xlu0 %2442
      %v2444 = vmul.f32 %v2443, %v1347
      %v2445 = vadd.f32 %v2444, 1e-05
      %v2446 = vrsqrt.pop %v2445
      %v2447 = vmul.f32 %v2439, %v2446
      %v2449 = vlaneseq
      %v2450 = vshrl.u32 %v2449, 7
      %v2451 = vsub.s32 0, %v2450
      %v2452 = vrot.slane %v2432, %v2451
      %v2454 = vmul.f32 %v2447, %v2452
      %v2456 = vlaneseq
      %v2457 = vshrl.u32 %v2456, 7
      %v2458 = vsub.s32 0, %v2457
      %v2459 = vrot.slane %v2434, %v2458
      %v2461 = vadd.f32 %v2454, %v2459
      %s2462 = scalar_lea.vmem %s7, 32
      %v2463 = vld [vmem:[%s2462] sm:$0xff]
      %v2464 = vld [vmem:[%s2462 + $0x8] sm:$0xff]
      %v2465 = vld [vmem:[%s2462 + $0x10] sm:$0xff]
      %v2466 = vld [vmem:[%s2462 + $0x18] sm:$0xff]
      %s2467 = scalar_lea.vmem %s8, 1
      %v2468 = vld [vmem:[%s2467] sm:$0x1]
      %v2470 = vlaneseq
      %v2471 = vshrl.u32 %v2470, 7
      %v2472 = vsub.s32 0, %v2471
      %v2473 = vrot.slane %v2468, %v2472
      %v2476 = vsel %vm502, %v2461, 0
      %2478 = vmatprep.subr.mxu0 0.0
      %2479 = vmatpush1.msra.mxu0 %v2463
      %2480 = vmatprep.subr.mxu0 0.0
      %2481 = vmatpush1.msra.mxu0 %v2464
      %2482 = vmatprep.subr.mxu0 0.0
      %2483 = vmatpush1.msra.mxu0 %v2465
      %2484 = vmatprep.subr.mxu0 0.0
      %2485 = vmatpush1.msra.mxu0 %v2466
      %2486 = vmatprep.subr.mxu0 0.0
      %2487 = vmatpush1.msra.mxu0 0.0
      %2488 = vmatprep.subr.mxu0 0.0
      %2489 = vmatpush1.msra.mxu0 0.0
      %2490 = vmatprep.subr.mxu0 0.0
      %2491 = vmatpush1.msra.mxu0 0.0
      %2492 = vmatprep.subr.mxu0 0.0
      %2493 = vmatpush1.msra.mxu0 0.0
      %2494 = vmatprep.subr.mxu0 0.0
      %2495 = vmatpush1.msra.mxu0 0.0
      %2496 = vmatprep.subr.mxu0 0.0
      %2497 = vmatpush1.msra.mxu0 0.0
      %2498 = vmatprep.subr.mxu0 0.0
      %2499 = vmatpush1.msra.mxu0 0.0
      %2500 = vmatprep.subr.mxu0 0.0
      %2501 = vmatpush1.msra.mxu0 0.0
      %2502 = vmatprep.subr.mxu0 0.0
      %2503 = vmatpush1.msra.mxu0 0.0
      %2504 = vmatprep.subr.mxu0 0.0
      %2505 = vmatpush1.msra.mxu0 0.0
      %2506 = vmatprep.subr.mxu0 0.0
      %2507 = vmatpush1.msra.mxu0 0.0
      %2508 = vmatprep.subr.mxu0 0.0
      %2509 = vmatpush1.msra.mxu0 0.0
      %2510 = vmatprep.subr.mxu0 0.0
      %2511 = vmatpush1.msra.mxu0 0.0
      %2512 = vmatprep.subr.mxu0 0.0
      %2513 = vmatpush1.msra.mxu0 0.0
      %2514 = vmatprep.subr.mxu0 0.0
      %2515 = vmatpush1.msra.mxu0 0.0
      %2516 = vmatprep.subr.mxu0 0.0
      %2517 = vmatpush1.msra.mxu0 0.0
      %2518 = vmatprep.subr.mxu0 0.0
      %2519 = vmatpush1.msra.mxu0 0.0
      %2520 = vmatprep.subr.mxu0 0.0
      %2521 = vmatpush1.msra.mxu0 0.0
      %2522 = vmatprep.subr.mxu0 0.0
      %2523 = vmatpush1.msra.mxu0 0.0
      %2524 = vmatprep.subr.mxu0 0.0
      %2525 = vmatpush1.msra.mxu0 0.0
      %2526 = vmatprep.subr.mxu0 0.0
      %2527 = vmatpush1.msra.mxu0 0.0
      %2528 = vmatprep.subr.mxu0 0.0
      %2529 = vmatpush1.msra.mxu0 0.0
      %2530 = vmatprep.subr.mxu0 0.0
      %2531 = vmatpush1.msra.mxu0 0.0
      %2532 = vmatprep.subr.mxu0 0.0
      %2533 = vmatpush1.msra.mxu0 0.0
      %2534 = vmatprep.subr.mxu0 0.0
      %2535 = vmatpush1.msra.mxu0 0.0
      %2536 = vmatprep.subr.mxu0 0.0
      %2537 = vmatpush1.msra.mxu0 0.0
      %2538 = vmatprep.subr.mxu0 0.0
      %2539 = vmatpush1.msra.mxu0 0.0
      %2540 = vmatprep.subr.mxu0 0.0
      %2541 = vmatpush1.msra.mxu0 0.0
      %2542 = vmatprep.mubr.f32.mxu0 0.0
      %2543 = vmatmul.mubr.f32.gmra.mrb[0].mxu0 %v2476
      %v2544 = vpop.f32.mrb[0].mxu0
      %v2545 = vadd.f32 %v2473, %v2544
      %v2546 = vpop.f32.mrb[0].mxu0
      %2547 = vdwg.mxu0
      %v2548 = vmax.f32 %v2545, 0.0
      %s2549 = scalar_lea.vmem %s9, 128
      %v2550 = vld [vmem:[%s2549] sm:$0xff]
      %v2551 = vld [vmem:[%s2549 + $0x8] sm:$0xff]
      %v2552 = vld [vmem:[%s2549 + $0x10] sm:$0xff]
      %v2553 = vld [vmem:[%s2549 + $0x18] sm:$0xff]
      %v2554 = vld [vmem:[%s2549 + $0x20] sm:$0xff]
      %v2555 = vld [vmem:[%s2549 + $0x28] sm:$0xff]
      %v2556 = vld [vmem:[%s2549 + $0x30] sm:$0xff]
      %v2557 = vld [vmem:[%s2549 + $0x38] sm:$0xff]
      %v2558 = vld [vmem:[%s2549 + $0x40] sm:$0xff]
      %v2559 = vld [vmem:[%s2549 + $0x48] sm:$0xff]
      %v2560 = vld [vmem:[%s2549 + $0x50] sm:$0xff]
      %v2561 = vld [vmem:[%s2549 + $0x58] sm:$0xff]
      %v2562 = vld [vmem:[%s2549 + $0x60] sm:$0xff]
      %v2563 = vld [vmem:[%s2549 + $0x68] sm:$0xff]
      %v2564 = vld [vmem:[%s2549 + $0x70] sm:$0xff]
      %v2565 = vld [vmem:[%s2549 + $0x78] sm:$0xff]
      %s2566 = scalar_lea.vmem %s10, 1
      %v2567 = vld [vmem:[%s2566] sm:$0x1]
      %v2569 = vlaneseq
      %v2570 = vshrl.u32 %v2569, 7
      %v2571 = vsub.s32 0, %v2570
      %v2572 = vrot.slane %v2567, %v2571
      %2574 = vmatprep.subr.mxu0 0.0
      %2575 = vmatpush1.msra.mxu0 %v2550
      %2576 = vmatprep.subr.mxu0 0.0
      %2577 = vmatpush1.msra.mxu0 %v2551
      %2578 = vmatprep.subr.mxu0 0.0
      %2579 = vmatpush1.msra.mxu0 %v2552
      %2580 = vmatprep.subr.mxu0 0.0
      %2581 = vmatpush1.msra.mxu0 %v2553
      %2582 = vmatprep.subr.mxu0 0.0
      %2583 = vmatpush1.msra.mxu0 %v2554
      %2584 = vmatprep.subr.mxu0 0.0
      %2585 = vmatpush1.msra.mxu0 %v2555
      %2586 = vmatprep.subr.mxu0 0.0
      %2587 = vmatpush1.msra.mxu0 %v2556
      %2588 = vmatprep.subr.mxu0 0.0
      %2589 = vmatpush1.msra.mxu0 %v2557
      %2590 = vmatprep.subr.mxu0 0.0
      %2591 = vmatpush1.msra.mxu0 %v2558
      %2592 = vmatprep.subr.mxu0 0.0
      %2593 = vmatpush1.msra.mxu0 %v2559
      %2594 = vmatprep.subr.mxu0 0.0
      %2595 = vmatpush1.msra.mxu0 %v2560
      %2596 = vmatprep.subr.mxu0 0.0
      %2597 = vmatpush1.msra.mxu0 %v2561
      %2598 = vmatprep.subr.mxu0 0.0
      %2599 = vmatpush1.msra.mxu0 %v2562
      %2600 = vmatprep.subr.mxu0 0.0
      %2601 = vmatpush1.msra.mxu0 %v2563
      %2602 = vmatprep.subr.mxu0 0.0
      %2603 = vmatpush1.msra.mxu0 %v2564
      %2604 = vmatprep.subr.mxu0 0.0
      %2605 = vmatpush1.msra.mxu0 %v2565
      %2606 = vmatprep.subr.mxu0 0.0
      %2607 = vmatpush1.msra.mxu0 0.0
      %2608 = vmatprep.subr.mxu0 0.0
      %2609 = vmatpush1.msra.mxu0 0.0
      %2610 = vmatprep.subr.mxu0 0.0
      %2611 = vmatpush1.msra.mxu0 0.0
      %2612 = vmatprep.subr.mxu0 0.0
      %2613 = vmatpush1.msra.mxu0 0.0
      %2614 = vmatprep.subr.mxu0 0.0
      %2615 = vmatpush1.msra.mxu0 0.0
      %2616 = vmatprep.subr.mxu0 0.0
      %2617 = vmatpush1.msra.mxu0 0.0
      %2618 = vmatprep.subr.mxu0 0.0
      %2619 = vmatpush1.msra.mxu0 0.0
      %2620 = vmatprep.subr.mxu0 0.0
      %2621 = vmatpush1.msra.mxu0 0.0
      %2622 = vmatprep.subr.mxu0 0.0
      %2623 = vmatpush1.msra.mxu0 0.0
      %2624 = vmatprep.subr.mxu0 0.0
      %2625 = vmatpush1.msra.mxu0 0.0
      %2626 = vmatprep.subr.mxu0 0.0
      %2627 = vmatpush1.msra.mxu0 0.0
      %2628 = vmatprep.subr.mxu0 0.0
      %2629 = vmatpush1.msra.mxu0 0.0
      %2630 = vmatprep.subr.mxu0 0.0
      %2631 = vmatpush1.msra.mxu0 0.0
      %2632 = vmatprep.subr.mxu0 0.0
      %2633 = vmatpush1.msra.mxu0 0.0
      %2634 = vmatprep.subr.mxu0 0.0
      %2635 = vmatpush1.msra.mxu0 0.0
      %2636 = vmatprep.subr.mxu0 0.0
      %2637 = vmatpush1.msra.mxu0 0.0
      %2638 = vmatprep.mubr.f32.mxu0 0.0
      %2639 = vmatmul.mubr.f32.gmra.mrb[0].mxu0 %v2548
      %v2640 = vpop.f32.mrb[0].mxu0
      %v2641 = vadd.f32 %v2572, %v2640
      %v2642 = vpop.f32.mrb[0].mxu0
      %2643 = vdwg.mxu0
      %v2644 = vadd.f32 %v2461, %v2641
      %s2645 = scalar_lea.vmem %s11, 1
      %v2646 = vld [vmem:[%s2645] sm:$0x1]
      %s2647 = scalar_lea.vmem %s12, 1
      %v2648 = vld [vmem:[%s2647] sm:$0x1]
      %v2649 = vsel %vm502, %v2644, 0.0
      %2650 = vadd.xlane.f32.xlu0 %v2649
      %v2651 = vpop.xlane.xlu0 %2650
      %v2652 = vmul.f32 %v2651, %v1347
      %v2653 = vsub.f32 %v2644, %v2652
      %v2654 = vmul.f32 %v2653, %v2653
      %v2655 = vsel %vm502, %v2654, 0.0
      %2656 = vadd.xlane.f32.xlu0 %v2655
      %v2657 = vpop.xlane.xlu0 %2656
      %v2658 = vmul.f32 %v2657, %v1347
      %v2659 = vadd.f32 %v2658, 1e-05
      %v2660 = vrsqrt.pop %v2659
      %v2661 = vmul.f32 %v2653, %v2660
      %v2663 = vlaneseq
      %v2664 = vshrl.u32 %v2663, 7
      %v2665 = vsub.s32 0, %v2664
      %v2666 = vrot.slane %v2646, %v2665
      %v2668 = vmul.f32 %v2661, %v2666
      %v2670 = vlaneseq
      %v2671 = vshrl.u32 %v2670, 7
      %v2672 = vsub.s32 0, %v2671
      %v2673 = vrot.slane %v2648, %v2672
      %v2675 = vadd.f32 %v2668, %v2673
      %v2676 = vld [vmem:[%s13] sm:$0xff]
      %v2677 = vld [vmem:[%s13 + $0x8] sm:$0xff]
      %v2678 = vld [vmem:[%s13 + $0x10] sm:$0xff]
      %v2679 = vld [vmem:[%s13 + $0x18] sm:$0xff]
      %v2680 = vld [vmem:[#allocation2] sm:$0x1]
      %v2682 = vrot.slane %v2675, 7
      %v2683 = vsel %vm502, %v2682, 0
      %2685 = vmatprep.subr.mxu0 0.0
      %2686 = vmatpush1.msra.mxu0 %v2676
      %2687 = vmatprep.subr.mxu0 0.0
      %2688 = vmatpush1.msra.mxu0 %v2677
      %2689 = vmatprep.subr.mxu0 0.0
      %2690 = vmatpush1.msra.mxu0 %v2678
      %2691 = vmatprep.subr.mxu0 0.0
      %2692 = vmatpush1.msra.mxu0 %v2679
      %2693 = vmatprep.subr.mxu0 0.0
      %2694 = vmatpush1.msra.mxu0 0.0
      %2695 = vmatprep.subr.mxu0 0.0
      %2696 = vmatpush1.msra.mxu0 0.0
      %2697 = vmatprep.subr.mxu0 0.0
      %2698 = vmatpush1.msra.mxu0 0.0
      %2699 = vmatprep.subr.mxu0 0.0
      %2700 = vmatpush1.msra.mxu0 0.0
      %2701 = vmatprep.subr.mxu0 0.0
      %2702 = vmatpush1.msra.mxu0 0.0
      %2703 = vmatprep.subr.mxu0 0.0
      %2704 = vmatpush1.msra.mxu0 0.0
      %2705 = vmatprep.subr.mxu0 0.0
      %2706 = vmatpush1.msra.mxu0 0.0
      %2707 = vmatprep.subr.mxu0 0.0
      %2708 = vmatpush1.msra.mxu0 0.0
      %2709 = vmatprep.subr.mxu0 0.0
      %2710 = vmatpush1.msra.mxu0 0.0
      %2711 = vmatprep.subr.mxu0 0.0
      %2712 = vmatpush1.msra.mxu0 0.0
      %2713 = vmatprep.subr.mxu0 0.0
      %2714 = vmatpush1.msra.mxu0 0.0
      %2715 = vmatprep.subr.mxu0 0.0
      %2716 = vmatpush1.msra.mxu0 0.0
      %2717 = vmatprep.subr.mxu0 0.0
      %2718 = vmatpush1.msra.mxu0 0.0
      %2719 = vmatprep.subr.mxu0 0.0
      %2720 = vmatpush1.msra.mxu0 0.0
      %2721 = vmatprep.subr.mxu0 0.0
      %2722 = vmatpush1.msra.mxu0 0.0
      %2723 = vmatprep.subr.mxu0 0.0
      %2724 = vmatpush1.msra.mxu0 0.0
      %2725 = vmatprep.subr.mxu0 0.0
      %2726 = vmatpush1.msra.mxu0 0.0
      %2727 = vmatprep.subr.mxu0 0.0
      %2728 = vmatpush1.msra.mxu0 0.0
      %2729 = vmatprep.subr.mxu0 0.0
      %2730 = vmatpush1.msra.mxu0 0.0
      %2731 = vmatprep.subr.mxu0 0.0
      %2732 = vmatpush1.msra.mxu0 0.0
      %2733 = vmatprep.subr.mxu0 0.0
      %2734 = vmatpush1.msra.mxu0 0.0
      %2735 = vmatprep.subr.mxu0 0.0
      %2736 = vmatpush1.msra.mxu0 0.0
      %2737 = vmatprep.subr.mxu0 0.0
      %2738 = vmatpush1.msra.mxu0 0.0
      %2739 = vmatprep.subr.mxu0 0.0
      %2740 = vmatpush1.msra.mxu0 0.0
      %2741 = vmatprep.subr.mxu0 0.0
      %2742 = vmatpush1.msra.mxu0 0.0
      %2743 = vmatprep.subr.mxu0 0.0
      %2744 = vmatpush1.msra.mxu0 0.0
      %2745 = vmatprep.subr.mxu0 0.0
      %2746 = vmatpush1.msra.mxu0 0.0
      %2747 = vmatprep.subr.mxu0 0.0
      %2748 = vmatpush1.msra.mxu0 0.0
      %2749 = vmatprep.mubr.f32.mxu0 0.0
      %2750 = vmatmul.mubr.f32.gmra.mrb[0].mxu0 %v2683
      %v2751 = vpop.f32.mrb[0].mxu0
      %v2752 = vadd.f32 %v2680, %v2751
      %v2753 = vpop.f32.mrb[0].mxu0
      %2754 = vdwg.mxu0
      %vm2755 = vcmask 0
      %2756 = vst.msk [vmem:[%s489] sm:$0x1] %vm2755, %v2752
      %p2757 = scmp.lt.s32.totalorder %s28, 1
      %s2758 = scalar_select %p2757, %s28, 1
      %s2759 = scalar_lea.vmem %s15, %s2758
      // Predicated region
      $region81: #{transformer_baseline_forward.1} parent=79 // pred_check
        %p2760 = pneg %p366
      $region82: #{transformer_baseline_forward.1} parent=79 // pred_check_branch
        %2762 = sbr.rel (%p2760) target = $region84
      $region83: #{transformer_baseline_forward.1} parent=79 // pred_region
        _
      $region84: #{transformer_baseline_forward.1} parent=79 // pred_fallthru
        _
    $region80: #{transformer_baseline_forward.1} parent=5 // pred_fallthru
      _
    %p2763 = scmp.le.s32.totalorder 2, %s23
    // Predicated region
    $region85: #{transformer_baseline_forward.1} parent=5 // pred_check
      %p2764 = pneg %p2763
    $region86: #{transformer_baseline_forward.1} parent=5 // pred_check_branch
      %2766 = sbr.rel (%p2764) target = $region88
    $region87: #{transformer_baseline_forward.1} parent=5 // pred_region
      %s2767 = ssub.s32 %s23, 2
      // Predicated region
      $region89: #{transformer_baseline_forward.1} parent=87 // pred_check
        %p2768 = pneg %p372
      $region90: #{transformer_baseline_forward.1} parent=87 // pred_check_branch
        %2770 = sbr.rel (%p2768) target = $region92
      $region91: #{transformer_baseline_forward.1} parent=87 // pred_region
        %p2771 = scmp.lt.s32.totalorder %s29, 1
        %s2772 = scalar_select %p2771, %s29, 1
        %s2773 = scalar_lea.vmem %s15, %s2772
      $region92: #{transformer_baseline_forward.1} parent=87 // pred_fallthru
        _
    $region88: #{transformer_baseline_forward.1} parent=5 // pred_fallthru
      _
  $region6: #{transformer_baseline_forward.1} parent=0 // loop_footer
    %s27 = sadd.s32 1, %s23
  $region7: #{transformer_baseline_forward.1} parent=0 // loop_footer_branch
    %22 = sbr.rel target = $region3
  $region8: #{transformer_baseline_forward.1} parent=0 // loop_exit
    _

</llo_original>
